<compile_context>
chip_gen: v7x
topology: tpu7x:2x2x1
jax: 0.10.0
libtpu: 0.0.40
codegen_flags: <defaults>
</compile_context>

<pallas_src>
import jax
import jax.numpy as jnp
from jax.experimental import pallas as pl
from jax.experimental.pallas import tpu as pltpu

EPS = 1e-5


# ------------------------------ Pallas kernel ------------------------------ #
def _make_srb2_kernel(B, C, H, W):
    """Fused (SRB -> SRB) kernel on a sublane-dense (C*B, H*W) activation."""
    CB = C * B
    HW = H * W
    inv_n = 1.0 / float(B * HW)

    def kernel(x_ref, w_ref, gb_ref, mk_ref, s_ref, ab_ref, out_ref):
        x = x_ref[...]                       # (CB, HW) f32
        gb = gb_ref[...]                     # (CB, 8)  gamma/beta columns
        S = s_ref[...]                       # (CB, CB) channel-group sum+bcast
        cmask_m1 = mk_ref[0]                 # (CB, HW) valid iff w-1 >= 0
        cmask_p1 = mk_ref[1]                 # valid iff w+1 <= W-1
        rmask_m1 = mk_ref[2]                 # valid iff h-1 >= 0
        rmask_p1 = mk_ref[3]                 # valid iff h+1 <= H-1
        ones_v = jnp.ones((HW, 1), jnp.float32)

        def dot(a, b):
            return jnp.dot(a, b, preferred_element_type=jnp.float32)

        def conv3x3(z, ci):
            # Column-shifted, column-masked variants (dx = -1, 0, +1).
            zc = (pltpu.roll(z, 1, axis=1) * cmask_m1,        # needs x[h, w-1]
                  z,                                          # x[h, w]
                  pltpu.roll(z, HW - 1, axis=1) * cmask_p1)   # needs x[h, w+1]

            def w_tap(ky, kx):
                return w_ref[ci * 9 + ky * 3 + kx]            # (CB, CB)

            # dy = 0 (ky = 1): no row mask needed.
            acc = dot(w_tap(1, 0), zc[0])
            acc = acc + dot(w_tap(1, 1), zc[1])
            acc = acc + dot(w_tap(1, 2), zc[2])

            # dy = -1 (ky = 0): shift rows down by +W, one shared row mask.
            part = dot(w_tap(0, 0), pltpu.roll(zc[0], W, axis=1))
            part = part + dot(w_tap(0, 1), pltpu.roll(zc[1], W, axis=1))
            part = part + dot(w_tap(0, 2), pltpu.roll(zc[2], W, axis=1))
            acc = acc + part * rmask_m1

            # dy = +1 (ky = 2): shift rows up by -W, one shared row mask.
            part = dot(w_tap(2, 0), pltpu.roll(zc[0], HW - W, axis=1))
            part = part + dot(w_tap(2, 1), pltpu.roll(zc[1], HW - W, axis=1))
            part = part + dot(w_tap(2, 2), pltpu.roll(zc[2], HW - W, axis=1))
            acc = acc + part * rmask_p1
            return acc

        def batchnorm(y, g_col, bt_col):
            # Training-mode BN, biased variance, centered two-pass form.
            # Lane reductions run on the MXU (dot with ones); the tiny S-dot
            # sums each channel's B batch rows and broadcasts back to (c, b).
            mean = dot(S, dot(y, ones_v)) * inv_n             # (CB, 1)
            d = y - mean
            var = dot(S, dot(d * d, ones_v)) * inv_n          # (CB, 1), >= 0
            scale = g_col * jax.lax.rsqrt(var + EPS)          # tiny EUP op
            return d * scale + bt_col

        def srb(z, ci, g1, bt1, g2, bt2, a, b):
            r = jnp.maximum(batchnorm(conv3x3(z, ci), g1, bt1), 0.0)
            r = batchnorm(conv3x3(r, ci + 1), g2, bt2)
            return jnp.maximum(r * b + z * a, 0.0)

        col = lambda k: gb[:, k:k + 1]                        # (CB, 1)
        h1 = srb(x, 0, col(0), col(1), col(2), col(3), ab_ref[0], ab_ref[1])
        out_ref[...] = srb(h1, 2, col(4), col(5), col(6), col(7),
                           ab_ref[2], ab_ref[3])

    return kernel


# --------------------------- host-side parameter prep ----------------------- #
def _expand_block_diag(wt, B):
    """(Cout, Cin) tap weight -> (Cout*B, Cin*B) block-diagonal over batch."""
    eye = jnp.eye(B, dtype=wt.dtype)
    return (wt[:, None, :, None] * eye[None, :, None, :]).reshape(
        wt.shape[0] * B, wt.shape[1] * B)


def _pack_conv_taps(w_hwio, B):
    """(3,3,Cin,Cout) HWIO -> (9, CB, CB) block-diagonal per-tap weights."""
    taps = []
    for ky in range(3):
        for kx in range(3):
            taps.append(_expand_block_diag(w_hwio[ky, kx].T, B))
    return jnp.stack(taps)


def _border_masks(B, C, H, W):
    """(4, CB, HW) f32 validity masks: [col dx=-1, col dx=+1, row dy=-1, row dy=+1]."""
    hh = jnp.arange(H * W, dtype=jnp.int32) // W
    ww = jnp.arange(H * W, dtype=jnp.int32) % W
    m = jnp.stack([ww >= 1, ww <= W - 2, hh >= 1, hh <= H - 2]).astype(jnp.float32)
    return jnp.broadcast_to(m[:, None, :], (4, C * B, H * W))


def srb2_fused(x_nchw, p1, p2):
    """Apply SRB1 then SRB2 in one pallas_call. x_nchw: (B, C, H, W) f32."""
    B, C, H, W = x_nchw.shape
    CB, HW = C * B, H * W

    # NCHW -> sublane-dense (C*B, H*W): row r = c*B + b.
    x_cb = jnp.transpose(x_nchw, (1, 0, 2, 3)).reshape(CB, HW)

    w1a, _b1, g1a, bt1a, w2a, _b2, g2a, bt2a, ab_a = p1
    w1b, _b3, g1b, bt1b, w2b, _b4, g2b, bt2b, ab_b = p2
    # Conv biases intentionally dropped: training-mode BN cancels them exactly.
    w_all = jnp.concatenate(
        [_pack_conv_taps(w, B) for w in (w1a, w2a, w1b, w2b)], axis=0)   # (36,CB,CB)

    rep = lambda v: jnp.repeat(v.astype(jnp.float32), B)                  # (CB,)
    gb = jnp.stack([rep(g1a), rep(bt1a), rep(g2a), rep(bt2a),
                    rep(g1b), rep(bt1b), rep(g2b), rep(bt2b)], axis=1)    # (CB, 8)
    ab = jnp.concatenate([ab_a, ab_b]).astype(jnp.float32)                # [a1,b1,a2,b2]
    masks = _border_masks(B, C, H, W)                                     # (4,CB,HW)

    rid = jnp.arange(CB) // B
    S = (rid[:, None] == rid[None, :]).astype(jnp.float32)                # (CB,CB)

    vmem = pl.BlockSpec(memory_space=pltpu.MemorySpace.VMEM)
    smem = pl.BlockSpec(memory_space=pltpu.MemorySpace.SMEM)

    out_cb = pl.pallas_call(
        _make_srb2_kernel(B, C, H, W),
        out_shape=jax.ShapeDtypeStruct((CB, HW), jnp.float32),
        in_specs=[vmem, vmem, vmem, vmem, vmem, smem],
        out_specs=vmem,
        compiler_params=pltpu.CompilerParams(
            vmem_limit_bytes=32 * 1024 * 1024),
    )(x_cb, w_all, gb, masks, S, ab)

    return jnp.transpose(out_cb.reshape(C, B, H, W), (1, 0, 2, 3))


# ------------------------------ plain-JAX glue ------------------------------ #
def pixel_shuffle_nchw(x, r=2):
    """PyTorch nn.PixelShuffle(r) on NCHW (pure data movement, left to XLA)."""
    B, Crr, H, W = x.shape
    C = Crr // (r * r)
    x = x.reshape(B, C, r, r, H, W)
    x = x.transpose(0, 1, 4, 2, 5, 3)
    return x.reshape(B, C, H * r, W * r)


def decode_block(x, skip, srb1_params, srb2_params):
    """DecodeBlock.forward. x, skip, output in NCHW (PyTorch convention)."""
    out = pixel_shuffle_nchw(x)
    out = jnp.concatenate([out, skip], axis=1)
    out = pixel_shuffle_nchw(out)
    return srb2_fused(out, srb1_params, srb2_params)


# ----------------------- pure-JAX reference (check) ------------------------ #
def _srb_ref(x, params):                      # x: NCHW
    w1, b1, g1, bt1, w2, b2, g2, bt2, ab = params

    def conv(z, w, b):
        y = jax.lax.conv_general_dilated(
            z, w, window_strides=(1, 1), padding='SAME',
            dimension_numbers=('NCHW', 'HWIO', 'NCHW'))
        return y + b.reshape(1, -1, 1, 1)

    def bn(y, g, bt):
        m = jnp.mean(y, axis=(0, 2, 3), keepdims=True)
        v = jnp.mean((y - m) ** 2, axis=(0, 2, 3), keepdims=True)
        return ((y - m) * jax.lax.rsqrt(v + EPS) * g.reshape(1, -1, 1, 1)
                + bt.reshape(1, -1, 1, 1))

    r = jnp.maximum(bn(conv(x, w1, b1), g1, bt1), 0.0)
    r = bn(conv(r, w2, b2), g2, bt2)
    return jnp.maximum(r * ab[1] + x * ab[0], 0.0)


def _decode_block_ref(x, skip, p1, p2):
    out = pixel_shuffle_nchw(x)
    out = jnp.concatenate([out, skip], axis=1)
    out = pixel_shuffle_nchw(out)
    out = _srb_ref(out, p1)
    out = _srb_ref(out, p2)
    return out


# ------------------------------- params init ------------------------------- #
def init_srb(key, C):
    ks = jax.random.split(key, 8)
    scale = 1.0 / (3.0 * C)
    w1 = jax.random.normal(ks[0], (3, 3, C, C), jnp.float32) * scale
    b1 = jax.random.normal(ks[1], (C,), jnp.float32) * 0.1
    w2 = jax.random.normal(ks[2], (3, 3, C, C), jnp.float32) * scale
    b2 = jax.random.normal(ks[3], (C,), jnp.float32) * 0.1
    g1 = 1.0 + 0.1 * jax.random.normal(ks[4], (C,), jnp.float32)
    bt1 = 0.1 * jax.random.normal(ks[5], (C,), jnp.float32)
    g2 = 1.0 + 0.1 * jax.random.normal(ks[6], (C,), jnp.float32)
    bt2 = 0.1 * jax.random.normal(ks[7], (C,), jnp.float32)
    # PyTorch initializes a = b = 1; distinct values so the learned
    # residual-mix path (r*b + x*a) is genuinely exercised by the check.
    ab = jnp.array([0.9, 1.1], jnp.float32)
    return (w1, b1, g1, bt1, w2, b2, g2, bt2, ab)


# ----------------------------------- main ----------------------------------- #
if __name__ == "__main__":
    key = jax.random.PRNGKey(0)
    kx, ksk, k1, k2 = jax.random.split(key, 4)

    B = 2
    Cx = 16            # DecodeBlock input_channel
    Cskip = 12
    Hs = Ws = 4
    Cout = (Cx // 4 + Cskip) // 4   # = 4, DecodeBlock output_channel

    x = jax.random.normal(kx, (B, Cx, Hs, Ws), jnp.float32)
    skip = jax.random.normal(ksk, (B, Cskip, 2 * Hs, 2 * Ws), jnp.float32)

    p1 = init_srb(k1, Cout)
    p2 = init_srb(k2, Cout)

    out = jax.block_until_ready(jax.jit(decode_block)(x, skip, p1, p2))
    assert out.shape == (B, Cout, 4 * Hs, 4 * Ws), out.shape

    ref = jax.block_until_ready(_decode_block_ref(x, skip, p1, p2))
    max_err = float(jnp.max(jnp.abs(out - ref)))
    assert max_err < 1e-2, f"mismatch vs reference: {max_err}"

    print("KERNEL_OK")
</pallas_src>

<mosaic_0001>
module attributes {stable_mosaic.version = 11 : i64} {
  func.func @kernel(%arg0: memref<8x256xf32, #tpu.memory_space<vmem>>, %arg1: memref<36x8x8xf32, #tpu.memory_space<vmem>>, %arg2: memref<8x8xf32, #tpu.memory_space<vmem>>, %arg3: memref<4x8x256xf32, #tpu.memory_space<vmem>>, %arg4: memref<8x8xf32, #tpu.memory_space<vmem>>, %arg5: memref<4xf32, #tpu.memory_space<smem>>, %arg6: memref<8x256xf32, #tpu.memory_space<vmem>>) attributes {dimension_semantics = [], scalar_prefetch = 0 : i64, scratch_operands = 0 : i64, tpu.core_type = #tpu.core_type<tc>} {
    %c0 = arith.constant 0 : index
    %c0_0 = arith.constant 0 : index
    %0 = vector.load %arg0[%c0, %c0_0] : memref<8x256xf32, #tpu.memory_space<vmem>>, vector<8x256xf32>
    %c0_1 = arith.constant 0 : index
    %c0_2 = arith.constant 0 : index
    %1 = vector.load %arg2[%c0_1, %c0_2] : memref<8x8xf32, #tpu.memory_space<vmem>>, vector<8x8xf32>
    %c0_3 = arith.constant 0 : index
    %c0_4 = arith.constant 0 : index
    %2 = vector.load %arg4[%c0_3, %c0_4] : memref<8x8xf32, #tpu.memory_space<vmem>>, vector<8x8xf32>
    %c0_5 = arith.constant 0 : index
    %c0_6 = arith.constant 0 : index
    %c0_7 = arith.constant 0 : index
    %3 = vector.load %arg3[%c0_5, %c0_6, %c0_7] : memref<4x8x256xf32, #tpu.memory_space<vmem>>, vector<1x8x256xf32>
    %4 = vector.shape_cast %3 : vector<1x8x256xf32> to vector<8x256xf32>
    %c1 = arith.constant 1 : index
    %c0_8 = arith.constant 0 : index
    %c0_9 = arith.constant 0 : index
    %5 = vector.load %arg3[%c1, %c0_8, %c0_9] : memref<4x8x256xf32, #tpu.memory_space<vmem>>, vector<1x8x256xf32>
    %6 = vector.shape_cast %5 : vector<1x8x256xf32> to vector<8x256xf32>
    %c2 = arith.constant 2 : index
    %c0_10 = arith.constant 0 : index
    %c0_11 = arith.constant 0 : index
    %7 = vector.load %arg3[%c2, %c0_10, %c0_11] : memref<4x8x256xf32, #tpu.memory_space<vmem>>, vector<1x8x256xf32>
    %8 = vector.shape_cast %7 : vector<1x8x256xf32> to vector<8x256xf32>
    %c3 = arith.constant 3 : index
    %c0_12 = arith.constant 0 : index
    %c0_13 = arith.constant 0 : index
    %9 = vector.load %arg3[%c3, %c0_12, %c0_13] : memref<4x8x256xf32, #tpu.memory_space<vmem>>, vector<1x8x256xf32>
    %10 = vector.shape_cast %9 : vector<1x8x256xf32> to vector<8x256xf32>
    %cst = arith.constant 1.000000e+00 : f32
    %11 = vector.broadcast %cst : f32 to vector<256x1xf32>
    %12 = vector.extract_strided_slice %1 {offsets = [0, 0], sizes = [8, 1], strides = [1, 1]} : vector<8x8xf32> to vector<8x1xf32>
    %13 = vector.extract_strided_slice %1 {offsets = [0, 1], sizes = [8, 1], strides = [1, 1]} : vector<8x8xf32> to vector<8x1xf32>
    %14 = vector.extract_strided_slice %1 {offsets = [0, 2], sizes = [8, 1], strides = [1, 1]} : vector<8x8xf32> to vector<8x1xf32>
    %15 = vector.extract_strided_slice %1 {offsets = [0, 3], sizes = [8, 1], strides = [1, 1]} : vector<8x8xf32> to vector<8x1xf32>
    %c0_14 = arith.constant 0 : index
    %16 = memref.load %arg5[%c0_14] : memref<4xf32, #tpu.memory_space<smem>>
    %c1_15 = arith.constant 1 : index
    %17 = memref.load %arg5[%c1_15] : memref<4xf32, #tpu.memory_space<smem>>
    %c1_i32 = arith.constant 1 : i32
    %18 = tpu.dynamic_rotate %0 by %c1_i32 dim 1 : vector<8x256xf32>, i32 -> vector<8x256xf32>
    %19 = arith.mulf %18, %4 : vector<8x256xf32>
    %c255_i32 = arith.constant 255 : i32
    %20 = tpu.dynamic_rotate %0 by %c255_i32 dim 1 : vector<8x256xf32>, i32 -> vector<8x256xf32>
    %21 = arith.mulf %20, %6 : vector<8x256xf32>
    %c3_16 = arith.constant 3 : index
    %c0_17 = arith.constant 0 : index
    %c0_18 = arith.constant 0 : index
    %22 = vector.load %arg1[%c3_16, %c0_17, %c0_18] : memref<36x8x8xf32, #tpu.memory_space<vmem>>, vector<1x8x8xf32>
    %23 = vector.shape_cast %22 : vector<1x8x8xf32> to vector<8x8xf32>
    %cst_19 = arith.constant dense<0.000000e+00> : vector<8x256xf32>
    %24 = tpu.matmul %23, %19, %cst_19 {dimension_numbers = #tpu.dot_dimension_numbers<[1], [0], [0], [1], [0, 0, 1, 1], [], []>} : vector<8x8xf32>, vector<8x256xf32>, vector<8x256xf32> -> vector<8x256xf32>
    %c4 = arith.constant 4 : index
    %c0_20 = arith.constant 0 : index
    %c0_21 = arith.constant 0 : index
    %25 = vector.load %arg1[%c4, %c0_20, %c0_21] : memref<36x8x8xf32, #tpu.memory_space<vmem>>, vector<1x8x8xf32>
    %26 = vector.shape_cast %25 : vector<1x8x8xf32> to vector<8x8xf32>
    %cst_22 = arith.constant dense<0.000000e+00> : vector<8x256xf32>
    %27 = tpu.matmul %26, %0, %cst_22 {dimension_numbers = #tpu.dot_dimension_numbers<[1], [0], [0], [1], [0, 0, 1, 1], [], []>} : vector<8x8xf32>, vector<8x256xf32>, vector<8x256xf32> -> vector<8x256xf32>
    %28 = arith.addf %24, %27 : vector<8x256xf32>
    %c5 = arith.constant 5 : index
    %c0_23 = arith.constant 0 : index
    %c0_24 = arith.constant 0 : index
    %29 = vector.load %arg1[%c5, %c0_23, %c0_24] : memref<36x8x8xf32, #tpu.memory_space<vmem>>, vector<1x8x8xf32>
    %30 = vector.shape_cast %29 : vector<1x8x8xf32> to vector<8x8xf32>
    %cst_25 = arith.constant dense<0.000000e+00> : vector<8x256xf32>
    %31 = tpu.matmul %30, %21, %cst_25 {dimension_numbers = #tpu.dot_dimension_numbers<[1], [0], [0], [1], [0, 0, 1, 1], [], []>} : vector<8x8xf32>, vector<8x256xf32>, vector<8x256xf32> -> vector<8x256xf32>
    %32 = arith.addf %28, %31 : vector<8x256xf32>
    %c0_26 = arith.constant 0 : index
    %c0_27 = arith.constant 0 : index
    %c0_28 = arith.constant 0 : index
    %33 = vector.load %arg1[%c0_26, %c0_27, %c0_28] : memref<36x8x8xf32, #tpu.memory_space<vmem>>, vector<1x8x8xf32>
    %34 = vector.shape_cast %33 : vector<1x8x8xf32> to vector<8x8xf32>
    %c16_i32 = arith.constant 16 : i32
    %35 = tpu.dynamic_rotate %19 by %c16_i32 dim 1 : vector<8x256xf32>, i32 -> vector<8x256xf32>
    %cst_29 = arith.constant dense<0.000000e+00> : vector<8x256xf32>
    %36 = tpu.matmul %34, %35, %cst_29 {dimension_numbers = #tpu.dot_dimension_numbers<[1], [0], [0], [1], [0, 0, 1, 1], [], []>} : vector<8x8xf32>, vector<8x256xf32>, vector<8x256xf32> -> vector<8x256xf32>
    %c1_30 = arith.constant 1 : index
    %c0_31 = arith.constant 0 : index
    %c0_32 = arith.constant 0 : index
    %37 = vector.load %arg1[%c1_30, %c0_31, %c0_32] : memref<36x8x8xf32, #tpu.memory_space<vmem>>, vector<1x8x8xf32>
    %38 = vector.shape_cast %37 : vector<1x8x8xf32> to vector<8x8xf32>
    %c16_i32_33 = arith.constant 16 : i32
    %39 = tpu.dynamic_rotate %0 by %c16_i32_33 dim 1 : vector<8x256xf32>, i32 -> vector<8x256xf32>
    %cst_34 = arith.constant dense<0.000000e+00> : vector<8x256xf32>
    %40 = tpu.matmul %38, %39, %cst_34 {dimension_numbers = #tpu.dot_dimension_numbers<[1], [0], [0], [1], [0, 0, 1, 1], [], []>} : vector<8x8xf32>, vector<8x256xf32>, vector<8x256xf32> -> vector<8x256xf32>
    %41 = arith.addf %36, %40 : vector<8x256xf32>
    %c2_35 = arith.constant 2 : index
    %c0_36 = arith.constant 0 : index
    %c0_37 = arith.constant 0 : index
    %42 = vector.load %arg1[%c2_35, %c0_36, %c0_37] : memref<36x8x8xf32, #tpu.memory_space<vmem>>, vector<1x8x8xf32>
    %43 = vector.shape_cast %42 : vector<1x8x8xf32> to vector<8x8xf32>
    %c16_i32_38 = arith.constant 16 : i32
    %44 = tpu.dynamic_rotate %21 by %c16_i32_38 dim 1 : vector<8x256xf32>, i32 -> vector<8x256xf32>
    %cst_39 = arith.constant dense<0.000000e+00> : vector<8x256xf32>
    %45 = tpu.matmul %43, %44, %cst_39 {dimension_numbers = #tpu.dot_dimension_numbers<[1], [0], [0], [1], [0, 0, 1, 1], [], []>} : vector<8x8xf32>, vector<8x256xf32>, vector<8x256xf32> -> vector<8x256xf32>
    %46 = arith.addf %41, %45 : vector<8x256xf32>
    %47 = arith.mulf %46, %8 : vector<8x256xf32>
    %48 = arith.addf %32, %47 : vector<8x256xf32>
    %c6 = arith.constant 6 : index
    %c0_40 = arith.constant 0 : index
    %c0_41 = arith.constant 0 : index
    %49 = vector.load %arg1[%c6, %c0_40, %c0_41] : memref<36x8x8xf32, #tpu.memory_space<vmem>>, vector<1x8x8xf32>
    %50 = vector.shape_cast %49 : vector<1x8x8xf32> to vector<8x8xf32>
    %c240_i32 = arith.constant 240 : i32
    %51 = tpu.dynamic_rotate %19 by %c240_i32 dim 1 : vector<8x256xf32>, i32 -> vector<8x256xf32>
    %cst_42 = arith.constant dense<0.000000e+00> : vector<8x256xf32>
    %52 = tpu.matmul %50, %51, %cst_42 {dimension_numbers = #tpu.dot_dimension_numbers<[1], [0], [0], [1], [0, 0, 1, 1], [], []>} : vector<8x8xf32>, vector<8x256xf32>, vector<8x256xf32> -> vector<8x256xf32>
    %c7 = arith.constant 7 : index
    %c0_43 = arith.constant 0 : index
    %c0_44 = arith.constant 0 : index
    %53 = vector.load %arg1[%c7, %c0_43, %c0_44] : memref<36x8x8xf32, #tpu.memory_space<vmem>>, vector<1x8x8xf32>
    %54 = vector.shape_cast %53 : vector<1x8x8xf32> to vector<8x8xf32>
    %c240_i32_45 = arith.constant 240 : i32
    %55 = tpu.dynamic_rotate %0 by %c240_i32_45 dim 1 : vector<8x256xf32>, i32 -> vector<8x256xf32>
    %cst_46 = arith.constant dense<0.000000e+00> : vector<8x256xf32>
    %56 = tpu.matmul %54, %55, %cst_46 {dimension_numbers = #tpu.dot_dimension_numbers<[1], [0], [0], [1], [0, 0, 1, 1], [], []>} : vector<8x8xf32>, vector<8x256xf32>, vector<8x256xf32> -> vector<8x256xf32>
    %57 = arith.addf %52, %56 : vector<8x256xf32>
    %c8 = arith.constant 8 : index
    %c0_47 = arith.constant 0 : index
    %c0_48 = arith.constant 0 : index
    %58 = vector.load %arg1[%c8, %c0_47, %c0_48] : memref<36x8x8xf32, #tpu.memory_space<vmem>>, vector<1x8x8xf32>
    %59 = vector.shape_cast %58 : vector<1x8x8xf32> to vector<8x8xf32>
    %c240_i32_49 = arith.constant 240 : i32
    %60 = tpu.dynamic_rotate %21 by %c240_i32_49 dim 1 : vector<8x256xf32>, i32 -> vector<8x256xf32>
    %cst_50 = arith.constant dense<0.000000e+00> : vector<8x256xf32>
    %61 = tpu.matmul %59, %60, %cst_50 {dimension_numbers = #tpu.dot_dimension_numbers<[1], [0], [0], [1], [0, 0, 1, 1], [], []>} : vector<8x8xf32>, vector<8x256xf32>, vector<8x256xf32> -> vector<8x256xf32>
    %62 = arith.addf %57, %61 : vector<8x256xf32>
    %63 = arith.mulf %62, %10 : vector<8x256xf32>
    %64 = arith.addf %48, %63 : vector<8x256xf32>
    %cst_51 = arith.constant dense<0.000000e+00> : vector<8x1xf32>
    %65 = tpu.matmul %64, %11, %cst_51 {dimension_numbers = #tpu.dot_dimension_numbers<[1], [0], [0], [1], [0, 0, 1, 1], [], []>} : vector<8x256xf32>, vector<256x1xf32>, vector<8x1xf32> -> vector<8x1xf32>
    %cst_52 = arith.constant dense<0.000000e+00> : vector<8x1xf32>
    %66 = tpu.matmul %2, %65, %cst_52 {dimension_numbers = #tpu.dot_dimension_numbers<[1], [0], [0], [1], [0, 0, 1, 1], [], []>} : vector<8x8xf32>, vector<8x1xf32>, vector<8x1xf32> -> vector<8x1xf32>
    %cst_53 = arith.constant 0.001953125 : f32
    %67 = vector.broadcast %cst_53 : f32 to vector<8x1xf32>
    %68 = arith.mulf %66, %67 : vector<8x1xf32>
    %69 = vector.broadcast %68 : vector<8x1xf32> to vector<8x256xf32>
    %70 = arith.subf %64, %69 : vector<8x256xf32>
    %71 = arith.mulf %70, %70 : vector<8x256xf32>
    %cst_54 = arith.constant dense<0.000000e+00> : vector<8x1xf32>
    %72 = tpu.matmul %71, %11, %cst_54 {dimension_numbers = #tpu.dot_dimension_numbers<[1], [0], [0], [1], [0, 0, 1, 1], [], []>} : vector<8x256xf32>, vector<256x1xf32>, vector<8x1xf32> -> vector<8x1xf32>
    %cst_55 = arith.constant dense<0.000000e+00> : vector<8x1xf32>
    %73 = tpu.matmul %2, %72, %cst_55 {dimension_numbers = #tpu.dot_dimension_numbers<[1], [0], [0], [1], [0, 0, 1, 1], [], []>} : vector<8x8xf32>, vector<8x1xf32>, vector<8x1xf32> -> vector<8x1xf32>
    %cst_56 = arith.constant 0.001953125 : f32
    %74 = vector.broadcast %cst_56 : f32 to vector<8x1xf32>
    %75 = arith.mulf %73, %74 : vector<8x1xf32>
    %cst_57 = arith.constant 9.99999974E-6 : f32
    %76 = vector.broadcast %cst_57 : f32 to vector<8x1xf32>
    %77 = arith.addf %75, %76 : vector<8x1xf32>
    %78 = math.rsqrt %77 : vector<8x1xf32>
    %79 = arith.mulf %12, %78 : vector<8x1xf32>
    %80 = vector.broadcast %79 : vector<8x1xf32> to vector<8x256xf32>
    %81 = arith.mulf %70, %80 : vector<8x256xf32>
    %82 = vector.broadcast %13 : vector<8x1xf32> to vector<8x256xf32>
    %83 = arith.addf %81, %82 : vector<8x256xf32>
    %cst_58 = arith.constant 0.000000e+00 : f32
    %84 = vector.broadcast %cst_58 : f32 to vector<8x256xf32>
    %85 = arith.maximumf %83, %84 : vector<8x256xf32>
    %c1_i32_59 = arith.constant 1 : i32
    %86 = tpu.dynamic_rotate %85 by %c1_i32_59 dim 1 : vector<8x256xf32>, i32 -> vector<8x256xf32>
    %87 = arith.mulf %86, %4 : vector<8x256xf32>
    %c255_i32_60 = arith.constant 255 : i32
    %88 = tpu.dynamic_rotate %85 by %c255_i32_60 dim 1 : vector<8x256xf32>, i32 -> vector<8x256xf32>
    %89 = arith.mulf %88, %6 : vector<8x256xf32>
    %c12 = arith.constant 12 : index
    %c0_61 = arith.constant 0 : index
    %c0_62 = arith.constant 0 : index
    %90 = vector.load %arg1[%c12, %c0_61, %c0_62] : memref<36x8x8xf32, #tpu.memory_space<vmem>>, vector<1x8x8xf32>
    %91 = vector.shape_cast %90 : vector<1x8x8xf32> to vector<8x8xf32>
    %cst_63 = arith.constant dense<0.000000e+00> : vector<8x256xf32>
    %92 = tpu.matmul %91, %87, %cst_63 {dimension_numbers = #tpu.dot_dimension_numbers<[1], [0], [0], [1], [0, 0, 1, 1], [], []>} : vector<8x8xf32>, vector<8x256xf32>, vector<8x256xf32> -> vector<8x256xf32>
    %c13 = arith.constant 13 : index
    %c0_64 = arith.constant 0 : index
    %c0_65 = arith.constant 0 : index
    %93 = vector.load %arg1[%c13, %c0_64, %c0_65] : memref<36x8x8xf32, #tpu.memory_space<vmem>>, vector<1x8x8xf32>
    %94 = vector.shape_cast %93 : vector<1x8x8xf32> to vector<8x8xf32>
    %cst_66 = arith.constant dense<0.000000e+00> : vector<8x256xf32>
    %95 = tpu.matmul %94, %85, %cst_66 {dimension_numbers = #tpu.dot_dimension_numbers<[1], [0], [0], [1], [0, 0, 1, 1], [], []>} : vector<8x8xf32>, vector<8x256xf32>, vector<8x256xf32> -> vector<8x256xf32>
    %96 = arith.addf %92, %95 : vector<8x256xf32>
    %c14 = arith.constant 14 : index
    %c0_67 = arith.constant 0 : index
    %c0_68 = arith.constant 0 : index
    %97 = vector.load %arg1[%c14, %c0_67, %c0_68] : memref<36x8x8xf32, #tpu.memory_space<vmem>>, vector<1x8x8xf32>
    %98 = vector.shape_cast %97 : vector<1x8x8xf32> to vector<8x8xf32>
    %cst_69 = arith.constant dense<0.000000e+00> : vector<8x256xf32>
    %99 = tpu.matmul %98, %89, %cst_69 {dimension_numbers = #tpu.dot_dimension_numbers<[1], [0], [0], [1], [0, 0, 1, 1], [], []>} : vector<8x8xf32>, vector<8x256xf32>, vector<8x256xf32> -> vector<8x256xf32>
    %100 = arith.addf %96, %99 : vector<8x256xf32>
    %c9 = arith.constant 9 : index
    %c0_70 = arith.constant 0 : index
    %c0_71 = arith.constant 0 : index
    %101 = vector.load %arg1[%c9, %c0_70, %c0_71] : memref<36x8x8xf32, #tpu.memory_space<vmem>>, vector<1x8x8xf32>
    %102 = vector.shape_cast %101 : vector<1x8x8xf32> to vector<8x8xf32>
    %c16_i32_72 = arith.constant 16 : i32
    %103 = tpu.dynamic_rotate %87 by %c16_i32_72 dim 1 : vector<8x256xf32>, i32 -> vector<8x256xf32>
    %cst_73 = arith.constant dense<0.000000e+00> : vector<8x256xf32>
    %104 = tpu.matmul %102, %103, %cst_73 {dimension_numbers = #tpu.dot_dimension_numbers<[1], [0], [0], [1], [0, 0, 1, 1], [], []>} : vector<8x8xf32>, vector<8x256xf32>, vector<8x256xf32> -> vector<8x256xf32>
    %c10 = arith.constant 10 : index
    %c0_74 = arith.constant 0 : index
    %c0_75 = arith.constant 0 : index
    %105 = vector.load %arg1[%c10, %c0_74, %c0_75] : memref<36x8x8xf32, #tpu.memory_space<vmem>>, vector<1x8x8xf32>
    %106 = vector.shape_cast %105 : vector<1x8x8xf32> to vector<8x8xf32>
    %c16_i32_76 = arith.constant 16 : i32
    %107 = tpu.dynamic_rotate %85 by %c16_i32_76 dim 1 : vector<8x256xf32>, i32 -> vector<8x256xf32>
    %cst_77 = arith.constant dense<0.000000e+00> : vector<8x256xf32>
    %108 = tpu.matmul %106, %107, %cst_77 {dimension_numbers = #tpu.dot_dimension_numbers<[1], [0], [0], [1], [0, 0, 1, 1], [], []>} : vector<8x8xf32>, vector<8x256xf32>, vector<8x256xf32> -> vector<8x256xf32>
    %109 = arith.addf %104, %108 : vector<8x256xf32>
    %c11 = arith.constant 11 : index
    %c0_78 = arith.constant 0 : index
    %c0_79 = arith.constant 0 : index
    %110 = vector.load %arg1[%c11, %c0_78, %c0_79] : memref<36x8x8xf32, #tpu.memory_space<vmem>>, vector<1x8x8xf32>
    %111 = vector.shape_cast %110 : vector<1x8x8xf32> to vector<8x8xf32>
    %c16_i32_80 = arith.constant 16 : i32
    %112 = tpu.dynamic_rotate %89 by %c16_i32_80 dim 1 : vector<8x256xf32>, i32 -> vector<8x256xf32>
    %cst_81 = arith.constant dense<0.000000e+00> : vector<8x256xf32>
    %113 = tpu.matmul %111, %112, %cst_81 {dimension_numbers = #tpu.dot_dimension_numbers<[1], [0], [0], [1], [0, 0, 1, 1], [], []>} : vector<8x8xf32>, vector<8x256xf32>, vector<8x256xf32> -> vector<8x256xf32>
    %114 = arith.addf %109, %113 : vector<8x256xf32>
    %115 = arith.mulf %114, %8 : vector<8x256xf32>
    %116 = arith.addf %100, %115 : vector<8x256xf32>
    %c15 = arith.constant 15 : index
    %c0_82 = arith.constant 0 : index
    %c0_83 = arith.constant 0 : index
    %117 = vector.load %arg1[%c15, %c0_82, %c0_83] : memref<36x8x8xf32, #tpu.memory_space<vmem>>, vector<1x8x8xf32>
    %118 = vector.shape_cast %117 : vector<1x8x8xf32> to vector<8x8xf32>
    %c240_i32_84 = arith.constant 240 : i32
    %119 = tpu.dynamic_rotate %87 by %c240_i32_84 dim 1 : vector<8x256xf32>, i32 -> vector<8x256xf32>
    %cst_85 = arith.constant dense<0.000000e+00> : vector<8x256xf32>
    %120 = tpu.matmul %118, %119, %cst_85 {dimension_numbers = #tpu.dot_dimension_numbers<[1], [0], [0], [1], [0, 0, 1, 1], [], []>} : vector<8x8xf32>, vector<8x256xf32>, vector<8x256xf32> -> vector<8x256xf32>
    %c16 = arith.constant 16 : index
    %c0_86 = arith.constant 0 : index
    %c0_87 = arith.constant 0 : index
    %121 = vector.load %arg1[%c16, %c0_86, %c0_87] : memref<36x8x8xf32, #tpu.memory_space<vmem>>, vector<1x8x8xf32>
    %122 = vector.shape_cast %121 : vector<1x8x8xf32> to vector<8x8xf32>
    %c240_i32_88 = arith.constant 240 : i32
    %123 = tpu.dynamic_rotate %85 by %c240_i32_88 dim 1 : vector<8x256xf32>, i32 -> vector<8x256xf32>
    %cst_89 = arith.constant dense<0.000000e+00> : vector<8x256xf32>
    %124 = tpu.matmul %122, %123, %cst_89 {dimension_numbers = #tpu.dot_dimension_numbers<[1], [0], [0], [1], [0, 0, 1, 1], [], []>} : vector<8x8xf32>, vector<8x256xf32>, vector<8x256xf32> -> vector<8x256xf32>
    %125 = arith.addf %120, %124 : vector<8x256xf32>
    %c17 = arith.constant 17 : index
    %c0_90 = arith.constant 0 : index
    %c0_91 = arith.constant 0 : index
    %126 = vector.load %arg1[%c17, %c0_90, %c0_91] : memref<36x8x8xf32, #tpu.memory_space<vmem>>, vector<1x8x8xf32>
    %127 = vector.shape_cast %126 : vector<1x8x8xf32> to vector<8x8xf32>
    %c240_i32_92 = arith.constant 240 : i32
    %128 = tpu.dynamic_rotate %89 by %c240_i32_92 dim 1 : vector<8x256xf32>, i32 -> vector<8x256xf32>
    %cst_93 = arith.constant dense<0.000000e+00> : vector<8x256xf32>
    %129 = tpu.matmul %127, %128, %cst_93 {dimension_numbers = #tpu.dot_dimension_numbers<[1], [0], [0], [1], [0, 0, 1, 1], [], []>} : vector<8x8xf32>, vector<8x256xf32>, vector<8x256xf32> -> vector<8x256xf32>
    %130 = arith.addf %125, %129 : vector<8x256xf32>
    %131 = arith.mulf %130, %10 : vector<8x256xf32>
    %132 = arith.addf %116, %131 : vector<8x256xf32>
    %cst_94 = arith.constant dense<0.000000e+00> : vector<8x1xf32>
    %133 = tpu.matmul %132, %11, %cst_94 {dimension_numbers = #tpu.dot_dimension_numbers<[1], [0], [0], [1], [0, 0, 1, 1], [], []>} : vector<8x256xf32>, vector<256x1xf32>, vector<8x1xf32> -> vector<8x1xf32>
    %cst_95 = arith.constant dense<0.000000e+00> : vector<8x1xf32>
    %134 = tpu.matmul %2, %133, %cst_95 {dimension_numbers = #tpu.dot_dimension_numbers<[1], [0], [0], [1], [0, 0, 1, 1], [], []>} : vector<8x8xf32>, vector<8x1xf32>, vector<8x1xf32> -> vector<8x1xf32>
    %cst_96 = arith.constant 0.001953125 : f32
    %135 = vector.broadcast %cst_96 : f32 to vector<8x1xf32>
    %136 = arith.mulf %134, %135 : vector<8x1xf32>
    %137 = vector.broadcast %136 : vector<8x1xf32> to vector<8x256xf32>
    %138 = arith.subf %132, %137 : vector<8x256xf32>
    %139 = arith.mulf %138, %138 : vector<8x256xf32>
    %cst_97 = arith.constant dense<0.000000e+00> : vector<8x1xf32>
    %140 = tpu.matmul %139, %11, %cst_97 {dimension_numbers = #tpu.dot_dimension_numbers<[1], [0], [0], [1], [0, 0, 1, 1], [], []>} : vector<8x256xf32>, vector<256x1xf32>, vector<8x1xf32> -> vector<8x1xf32>
    %cst_98 = arith.constant dense<0.000000e+00> : vector<8x1xf32>
    %141 = tpu.matmul %2, %140, %cst_98 {dimension_numbers = #tpu.dot_dimension_numbers<[1], [0], [0], [1], [0, 0, 1, 1], [], []>} : vector<8x8xf32>, vector<8x1xf32>, vector<8x1xf32> -> vector<8x1xf32>
    %cst_99 = arith.constant 0.001953125 : f32
    %142 = vector.broadcast %cst_99 : f32 to vector<8x1xf32>
    %143 = arith.mulf %141, %142 : vector<8x1xf32>
    %cst_100 = arith.constant 9.99999974E-6 : f32
    %144 = vector.broadcast %cst_100 : f32 to vector<8x1xf32>
    %145 = arith.addf %143, %144 : vector<8x1xf32>
    %146 = math.rsqrt %145 : vector<8x1xf32>
    %147 = arith.mulf %14, %146 : vector<8x1xf32>
    %148 = vector.broadcast %147 : vector<8x1xf32> to vector<8x256xf32>
    %149 = arith.mulf %138, %148 : vector<8x256xf32>
    %150 = vector.broadcast %15 : vector<8x1xf32> to vector<8x256xf32>
    %151 = arith.addf %149, %150 : vector<8x256xf32>
    %152 = vector.broadcast %17 : f32 to vector<8x256xf32>
    %153 = arith.mulf %151, %152 : vector<8x256xf32>
    %154 = vector.broadcast %16 : f32 to vector<8x256xf32>
    %155 = arith.mulf %0, %154 : vector<8x256xf32>
    %156 = arith.addf %153, %155 : vector<8x256xf32>
    %cst_101 = arith.constant 0.000000e+00 : f32
    %157 = vector.broadcast %cst_101 : f32 to vector<8x256xf32>
    %158 = arith.maximumf %156, %157 : vector<8x256xf32>
    %159 = vector.extract_strided_slice %1 {offsets = [0, 4], sizes = [8, 1], strides = [1, 1]} : vector<8x8xf32> to vector<8x1xf32>
    %160 = vector.extract_strided_slice %1 {offsets = [0, 5], sizes = [8, 1], strides = [1, 1]} : vector<8x8xf32> to vector<8x1xf32>
    %161 = vector.extract_strided_slice %1 {offsets = [0, 6], sizes = [8, 1], strides = [1, 1]} : vector<8x8xf32> to vector<8x1xf32>
    %162 = vector.extract_strided_slice %1 {offsets = [0, 7], sizes = [8, 1], strides = [1, 1]} : vector<8x8xf32> to vector<8x1xf32>
    %c2_102 = arith.constant 2 : index
    %163 = memref.load %arg5[%c2_102] : memref<4xf32, #tpu.memory_space<smem>>
    %c3_103 = arith.constant 3 : index
    %164 = memref.load %arg5[%c3_103] : memref<4xf32, #tpu.memory_space<smem>>
    %c1_i32_104 = arith.constant 1 : i32
    %165 = tpu.dynamic_rotate %158 by %c1_i32_104 dim 1 : vector<8x256xf32>, i32 -> vector<8x256xf32>
    %166 = arith.mulf %165, %4 : vector<8x256xf32>
    %c255_i32_105 = arith.constant 255 : i32
    %167 = tpu.dynamic_rotate %158 by %c255_i32_105 dim 1 : vector<8x256xf32>, i32 -> vector<8x256xf32>
    %168 = arith.mulf %167, %6 : vector<8x256xf32>
    %c21 = arith.constant 21 : index
    %c0_106 = arith.constant 0 : index
    %c0_107 = arith.constant 0 : index
    %169 = vector.load %arg1[%c21, %c0_106, %c0_107] : memref<36x8x8xf32, #tpu.memory_space<vmem>>, vector<1x8x8xf32>
    %170 = vector.shape_cast %169 : vector<1x8x8xf32> to vector<8x8xf32>
    %cst_108 = arith.constant dense<0.000000e+00> : vector<8x256xf32>
    %171 = tpu.matmul %170, %166, %cst_108 {dimension_numbers = #tpu.dot_dimension_numbers<[1], [0], [0], [1], [0, 0, 1, 1], [], []>} : vector<8x8xf32>, vector<8x256xf32>, vector<8x256xf32> -> vector<8x256xf32>
    %c22 = arith.constant 22 : index
    %c0_109 = arith.constant 0 : index
    %c0_110 = arith.constant 0 : index
    %172 = vector.load %arg1[%c22, %c0_109, %c0_110] : memref<36x8x8xf32, #tpu.memory_space<vmem>>, vector<1x8x8xf32>
    %173 = vector.shape_cast %172 : vector<1x8x8xf32> to vector<8x8xf32>
    %cst_111 = arith.constant dense<0.000000e+00> : vector<8x256xf32>
    %174 = tpu.matmul %173, %158, %cst_111 {dimension_numbers = #tpu.dot_dimension_numbers<[1], [0], [0], [1], [0, 0, 1, 1], [], []>} : vector<8x8xf32>, vector<8x256xf32>, vector<8x256xf32> -> vector<8x256xf32>
    %175 = arith.addf %171, %174 : vector<8x256xf32>
    %c23 = arith.constant 23 : index
    %c0_112 = arith.constant 0 : index
    %c0_113 = arith.constant 0 : index
    %176 = vector.load %arg1[%c23, %c0_112, %c0_113] : memref<36x8x8xf32, #tpu.memory_space<vmem>>, vector<1x8x8xf32>
    %177 = vector.shape_cast %176 : vector<1x8x8xf32> to vector<8x8xf32>
    %cst_114 = arith.constant dense<0.000000e+00> : vector<8x256xf32>
    %178 = tpu.matmul %177, %168, %cst_114 {dimension_numbers = #tpu.dot_dimension_numbers<[1], [0], [0], [1], [0, 0, 1, 1], [], []>} : vector<8x8xf32>, vector<8x256xf32>, vector<8x256xf32> -> vector<8x256xf32>
    %179 = arith.addf %175, %178 : vector<8x256xf32>
    %c18 = arith.constant 18 : index
    %c0_115 = arith.constant 0 : index
    %c0_116 = arith.constant 0 : index
    %180 = vector.load %arg1[%c18, %c0_115, %c0_116] : memref<36x8x8xf32, #tpu.memory_space<vmem>>, vector<1x8x8xf32>
    %181 = vector.shape_cast %180 : vector<1x8x8xf32> to vector<8x8xf32>
    %c16_i32_117 = arith.constant 16 : i32
    %182 = tpu.dynamic_rotate %166 by %c16_i32_117 dim 1 : vector<8x256xf32>, i32 -> vector<8x256xf32>
    %cst_118 = arith.constant dense<0.000000e+00> : vector<8x256xf32>
    %183 = tpu.matmul %181, %182, %cst_118 {dimension_numbers = #tpu.dot_dimension_numbers<[1], [0], [0], [1], [0, 0, 1, 1], [], []>} : vector<8x8xf32>, vector<8x256xf32>, vector<8x256xf32> -> vector<8x256xf32>
    %c19 = arith.constant 19 : index
    %c0_119 = arith.constant 0 : index
    %c0_120 = arith.constant 0 : index
    %184 = vector.load %arg1[%c19, %c0_119, %c0_120] : memref<36x8x8xf32, #tpu.memory_space<vmem>>, vector<1x8x8xf32>
    %185 = vector.shape_cast %184 : vector<1x8x8xf32> to vector<8x8xf32>
    %c16_i32_121 = arith.constant 16 : i32
    %186 = tpu.dynamic_rotate %158 by %c16_i32_121 dim 1 : vector<8x256xf32>, i32 -> vector<8x256xf32>
    %cst_122 = arith.constant dense<0.000000e+00> : vector<8x256xf32>
    %187 = tpu.matmul %185, %186, %cst_122 {dimension_numbers = #tpu.dot_dimension_numbers<[1], [0], [0], [1], [0, 0, 1, 1], [], []>} : vector<8x8xf32>, vector<8x256xf32>, vector<8x256xf32> -> vector<8x256xf32>
    %188 = arith.addf %183, %187 : vector<8x256xf32>
    %c20 = arith.constant 20 : index
    %c0_123 = arith.constant 0 : index
    %c0_124 = arith.constant 0 : index
    %189 = vector.load %arg1[%c20, %c0_123, %c0_124] : memref<36x8x8xf32, #tpu.memory_space<vmem>>, vector<1x8x8xf32>
    %190 = vector.shape_cast %189 : vector<1x8x8xf32> to vector<8x8xf32>
    %c16_i32_125 = arith.constant 16 : i32
    %191 = tpu.dynamic_rotate %168 by %c16_i32_125 dim 1 : vector<8x256xf32>, i32 -> vector<8x256xf32>
    %cst_126 = arith.constant dense<0.000000e+00> : vector<8x256xf32>
    %192 = tpu.matmul %190, %191, %cst_126 {dimension_numbers = #tpu.dot_dimension_numbers<[1], [0], [0], [1], [0, 0, 1, 1], [], []>} : vector<8x8xf32>, vector<8x256xf32>, vector<8x256xf32> -> vector<8x256xf32>
    %193 = arith.addf %188, %192 : vector<8x256xf32>
    %194 = arith.mulf %193, %8 : vector<8x256xf32>
    %195 = arith.addf %179, %194 : vector<8x256xf32>
    %c24 = arith.constant 24 : index
    %c0_127 = arith.constant 0 : index
    %c0_128 = arith.constant 0 : index
    %196 = vector.load %arg1[%c24, %c0_127, %c0_128] : memref<36x8x8xf32, #tpu.memory_space<vmem>>, vector<1x8x8xf32>
    %197 = vector.shape_cast %196 : vector<1x8x8xf32> to vector<8x8xf32>
    %c240_i32_129 = arith.constant 240 : i32
    %198 = tpu.dynamic_rotate %166 by %c240_i32_129 dim 1 : vector<8x256xf32>, i32 -> vector<8x256xf32>
    %cst_130 = arith.constant dense<0.000000e+00> : vector<8x256xf32>
    %199 = tpu.matmul %197, %198, %cst_130 {dimension_numbers = #tpu.dot_dimension_numbers<[1], [0], [0], [1], [0, 0, 1, 1], [], []>} : vector<8x8xf32>, vector<8x256xf32>, vector<8x256xf32> -> vector<8x256xf32>
    %c25 = arith.constant 25 : index
    %c0_131 = arith.constant 0 : index
    %c0_132 = arith.constant 0 : index
    %200 = vector.load %arg1[%c25, %c0_131, %c0_132] : memref<36x8x8xf32, #tpu.memory_space<vmem>>, vector<1x8x8xf32>
    %201 = vector.shape_cast %200 : vector<1x8x8xf32> to vector<8x8xf32>
    %c240_i32_133 = arith.constant 240 : i32
    %202 = tpu.dynamic_rotate %158 by %c240_i32_133 dim 1 : vector<8x256xf32>, i32 -> vector<8x256xf32>
    %cst_134 = arith.constant dense<0.000000e+00> : vector<8x256xf32>
    %203 = tpu.matmul %201, %202, %cst_134 {dimension_numbers = #tpu.dot_dimension_numbers<[1], [0], [0], [1], [0, 0, 1, 1], [], []>} : vector<8x8xf32>, vector<8x256xf32>, vector<8x256xf32> -> vector<8x256xf32>
    %204 = arith.addf %199, %203 : vector<8x256xf32>
    %c26 = arith.constant 26 : index
    %c0_135 = arith.constant 0 : index
    %c0_136 = arith.constant 0 : index
    %205 = vector.load %arg1[%c26, %c0_135, %c0_136] : memref<36x8x8xf32, #tpu.memory_space<vmem>>, vector<1x8x8xf32>
    %206 = vector.shape_cast %205 : vector<1x8x8xf32> to vector<8x8xf32>
    %c240_i32_137 = arith.constant 240 : i32
    %207 = tpu.dynamic_rotate %168 by %c240_i32_137 dim 1 : vector<8x256xf32>, i32 -> vector<8x256xf32>
    %cst_138 = arith.constant dense<0.000000e+00> : vector<8x256xf32>
    %208 = tpu.matmul %206, %207, %cst_138 {dimension_numbers = #tpu.dot_dimension_numbers<[1], [0], [0], [1], [0, 0, 1, 1], [], []>} : vector<8x8xf32>, vector<8x256xf32>, vector<8x256xf32> -> vector<8x256xf32>
    %209 = arith.addf %204, %208 : vector<8x256xf32>
    %210 = arith.mulf %209, %10 : vector<8x256xf32>
    %211 = arith.addf %195, %210 : vector<8x256xf32>
    %cst_139 = arith.constant dense<0.000000e+00> : vector<8x1xf32>
    %212 = tpu.matmul %211, %11, %cst_139 {dimension_numbers = #tpu.dot_dimension_numbers<[1], [0], [0], [1], [0, 0, 1, 1], [], []>} : vector<8x256xf32>, vector<256x1xf32>, vector<8x1xf32> -> vector<8x1xf32>
    %cst_140 = arith.constant dense<0.000000e+00> : vector<8x1xf32>
    %213 = tpu.matmul %2, %212, %cst_140 {dimension_numbers = #tpu.dot_dimension_numbers<[1], [0], [0], [1], [0, 0, 1, 1], [], []>} : vector<8x8xf32>, vector<8x1xf32>, vector<8x1xf32> -> vector<8x1xf32>
    %cst_141 = arith.constant 0.001953125 : f32
    %214 = vector.broadcast %cst_141 : f32 to vector<8x1xf32>
    %215 = arith.mulf %213, %214 : vector<8x1xf32>
    %216 = vector.broadcast %215 : vector<8x1xf32> to vector<8x256xf32>
    %217 = arith.subf %211, %216 : vector<8x256xf32>
    %218 = arith.mulf %217, %217 : vector<8x256xf32>
    %cst_142 = arith.constant dense<0.000000e+00> : vector<8x1xf32>
    %219 = tpu.matmul %218, %11, %cst_142 {dimension_numbers = #tpu.dot_dimension_numbers<[1], [0], [0], [1], [0, 0, 1, 1], [], []>} : vector<8x256xf32>, vector<256x1xf32>, vector<8x1xf32> -> vector<8x1xf32>
    %cst_143 = arith.constant dense<0.000000e+00> : vector<8x1xf32>
    %220 = tpu.matmul %2, %219, %cst_143 {dimension_numbers = #tpu.dot_dimension_numbers<[1], [0], [0], [1], [0, 0, 1, 1], [], []>} : vector<8x8xf32>, vector<8x1xf32>, vector<8x1xf32> -> vector<8x1xf32>
    %cst_144 = arith.constant 0.001953125 : f32
    %221 = vector.broadcast %cst_144 : f32 to vector<8x1xf32>
    %222 = arith.mulf %220, %221 : vector<8x1xf32>
    %cst_145 = arith.constant 9.99999974E-6 : f32
    %223 = vector.broadcast %cst_145 : f32 to vector<8x1xf32>
    %224 = arith.addf %222, %223 : vector<8x1xf32>
    %225 = math.rsqrt %224 : vector<8x1xf32>
    %226 = arith.mulf %159, %225 : vector<8x1xf32>
    %227 = vector.broadcast %226 : vector<8x1xf32> to vector<8x256xf32>
    %228 = arith.mulf %217, %227 : vector<8x256xf32>
    %229 = vector.broadcast %160 : vector<8x1xf32> to vector<8x256xf32>
    %230 = arith.addf %228, %229 : vector<8x256xf32>
    %cst_146 = arith.constant 0.000000e+00 : f32
    %231 = vector.broadcast %cst_146 : f32 to vector<8x256xf32>
    %232 = arith.maximumf %230, %231 : vector<8x256xf32>
    %c1_i32_147 = arith.constant 1 : i32
    %233 = tpu.dynamic_rotate %232 by %c1_i32_147 dim 1 : vector<8x256xf32>, i32 -> vector<8x256xf32>
    %234 = arith.mulf %233, %4 : vector<8x256xf32>
    %c255_i32_148 = arith.constant 255 : i32
    %235 = tpu.dynamic_rotate %232 by %c255_i32_148 dim 1 : vector<8x256xf32>, i32 -> vector<8x256xf32>
    %236 = arith.mulf %235, %6 : vector<8x256xf32>
    %c30 = arith.constant 30 : index
    %c0_149 = arith.constant 0 : index
    %c0_150 = arith.constant 0 : index
    %237 = vector.load %arg1[%c30, %c0_149, %c0_150] : memref<36x8x8xf32, #tpu.memory_space<vmem>>, vector<1x8x8xf32>
    %238 = vector.shape_cast %237 : vector<1x8x8xf32> to vector<8x8xf32>
    %cst_151 = arith.constant dense<0.000000e+00> : vector<8x256xf32>
    %239 = tpu.matmul %238, %234, %cst_151 {dimension_numbers = #tpu.dot_dimension_numbers<[1], [0], [0], [1], [0, 0, 1, 1], [], []>} : vector<8x8xf32>, vector<8x256xf32>, vector<8x256xf32> -> vector<8x256xf32>
    %c31 = arith.constant 31 : index
    %c0_152 = arith.constant 0 : index
    %c0_153 = arith.constant 0 : index
    %240 = vector.load %arg1[%c31, %c0_152, %c0_153] : memref<36x8x8xf32, #tpu.memory_space<vmem>>, vector<1x8x8xf32>
    %241 = vector.shape_cast %240 : vector<1x8x8xf32> to vector<8x8xf32>
    %cst_154 = arith.constant dense<0.000000e+00> : vector<8x256xf32>
    %242 = tpu.matmul %241, %232, %cst_154 {dimension_numbers = #tpu.dot_dimension_numbers<[1], [0], [0], [1], [0, 0, 1, 1], [], []>} : vector<8x8xf32>, vector<8x256xf32>, vector<8x256xf32> -> vector<8x256xf32>
    %243 = arith.addf %239, %242 : vector<8x256xf32>
    %c32 = arith.constant 32 : index
    %c0_155 = arith.constant 0 : index
    %c0_156 = arith.constant 0 : index
    %244 = vector.load %arg1[%c32, %c0_155, %c0_156] : memref<36x8x8xf32, #tpu.memory_space<vmem>>, vector<1x8x8xf32>
    %245 = vector.shape_cast %244 : vector<1x8x8xf32> to vector<8x8xf32>
    %cst_157 = arith.constant dense<0.000000e+00> : vector<8x256xf32>
    %246 = tpu.matmul %245, %236, %cst_157 {dimension_numbers = #tpu.dot_dimension_numbers<[1], [0], [0], [1], [0, 0, 1, 1], [], []>} : vector<8x8xf32>, vector<8x256xf32>, vector<8x256xf32> -> vector<8x256xf32>
    %247 = arith.addf %243, %246 : vector<8x256xf32>
    %c27 = arith.constant 27 : index
    %c0_158 = arith.constant 0 : index
    %c0_159 = arith.constant 0 : index
    %248 = vector.load %arg1[%c27, %c0_158, %c0_159] : memref<36x8x8xf32, #tpu.memory_space<vmem>>, vector<1x8x8xf32>
    %249 = vector.shape_cast %248 : vector<1x8x8xf32> to vector<8x8xf32>
    %c16_i32_160 = arith.constant 16 : i32
    %250 = tpu.dynamic_rotate %234 by %c16_i32_160 dim 1 : vector<8x256xf32>, i32 -> vector<8x256xf32>
    %cst_161 = arith.constant dense<0.000000e+00> : vector<8x256xf32>
    %251 = tpu.matmul %249, %250, %cst_161 {dimension_numbers = #tpu.dot_dimension_numbers<[1], [0], [0], [1], [0, 0, 1, 1], [], []>} : vector<8x8xf32>, vector<8x256xf32>, vector<8x256xf32> -> vector<8x256xf32>
    %c28 = arith.constant 28 : index
    %c0_162 = arith.constant 0 : index
    %c0_163 = arith.constant 0 : index
    %252 = vector.load %arg1[%c28, %c0_162, %c0_163] : memref<36x8x8xf32, #tpu.memory_space<vmem>>, vector<1x8x8xf32>
    %253 = vector.shape_cast %252 : vector<1x8x8xf32> to vector<8x8xf32>
    %c16_i32_164 = arith.constant 16 : i32
    %254 = tpu.dynamic_rotate %232 by %c16_i32_164 dim 1 : vector<8x256xf32>, i32 -> vector<8x256xf32>
    %cst_165 = arith.constant dense<0.000000e+00> : vector<8x256xf32>
    %255 = tpu.matmul %253, %254, %cst_165 {dimension_numbers = #tpu.dot_dimension_numbers<[1], [0], [0], [1], [0, 0, 1, 1], [], []>} : vector<8x8xf32>, vector<8x256xf32>, vector<8x256xf32> -> vector<8x256xf32>
    %256 = arith.addf %251, %255 : vector<8x256xf32>
    %c29 = arith.constant 29 : index
    %c0_166 = arith.constant 0 : index
    %c0_167 = arith.constant 0 : index
    %257 = vector.load %arg1[%c29, %c0_166, %c0_167] : memref<36x8x8xf32, #tpu.memory_space<vmem>>, vector<1x8x8xf32>
    %258 = vector.shape_cast %257 : vector<1x8x8xf32> to vector<8x8xf32>
    %c16_i32_168 = arith.constant 16 : i32
    %259 = tpu.dynamic_rotate %236 by %c16_i32_168 dim 1 : vector<8x256xf32>, i32 -> vector<8x256xf32>
    %cst_169 = arith.constant dense<0.000000e+00> : vector<8x256xf32>
    %260 = tpu.matmul %258, %259, %cst_169 {dimension_numbers = #tpu.dot_dimension_numbers<[1], [0], [0], [1], [0, 0, 1, 1], [], []>} : vector<8x8xf32>, vector<8x256xf32>, vector<8x256xf32> -> vector<8x256xf32>
    %261 = arith.addf %256, %260 : vector<8x256xf32>
    %262 = arith.mulf %261, %8 : vector<8x256xf32>
    %263 = arith.addf %247, %262 : vector<8x256xf32>
    %c33 = arith.constant 33 : index
    %c0_170 = arith.constant 0 : index
    %c0_171 = arith.constant 0 : index
    %264 = vector.load %arg1[%c33, %c0_170, %c0_171] : memref<36x8x8xf32, #tpu.memory_space<vmem>>, vector<1x8x8xf32>
    %265 = vector.shape_cast %264 : vector<1x8x8xf32> to vector<8x8xf32>
    %c240_i32_172 = arith.constant 240 : i32
    %266 = tpu.dynamic_rotate %234 by %c240_i32_172 dim 1 : vector<8x256xf32>, i32 -> vector<8x256xf32>
    %cst_173 = arith.constant dense<0.000000e+00> : vector<8x256xf32>
    %267 = tpu.matmul %265, %266, %cst_173 {dimension_numbers = #tpu.dot_dimension_numbers<[1], [0], [0], [1], [0, 0, 1, 1], [], []>} : vector<8x8xf32>, vector<8x256xf32>, vector<8x256xf32> -> vector<8x256xf32>
    %c34 = arith.constant 34 : index
    %c0_174 = arith.constant 0 : index
    %c0_175 = arith.constant 0 : index
    %268 = vector.load %arg1[%c34, %c0_174, %c0_175] : memref<36x8x8xf32, #tpu.memory_space<vmem>>, vector<1x8x8xf32>
    %269 = vector.shape_cast %268 : vector<1x8x8xf32> to vector<8x8xf32>
    %c240_i32_176 = arith.constant 240 : i32
    %270 = tpu.dynamic_rotate %232 by %c240_i32_176 dim 1 : vector<8x256xf32>, i32 -> vector<8x256xf32>
    %cst_177 = arith.constant dense<0.000000e+00> : vector<8x256xf32>
    %271 = tpu.matmul %269, %270, %cst_177 {dimension_numbers = #tpu.dot_dimension_numbers<[1], [0], [0], [1], [0, 0, 1, 1], [], []>} : vector<8x8xf32>, vector<8x256xf32>, vector<8x256xf32> -> vector<8x256xf32>
    %272 = arith.addf %267, %271 : vector<8x256xf32>
    %c35 = arith.constant 35 : index
    %c0_178 = arith.constant 0 : index
    %c0_179 = arith.constant 0 : index
    %273 = vector.load %arg1[%c35, %c0_178, %c0_179] : memref<36x8x8xf32, #tpu.memory_space<vmem>>, vector<1x8x8xf32>
    %274 = vector.shape_cast %273 : vector<1x8x8xf32> to vector<8x8xf32>
    %c240_i32_180 = arith.constant 240 : i32
    %275 = tpu.dynamic_rotate %236 by %c240_i32_180 dim 1 : vector<8x256xf32>, i32 -> vector<8x256xf32>
    %cst_181 = arith.constant dense<0.000000e+00> : vector<8x256xf32>
    %276 = tpu.matmul %274, %275, %cst_181 {dimension_numbers = #tpu.dot_dimension_numbers<[1], [0], [0], [1], [0, 0, 1, 1], [], []>} : vector<8x8xf32>, vector<8x256xf32>, vector<8x256xf32> -> vector<8x256xf32>
    %277 = arith.addf %272, %276 : vector<8x256xf32>
    %278 = arith.mulf %277, %10 : vector<8x256xf32>
    %279 = arith.addf %263, %278 : vector<8x256xf32>
    %cst_182 = arith.constant dense<0.000000e+00> : vector<8x1xf32>
    %280 = tpu.matmul %279, %11, %cst_182 {dimension_numbers = #tpu.dot_dimension_numbers<[1], [0], [0], [1], [0, 0, 1, 1], [], []>} : vector<8x256xf32>, vector<256x1xf32>, vector<8x1xf32> -> vector<8x1xf32>
    %cst_183 = arith.constant dense<0.000000e+00> : vector<8x1xf32>
    %281 = tpu.matmul %2, %280, %cst_183 {dimension_numbers = #tpu.dot_dimension_numbers<[1], [0], [0], [1], [0, 0, 1, 1], [], []>} : vector<8x8xf32>, vector<8x1xf32>, vector<8x1xf32> -> vector<8x1xf32>
    %cst_184 = arith.constant 0.001953125 : f32
    %282 = vector.broadcast %cst_184 : f32 to vector<8x1xf32>
    %283 = arith.mulf %281, %282 : vector<8x1xf32>
    %284 = vector.broadcast %283 : vector<8x1xf32> to vector<8x256xf32>
    %285 = arith.subf %279, %284 : vector<8x256xf32>
    %286 = arith.mulf %285, %285 : vector<8x256xf32>
    %cst_185 = arith.constant dense<0.000000e+00> : vector<8x1xf32>
    %287 = tpu.matmul %286, %11, %cst_185 {dimension_numbers = #tpu.dot_dimension_numbers<[1], [0], [0], [1], [0, 0, 1, 1], [], []>} : vector<8x256xf32>, vector<256x1xf32>, vector<8x1xf32> -> vector<8x1xf32>
    %cst_186 = arith.constant dense<0.000000e+00> : vector<8x1xf32>
    %288 = tpu.matmul %2, %287, %cst_186 {dimension_numbers = #tpu.dot_dimension_numbers<[1], [0], [0], [1], [0, 0, 1, 1], [], []>} : vector<8x8xf32>, vector<8x1xf32>, vector<8x1xf32> -> vector<8x1xf32>
    %cst_187 = arith.constant 0.001953125 : f32
    %289 = vector.broadcast %cst_187 : f32 to vector<8x1xf32>
    %290 = arith.mulf %288, %289 : vector<8x1xf32>
    %cst_188 = arith.constant 9.99999974E-6 : f32
    %291 = vector.broadcast %cst_188 : f32 to vector<8x1xf32>
    %292 = arith.addf %290, %291 : vector<8x1xf32>
    %293 = math.rsqrt %292 : vector<8x1xf32>
    %294 = arith.mulf %161, %293 : vector<8x1xf32>
    %295 = vector.broadcast %294 : vector<8x1xf32> to vector<8x256xf32>
    %296 = arith.mulf %285, %295 : vector<8x256xf32>
    %297 = vector.broadcast %162 : vector<8x1xf32> to vector<8x256xf32>
    %298 = arith.addf %296, %297 : vector<8x256xf32>
    %299 = vector.broadcast %164 : f32 to vector<8x256xf32>
    %300 = arith.mulf %298, %299 : vector<8x256xf32>
    %301 = vector.broadcast %163 : f32 to vector<8x256xf32>
    %302 = arith.mulf %158, %301 : vector<8x256xf32>
    %303 = arith.addf %300, %302 : vector<8x256xf32>
    %cst_189 = arith.constant 0.000000e+00 : f32
    %304 = vector.broadcast %cst_189 : f32 to vector<8x256xf32>
    %305 = arith.maximumf %303, %304 : vector<8x256xf32>
    %c0_190 = arith.constant 0 : index
    %c0_191 = arith.constant 0 : index
    %306 = vector.load %arg6[%c0_190, %c0_191] : memref<8x256xf32, #tpu.memory_space<vmem>>, vector<8x256xf32>
    tpu.vector_store %arg6[%c0_190, %c0_191], %305 {strides = array<i32>} : memref<8x256xf32, #tpu.memory_space<vmem>>, vector<8x256xf32>,
    return
  }
}

</mosaic_0001>

<llo_original>
// kernel: decode_block.1
$region0: #{decode_block.1}
  #allocation0 [shape = 'u32[]', space=smem, size = 0x4, offset = 0x4, fixed_abs, tag = 'smem constant byte address 0x4 - core index']
  #allocation1 [shape = 'u32[144,128]{1,0:T(1,128)}', space=vmem, size = 0x12000, scoped, tag = 'internal scratch']
  %s0 = inlined_call_operand.vmem [shape: f32[8,256], index: 0, kind: input, shape index: {}]
  %s1 = inlined_call_operand.vmem [shape: f32[36,8,8], index: 1, kind: input, shape index: {}]
  %s2 = inlined_call_operand.vmem [shape: f32[8,8], index: 2, kind: input, shape index: {}]
  %s3 = inlined_call_operand.vmem [shape: f32[4,8,256], index: 3, kind: input, shape index: {}]
  %s4 = inlined_call_operand.vmem [shape: f32[8,8], index: 4, kind: input, shape index: {}]
  %s5 = inlined_call_operand.vmem [shape: f32[4], index: 5, kind: input, shape index: {}]
  %s6 = inlined_call_operand.vmem [shape: f32[8,256], index: 6, kind: output, shape index: {}]
  %s7 = sld [smem:[#allocation0]]
  $region38: #{decode_block.1} parent=0
    _
  %s9 = ssub.s32 1, %s7
  %s10 = scalar_select 0, %s9, %s7
  $region1: #{decode_block.1} parent=0
    #allocation2 [shape = 'u8[512]{0}', space=smem, size = 0x200, scoped, tag = 'input window, operand 5, single buffered']
    #allocation3 [shape = 's32[1]{0}', space=sflag, size = 0x4, scoped, tag = 'scoped memory for decode_block.1']
    %11 = vsyncpa [#allocation3], 0
    // Predicated region
    $region2: #{decode_block.1} parent=1 // pred_check
      _
    $region3: #{decode_block.1} parent=1 // pred_check_branch
      %13 = sbr.rel (0) target = $region5
    $region4: #{decode_block.1} parent=1 // pred_region
      _
    $region5: #{decode_block.1} parent=1 // pred_fallthru
      _
    // Predicated region
    $region6: #{decode_block.1} parent=1 // pred_check
      _
    $region7: #{decode_block.1} parent=1 // pred_check_branch
      %15 = sbr.rel (0) target = $region9
    $region8: #{decode_block.1} parent=1 // pred_region
      _
    $region9: #{decode_block.1} parent=1 // pred_fallthru
      _
    // Predicated region
    $region10: #{decode_block.1} parent=1 // pred_check
      _
    $region11: #{decode_block.1} parent=1 // pred_check_branch
      %17 = sbr.rel (0) target = $region13
    $region12: #{decode_block.1} parent=1 // pred_region
      _
    $region13: #{decode_block.1} parent=1 // pred_fallthru
      _
    // Predicated region
    $region14: #{decode_block.1} parent=1 // pred_check
      _
    $region15: #{decode_block.1} parent=1 // pred_check_branch
      %19 = sbr.rel (0) target = $region17
    $region16: #{decode_block.1} parent=1 // pred_region
      _
    $region17: #{decode_block.1} parent=1 // pred_fallthru
      _
    // Predicated region
    $region18: #{decode_block.1} parent=1 // pred_check
      _
    $region19: #{decode_block.1} parent=1 // pred_check_branch
      %21 = sbr.rel (0) target = $region21
    $region20: #{decode_block.1} parent=1 // pred_region
      _
    $region21: #{decode_block.1} parent=1 // pred_fallthru
      _
    // Predicated region
    $region22: #{decode_block.1} parent=1 // pred_check
      _
    $region23: #{decode_block.1} parent=1 // pred_check_branch
      %23 = sbr.rel (0) target = $region25
    $region24: #{decode_block.1} parent=1 // pred_region
      %s25 = ssub.s32 16, 16
      %26 = vsyncadd [#allocation3], %s25
      %s28 = sshll.u32 %s5, 4
      %s29 = int_to_ptr.vmem [resolvable:$true] %s28
      %31 = dma.vmem_to_smem %s29, 16, [#allocation2], [#allocation3]
    $region25: #{decode_block.1} parent=1 // pred_fallthru
      _
    // Predicated region
    $region26: #{decode_block.1} parent=1 // pred_check
      _
    $region27: #{decode_block.1} parent=1 // pred_check_branch
      %33 = sbr.rel (0) target = $region29
    $region28: #{decode_block.1} parent=1 // pred_region
      %34 = dma.done [#allocation3], 16
    $region29: #{decode_block.1} parent=1 // pred_fallthru
      _
    %35 = sfence
    %v36 = vld [vmem:[%s0] sm:$0xff]
    %v37 = vld [vmem:[%s0 + $0x8] sm:$0xff]
    %v38 = vld [vmem:[%s2] sm:$0xff]
    %v39 = vld [vmem:[%s4] sm:$0xff]
    %v40 = vld [vmem:[%s3] sm:$0xff]
    %v41 = vld [vmem:[%s3 + $0x8] sm:$0xff]
    %s42 = scalar_lea.vmem %s3, 16
    %v43 = vld [vmem:[%s42] sm:$0xff]
    %v44 = vld [vmem:[%s42 + $0x8] sm:$0xff]
    %s45 = scalar_lea.vmem %s3, 32
    %v46 = vld [vmem:[%s45] sm:$0xff]
    %v47 = vld [vmem:[%s45 + $0x8] sm:$0xff]
    %s48 = scalar_lea.vmem %s3, 48
    %v49 = vld [vmem:[%s48] sm:$0xff]
    %v50 = vld [vmem:[%s48 + $0x8] sm:$0xff]
    %s51 = sld [smem:[#allocation2]]
    %s52 = sld [smem:[#allocation2 + $0x1]]
    %53 = vrot.lane.b32.xlu0 %v36, 1
    %v54 = vpop.permute.xlu0 %53
    %55 = vrot.lane.b32.xlu0 %v37, 1
    %v56 = vpop.permute.xlu0 %55
    %v57 = vlaneseq
    %v58 = vand.u32 %v57, 127
    %vm59 = vcmp.lt.s32.totalorder %v58, 1
    %v60 = vsel %vm59, %v54, %v56
    %v61 = vsel %vm59, %v56, %v54
    %v62 = vmul.f32 %v61, %v40
    %v63 = vmul.f32 %v60, %v41
    %64 = vrot.lane.b32.xlu0 %v36, 127
    %v65 = vpop.permute.xlu0 %64
    %66 = vrot.lane.b32.xlu0 %v37, 127
    %v67 = vpop.permute.xlu0 %66
    %vm68 = vcmp.lt.s32.totalorder %v58, 127
    %v69 = vsel %vm68, %v65, %v67
    %v70 = vsel %vm68, %v67, %v65
    %v71 = vmul.f32 %v69, %v43
    %v72 = vmul.f32 %v70, %v44
    %s73 = scalar_lea.vmem %s1, 24
    %v74 = vld [vmem:[%s73] sm:$0xff]
    %s75 = scalar_lea.vmem %s1, 32
    %v76 = vld [vmem:[%s75] sm:$0xff]
    %vm77 = vcmask 64512
    %v79 = vsel %vm77, %v76, 0
    %81 = vmatprep.subr.mxu0 %v37
    %82 = vmatpush1.msra.mxu0 %v36
    %83 = vmatprep.subr.mxu0 0.0
    %84 = vmatpush1.msra.mxu0 0.0
    %85 = vmatprep.subr.mxu0 0.0
    %86 = vmatpush1.msra.mxu0 0.0
    %87 = vmatprep.subr.mxu0 0.0
    %88 = vmatpush1.msra.mxu0 0.0
    %89 = vmatprep.subr.mxu0 0.0
    %90 = vmatpush1.msra.mxu0 0.0
    %91 = vmatprep.subr.mxu0 0.0
    %92 = vmatpush1.msra.mxu0 0.0
    %93 = vmatprep.subr.mxu0 0.0
    %94 = vmatpush1.msra.mxu0 0.0
    %95 = vmatprep.subr.mxu0 0.0
    %96 = vmatpush1.msra.mxu0 0.0
    %97 = vmatprep.subr.mxu0 0.0
    %98 = vmatpush1.msra.mxu0 0.0
    %99 = vmatprep.subr.mxu0 0.0
    %100 = vmatpush1.msra.mxu0 0.0
    %101 = vmatprep.subr.mxu0 0.0
    %102 = vmatpush1.msra.mxu0 0.0
    %103 = vmatprep.subr.mxu0 0.0
    %104 = vmatpush1.msra.mxu0 0.0
    %105 = vmatprep.subr.mxu0 0.0
    %106 = vmatpush1.msra.mxu0 0.0
    %107 = vmatprep.subr.mxu0 0.0
    %108 = vmatpush1.msra.mxu0 0.0
    %109 = vmatprep.subr.mxu0 0.0
    %110 = vmatpush1.msra.mxu0 0.0
    %111 = vmatprep.subr.mxu0 0.0
    %112 = vmatpush1.msra.mxu0 0.0
    %113 = vmatprep.subr.mxu0 0.0
    %114 = vmatpush1.msra.mxu0 0.0
    %115 = vmatprep.subr.mxu0 0.0
    %116 = vmatpush1.msra.mxu0 0.0
    %117 = vmatprep.subr.mxu0 0.0
    %118 = vmatpush1.msra.mxu0 0.0
    %119 = vmatprep.subr.mxu0 0.0
    %120 = vmatpush1.msra.mxu0 0.0
    %121 = vmatprep.subr.mxu0 0.0
    %122 = vmatpush1.msra.mxu0 0.0
    %123 = vmatprep.subr.mxu0 0.0
    %124 = vmatpush1.msra.mxu0 0.0
    %125 = vmatprep.subr.mxu0 0.0
    %126 = vmatpush1.msra.mxu0 0.0
    %127 = vmatprep.subr.mxu0 0.0
    %128 = vmatpush1.msra.mxu0 0.0
    %129 = vmatprep.subr.mxu0 0.0
    %130 = vmatpush1.msra.mxu0 0.0
    %131 = vmatprep.subr.mxu0 0.0
    %132 = vmatpush1.msra.mxu0 0.0
    %133 = vmatprep.subr.mxu0 0.0
    %134 = vmatpush1.msra.mxu0 0.0
    %135 = vmatprep.subr.mxu0 0.0
    %136 = vmatpush1.msra.mxu0 0.0
    %137 = vmatprep.subr.mxu0 0.0
    %138 = vmatpush1.msra.mxu0 0.0
    %139 = vmatprep.subr.mxu0 0.0
    %140 = vmatpush1.msra.mxu0 0.0
    %141 = vmatprep.subr.mxu0 0.0
    %142 = vmatpush1.msra.mxu0 0.0
    %143 = vmatprep.subr.mxu0 0.0
    %144 = vmatpush1.msra.mxu0 0.0
    %145 = vmatprep.mubr.f32.mxu0 0.0
    %146 = vmatmul.mubr.f32.gmra.mrb[0].mxu0 %v79
    %v147 = vpop.f32.mrb[0].mxu0
    %v148 = vadd.f32 0.0, %v147
    %v149 = vpop.f32.mrb[0].mxu0
    %v150 = vadd.f32 0.0, %v149
    %151 = vdwg.mxu0
    %v153 = vsel %vm77, %v74, 0
    %155 = vmatprep.subr.mxu0 %v63
    %156 = vmatpush1.msra.mxu0 %v62
    %157 = vmatprep.subr.mxu0 0.0
    %158 = vmatpush1.msra.mxu0 0.0
    %159 = vmatprep.subr.mxu0 0.0
    %160 = vmatpush1.msra.mxu0 0.0
    %161 = vmatprep.subr.mxu0 0.0
    %162 = vmatpush1.msra.mxu0 0.0
    %163 = vmatprep.subr.mxu0 0.0
    %164 = vmatpush1.msra.mxu0 0.0
    %165 = vmatprep.subr.mxu0 0.0
    %166 = vmatpush1.msra.mxu0 0.0
    %167 = vmatprep.subr.mxu0 0.0
    %168 = vmatpush1.msra.mxu0 0.0
    %169 = vmatprep.subr.mxu0 0.0
    %170 = vmatpush1.msra.mxu0 0.0
    %171 = vmatprep.subr.mxu0 0.0
    %172 = vmatpush1.msra.mxu0 0.0
    %173 = vmatprep.subr.mxu0 0.0
    %174 = vmatpush1.msra.mxu0 0.0
    %175 = vmatprep.subr.mxu0 0.0
    %176 = vmatpush1.msra.mxu0 0.0
    %177 = vmatprep.subr.mxu0 0.0
    %178 = vmatpush1.msra.mxu0 0.0
    %179 = vmatprep.subr.mxu0 0.0
    %180 = vmatpush1.msra.mxu0 0.0
    %181 = vmatprep.subr.mxu0 0.0
    %182 = vmatpush1.msra.mxu0 0.0
    %183 = vmatprep.subr.mxu0 0.0
    %184 = vmatpush1.msra.mxu0 0.0
    %185 = vmatprep.subr.mxu0 0.0
    %186 = vmatpush1.msra.mxu0 0.0
    %187 = vmatprep.subr.mxu0 0.0
    %188 = vmatpush1.msra.mxu0 0.0
    %189 = vmatprep.subr.mxu0 0.0
    %190 = vmatpush1.msra.mxu0 0.0
    %191 = vmatprep.subr.mxu0 0.0
    %192 = vmatpush1.msra.mxu0 0.0
    %193 = vmatprep.subr.mxu0 0.0
    %194 = vmatpush1.msra.mxu0 0.0
    %195 = vmatprep.subr.mxu0 0.0
    %196 = vmatpush1.msra.mxu0 0.0
    %197 = vmatprep.subr.mxu0 0.0
    %198 = vmatpush1.msra.mxu0 0.0
    %199 = vmatprep.subr.mxu0 0.0
    %200 = vmatpush1.msra.mxu0 0.0
    %201 = vmatprep.subr.mxu0 0.0
    %202 = vmatpush1.msra.mxu0 0.0
    %203 = vmatprep.subr.mxu0 0.0
    %204 = vmatpush1.msra.mxu0 0.0
    %205 = vmatprep.subr.mxu0 0.0
    %206 = vmatpush1.msra.mxu0 0.0
    %207 = vmatprep.subr.mxu0 0.0
    %208 = vmatpush1.msra.mxu0 0.0
    %209 = vmatprep.subr.mxu0 0.0
    %210 = vmatpush1.msra.mxu0 0.0
    %211 = vmatprep.subr.mxu0 0.0
    %212 = vmatpush1.msra.mxu0 0.0
    %213 = vmatprep.subr.mxu0 0.0
    %214 = vmatpush1.msra.mxu0 0.0
    %215 = vmatprep.subr.mxu0 0.0
    %216 = vmatpush1.msra.mxu0 0.0
    %217 = vmatprep.subr.mxu0 0.0
    %218 = vmatpush1.msra.mxu0 0.0
    %219 = vmatprep.mubr.f32.mxu0 0.0
    %220 = vmatmul.mubr.f32.gmra.mrb[0].mxu0 %v153
    %v221 = vpop.f32.mrb[0].mxu0
    %v222 = vadd.f32 %v148, %v221
    %v223 = vpop.f32.mrb[0].mxu0
    %v224 = vadd.f32 %v150, %v223
    %225 = vdwg.mxu0
    %s226 = scalar_lea.vmem %s1, 40
    %v227 = vld [vmem:[%s226] sm:$0xff]
    %v229 = vsel %vm77, %v227, 0
    %231 = vmatprep.subr.mxu0 %v72
    %232 = vmatpush1.msra.mxu0 %v71
    %233 = vmatprep.subr.mxu0 0.0
    %234 = vmatpush1.msra.mxu0 0.0
    %235 = vmatprep.subr.mxu0 0.0
    %236 = vmatpush1.msra.mxu0 0.0
    %237 = vmatprep.subr.mxu0 0.0
    %238 = vmatpush1.msra.mxu0 0.0
    %239 = vmatprep.subr.mxu0 0.0
    %240 = vmatpush1.msra.mxu0 0.0
    %241 = vmatprep.subr.mxu0 0.0
    %242 = vmatpush1.msra.mxu0 0.0
    %243 = vmatprep.subr.mxu0 0.0
    %244 = vmatpush1.msra.mxu0 0.0
    %245 = vmatprep.subr.mxu0 0.0
    %246 = vmatpush1.msra.mxu0 0.0
    %247 = vmatprep.subr.mxu0 0.0
    %248 = vmatpush1.msra.mxu0 0.0
    %249 = vmatprep.subr.mxu0 0.0
    %250 = vmatpush1.msra.mxu0 0.0
    %251 = vmatprep.subr.mxu0 0.0
    %252 = vmatpush1.msra.mxu0 0.0
    %253 = vmatprep.subr.mxu0 0.0
    %254 = vmatpush1.msra.mxu0 0.0
    %255 = vmatprep.subr.mxu0 0.0
    %256 = vmatpush1.msra.mxu0 0.0
    %257 = vmatprep.subr.mxu0 0.0
    %258 = vmatpush1.msra.mxu0 0.0
    %259 = vmatprep.subr.mxu0 0.0
    %260 = vmatpush1.msra.mxu0 0.0
    %261 = vmatprep.subr.mxu0 0.0
    %262 = vmatpush1.msra.mxu0 0.0
    %263 = vmatprep.subr.mxu0 0.0
    %264 = vmatpush1.msra.mxu0 0.0
    %265 = vmatprep.subr.mxu0 0.0
    %266 = vmatpush1.msra.mxu0 0.0
    %267 = vmatprep.subr.mxu0 0.0
    %268 = vmatpush1.msra.mxu0 0.0
    %269 = vmatprep.subr.mxu0 0.0
    %270 = vmatpush1.msra.mxu0 0.0
    %271 = vmatprep.subr.mxu0 0.0
    %272 = vmatpush1.msra.mxu0 0.0
    %273 = vmatprep.subr.mxu0 0.0
    %274 = vmatpush1.msra.mxu0 0.0
    %275 = vmatprep.subr.mxu0 0.0
    %276 = vmatpush1.msra.mxu0 0.0
    %277 = vmatprep.subr.mxu0 0.0
    %278 = vmatpush1.msra.mxu0 0.0
    %279 = vmatprep.subr.mxu0 0.0
    %280 = vmatpush1.msra.mxu0 0.0
    %281 = vmatprep.subr.mxu0 0.0
    %282 = vmatpush1.msra.mxu0 0.0
    %283 = vmatprep.subr.mxu0 0.0
    %284 = vmatpush1.msra.mxu0 0.0
    %285 = vmatprep.subr.mxu0 0.0
    %286 = vmatpush1.msra.mxu0 0.0
    %287 = vmatprep.subr.mxu0 0.0
    %288 = vmatpush1.msra.mxu0 0.0
    %289 = vmatprep.subr.mxu0 0.0
    %290 = vmatpush1.msra.mxu0 0.0
    %291 = vmatprep.subr.mxu0 0.0
    %292 = vmatpush1.msra.mxu0 0.0
    %293 = vmatprep.subr.mxu0 0.0
    %294 = vmatpush1.msra.mxu0 0.0
    %295 = vmatprep.mubr.f32.mxu0 0.0
    %296 = vmatmul.mubr.f32.gmra.mrb[0].mxu0 %v229
    %v297 = vpop.f32.mrb[0].mxu0
    %v298 = vadd.f32 0.0, %v297
    %v299 = vpop.f32.mrb[0].mxu0
    %v300 = vadd.f32 0.0, %v299
    %301 = vdwg.mxu0
    %v302 = vadd.f32 %v222, %v298
    %v303 = vadd.f32 %v224, %v300
    %v304 = vld [vmem:[%s1] sm:$0xff]
    %305 = vrot.lane.b32.xlu0 %v62, 16
    %v306 = vpop.permute.xlu0 %305
    %307 = vrot.lane.b32.xlu0 %v63, 16
    %v308 = vpop.permute.xlu0 %307
    %vm309 = vcmp.lt.s32.totalorder %v58, 16
    %v310 = vsel %vm309, %v306, %v308
    %v311 = vsel %vm309, %v308, %v306
    %s312 = scalar_lea.vmem %s1, 8
    %v313 = vld [vmem:[%s312] sm:$0xff]
    %314 = vrot.lane.b32.xlu0 %v36, 16
    %v315 = vpop.permute.xlu0 %314
    %316 = vrot.lane.b32.xlu0 %v37, 16
    %v317 = vpop.permute.xlu0 %316
    %v318 = vsel %vm309, %v315, %v317
    %v319 = vsel %vm309, %v317, %v315
    %v321 = vsel %vm77, %v313, 0
    %323 = vmatprep.subr.mxu0 %v318
    %324 = vmatpush1.msra.mxu0 %v319
    %325 = vmatprep.subr.mxu0 0.0
    %326 = vmatpush1.msra.mxu0 0.0
    %327 = vmatprep.subr.mxu0 0.0
    %328 = vmatpush1.msra.mxu0 0.0
    %329 = vmatprep.subr.mxu0 0.0
    %330 = vmatpush1.msra.mxu0 0.0
    %331 = vmatprep.subr.mxu0 0.0
    %332 = vmatpush1.msra.mxu0 0.0
    %333 = vmatprep.subr.mxu0 0.0
    %334 = vmatpush1.msra.mxu0 0.0
    %335 = vmatprep.subr.mxu0 0.0
    %336 = vmatpush1.msra.mxu0 0.0
    %337 = vmatprep.subr.mxu0 0.0
    %338 = vmatpush1.msra.mxu0 0.0
    %339 = vmatprep.subr.mxu0 0.0
    %340 = vmatpush1.msra.mxu0 0.0
    %341 = vmatprep.subr.mxu0 0.0
    %342 = vmatpush1.msra.mxu0 0.0
    %343 = vmatprep.subr.mxu0 0.0
    %344 = vmatpush1.msra.mxu0 0.0
    %345 = vmatprep.subr.mxu0 0.0
    %346 = vmatpush1.msra.mxu0 0.0
    %347 = vmatprep.subr.mxu0 0.0
    %348 = vmatpush1.msra.mxu0 0.0
    %349 = vmatprep.subr.mxu0 0.0
    %350 = vmatpush1.msra.mxu0 0.0
    %351 = vmatprep.subr.mxu0 0.0
    %352 = vmatpush1.msra.mxu0 0.0
    %353 = vmatprep.subr.mxu0 0.0
    %354 = vmatpush1.msra.mxu0 0.0
    %355 = vmatprep.subr.mxu0 0.0
    %356 = vmatpush1.msra.mxu0 0.0
    %357 = vmatprep.subr.mxu0 0.0
    %358 = vmatpush1.msra.mxu0 0.0
    %359 = vmatprep.subr.mxu0 0.0
    %360 = vmatpush1.msra.mxu0 0.0
    %361 = vmatprep.subr.mxu0 0.0
    %362 = vmatpush1.msra.mxu0 0.0
    %363 = vmatprep.subr.mxu0 0.0
    %364 = vmatpush1.msra.mxu0 0.0
    %365 = vmatprep.subr.mxu0 0.0
    %366 = vmatpush1.msra.mxu0 0.0
    %367 = vmatprep.subr.mxu0 0.0
    %368 = vmatpush1.msra.mxu0 0.0
    %369 = vmatprep.subr.mxu0 0.0
    %370 = vmatpush1.msra.mxu0 0.0
    %371 = vmatprep.subr.mxu0 0.0
    %372 = vmatpush1.msra.mxu0 0.0
    %373 = vmatprep.subr.mxu0 0.0
    %374 = vmatpush1.msra.mxu0 0.0
    %375 = vmatprep.subr.mxu0 0.0
    %376 = vmatpush1.msra.mxu0 0.0
    %377 = vmatprep.subr.mxu0 0.0
    %378 = vmatpush1.msra.mxu0 0.0
    %379 = vmatprep.subr.mxu0 0.0
    %380 = vmatpush1.msra.mxu0 0.0
    %381 = vmatprep.subr.mxu0 0.0
    %382 = vmatpush1.msra.mxu0 0.0
    %383 = vmatprep.subr.mxu0 0.0
    %384 = vmatpush1.msra.mxu0 0.0
    %385 = vmatprep.subr.mxu0 0.0
    %386 = vmatpush1.msra.mxu0 0.0
    %387 = vmatprep.mubr.f32.mxu0 0.0
    %388 = vmatmul.mubr.f32.gmra.mrb[0].mxu0 %v321
    %v389 = vpop.f32.mrb[0].mxu0
    %v390 = vadd.f32 0.0, %v389
    %v391 = vpop.f32.mrb[0].mxu0
    %v392 = vadd.f32 0.0, %v391
    %393 = vdwg.mxu0
    %v395 = vsel %vm77, %v304, 0
    %397 = vmatprep.subr.mxu0 %v310
    %398 = vmatpush1.msra.mxu0 %v311
    %399 = vmatprep.subr.mxu0 0.0
    %400 = vmatpush1.msra.mxu0 0.0
    %401 = vmatprep.subr.mxu0 0.0
    %402 = vmatpush1.msra.mxu0 0.0
    %403 = vmatprep.subr.mxu0 0.0
    %404 = vmatpush1.msra.mxu0 0.0
    %405 = vmatprep.subr.mxu0 0.0
    %406 = vmatpush1.msra.mxu0 0.0
    %407 = vmatprep.subr.mxu0 0.0
    %408 = vmatpush1.msra.mxu0 0.0
    %409 = vmatprep.subr.mxu0 0.0
    %410 = vmatpush1.msra.mxu0 0.0
    %411 = vmatprep.subr.mxu0 0.0
    %412 = vmatpush1.msra.mxu0 0.0
    %413 = vmatprep.subr.mxu0 0.0
    %414 = vmatpush1.msra.mxu0 0.0
    %415 = vmatprep.subr.mxu0 0.0
    %416 = vmatpush1.msra.mxu0 0.0
    %417 = vmatprep.subr.mxu0 0.0
    %418 = vmatpush1.msra.mxu0 0.0
    %419 = vmatprep.subr.mxu0 0.0
    %420 = vmatpush1.msra.mxu0 0.0
    %421 = vmatprep.subr.mxu0 0.0
    %422 = vmatpush1.msra.mxu0 0.0
    %423 = vmatprep.subr.mxu0 0.0
    %424 = vmatpush1.msra.mxu0 0.0
    %425 = vmatprep.subr.mxu0 0.0
    %426 = vmatpush1.msra.mxu0 0.0
    %427 = vmatprep.subr.mxu0 0.0
    %428 = vmatpush1.msra.mxu0 0.0
    %429 = vmatprep.subr.mxu0 0.0
    %430 = vmatpush1.msra.mxu0 0.0
    %431 = vmatprep.subr.mxu0 0.0
    %432 = vmatpush1.msra.mxu0 0.0
    %433 = vmatprep.subr.mxu0 0.0
    %434 = vmatpush1.msra.mxu0 0.0
    %435 = vmatprep.subr.mxu0 0.0
    %436 = vmatpush1.msra.mxu0 0.0
    %437 = vmatprep.subr.mxu0 0.0
    %438 = vmatpush1.msra.mxu0 0.0
    %439 = vmatprep.subr.mxu0 0.0
    %440 = vmatpush1.msra.mxu0 0.0
    %441 = vmatprep.subr.mxu0 0.0
    %442 = vmatpush1.msra.mxu0 0.0
    %443 = vmatprep.subr.mxu0 0.0
    %444 = vmatpush1.msra.mxu0 0.0
    %445 = vmatprep.subr.mxu0 0.0
    %446 = vmatpush1.msra.mxu0 0.0
    %447 = vmatprep.subr.mxu0 0.0
    %448 = vmatpush1.msra.mxu0 0.0
    %449 = vmatprep.subr.mxu0 0.0
    %450 = vmatpush1.msra.mxu0 0.0
    %451 = vmatprep.subr.mxu0 0.0
    %452 = vmatpush1.msra.mxu0 0.0
    %453 = vmatprep.subr.mxu0 0.0
    %454 = vmatpush1.msra.mxu0 0.0
    %455 = vmatprep.subr.mxu0 0.0
    %456 = vmatpush1.msra.mxu0 0.0
    %457 = vmatprep.subr.mxu0 0.0
    %458 = vmatpush1.msra.mxu0 0.0
    %459 = vmatprep.subr.mxu0 0.0
    %460 = vmatpush1.msra.mxu0 0.0
    %461 = vmatprep.mubr.f32.mxu0 0.0
    %462 = vmatmul.mubr.f32.gmra.mrb[0].mxu0 %v395
    %v463 = vpop.f32.mrb[0].mxu0
    %v464 = vadd.f32 %v390, %v463
    %v465 = vpop.f32.mrb[0].mxu0
    %v466 = vadd.f32 %v392, %v465
    %467 = vdwg.mxu0
    %s468 = scalar_lea.vmem %s1, 16
    %v469 = vld [vmem:[%s468] sm:$0xff]
    %470 = vrot.lane.b32.xlu0 %v71, 16
    %v471 = vpop.permute.xlu0 %470
    %472 = vrot.lane.b32.xlu0 %v72, 16
    %v473 = vpop.permute.xlu0 %472
    %v474 = vsel %vm309, %v471, %v473
    %v475 = vsel %vm309, %v473, %v471
    %v477 = vsel %vm77, %v469, 0
    %479 = vmatprep.subr.mxu0 %v474
    %480 = vmatpush1.msra.mxu0 %v475
    %481 = vmatprep.subr.mxu0 0.0
    %482 = vmatpush1.msra.mxu0 0.0
    %483 = vmatprep.subr.mxu0 0.0
    %484 = vmatpush1.msra.mxu0 0.0
    %485 = vmatprep.subr.mxu0 0.0
    %486 = vmatpush1.msra.mxu0 0.0
    %487 = vmatprep.subr.mxu0 0.0
    %488 = vmatpush1.msra.mxu0 0.0
    %489 = vmatprep.subr.mxu0 0.0
    %490 = vmatpush1.msra.mxu0 0.0
    %491 = vmatprep.subr.mxu0 0.0
    %492 = vmatpush1.msra.mxu0 0.0
    %493 = vmatprep.subr.mxu0 0.0
    %494 = vmatpush1.msra.mxu0 0.0
    %495 = vmatprep.subr.mxu0 0.0
    %496 = vmatpush1.msra.mxu0 0.0
    %497 = vmatprep.subr.mxu0 0.0
    %498 = vmatpush1.msra.mxu0 0.0
    %499 = vmatprep.subr.mxu0 0.0
    %500 = vmatpush1.msra.mxu0 0.0
    %501 = vmatprep.subr.mxu0 0.0
    %502 = vmatpush1.msra.mxu0 0.0
    %503 = vmatprep.subr.mxu0 0.0
    %504 = vmatpush1.msra.mxu0 0.0
    %505 = vmatprep.subr.mxu0 0.0
    %506 = vmatpush1.msra.mxu0 0.0
    %507 = vmatprep.subr.mxu0 0.0
    %508 = vmatpush1.msra.mxu0 0.0
    %509 = vmatprep.subr.mxu0 0.0
    %510 = vmatpush1.msra.mxu0 0.0
    %511 = vmatprep.subr.mxu0 0.0
    %512 = vmatpush1.msra.mxu0 0.0
    %513 = vmatprep.subr.mxu0 0.0
    %514 = vmatpush1.msra.mxu0 0.0
    %515 = vmatprep.subr.mxu0 0.0
    %516 = vmatpush1.msra.mxu0 0.0
    %517 = vmatprep.subr.mxu0 0.0
    %518 = vmatpush1.msra.mxu0 0.0
    %519 = vmatprep.subr.mxu0 0.0
    %520 = vmatpush1.msra.mxu0 0.0
    %521 = vmatprep.subr.mxu0 0.0
    %522 = vmatpush1.msra.mxu0 0.0
    %523 = vmatprep.subr.mxu0 0.0
    %524 = vmatpush1.msra.mxu0 0.0
    %525 = vmatprep.subr.mxu0 0.0
    %526 = vmatpush1.msra.mxu0 0.0
    %527 = vmatprep.subr.mxu0 0.0
    %528 = vmatpush1.msra.mxu0 0.0
    %529 = vmatprep.subr.mxu0 0.0
    %530 = vmatpush1.msra.mxu0 0.0
    %531 = vmatprep.subr.mxu0 0.0
    %532 = vmatpush1.msra.mxu0 0.0
    %533 = vmatprep.subr.mxu0 0.0
    %534 = vmatpush1.msra.mxu0 0.0
    %535 = vmatprep.subr.mxu0 0.0
    %536 = vmatpush1.msra.mxu0 0.0
    %537 = vmatprep.subr.mxu0 0.0
    %538 = vmatpush1.msra.mxu0 0.0
    %539 = vmatprep.subr.mxu0 0.0
    %540 = vmatpush1.msra.mxu0 0.0
    %541 = vmatprep.subr.mxu0 0.0
    %542 = vmatpush1.msra.mxu0 0.0
    %543 = vmatprep.mubr.f32.mxu0 0.0
    %544 = vmatmul.mubr.f32.gmra.mrb[0].mxu0 %v477
    %v545 = vpop.f32.mrb[0].mxu0
    %v546 = vadd.f32 0.0, %v545
    %v547 = vpop.f32.mrb[0].mxu0
    %v548 = vadd.f32 0.0, %v547
    %549 = vdwg.mxu0
    %v550 = vadd.f32 %v464, %v546
    %v551 = vadd.f32 %v466, %v548
    %v552 = vmul.f32 %v550, %v46
    %v553 = vmul.f32 %v551, %v47
    %v554 = vadd.f32 %v302, %v552
    %v555 = vadd.f32 %v303, %v553
    %s556 = scalar_lea.vmem %s1, 48
    %v557 = vld [vmem:[%s556] sm:$0xff]
    %558 = vrot.lane.b32.xlu0 %v62, 112
    %v559 = vpop.permute.xlu0 %558
    %560 = vrot.lane.b32.xlu0 %v63, 112
    %v561 = vpop.permute.xlu0 %560
    %vm562 = vcmp.lt.s32.totalorder %v58, 112
    %v563 = vsel %vm562, %v559, %v561
    %v564 = vsel %vm562, %v561, %v559
    %s565 = scalar_lea.vmem %s1, 56
    %v566 = vld [vmem:[%s565] sm:$0xff]
    %567 = vrot.lane.b32.xlu0 %v36, 112
    %v568 = vpop.permute.xlu0 %567
    %569 = vrot.lane.b32.xlu0 %v37, 112
    %v570 = vpop.permute.xlu0 %569
    %v571 = vsel %vm562, %v568, %v570
    %v572 = vsel %vm562, %v570, %v568
    %v574 = vsel %vm77, %v566, 0
    %576 = vmatprep.subr.mxu0 %v572
    %577 = vmatpush1.msra.mxu0 %v571
    %578 = vmatprep.subr.mxu0 0.0
    %579 = vmatpush1.msra.mxu0 0.0
    %580 = vmatprep.subr.mxu0 0.0
    %581 = vmatpush1.msra.mxu0 0.0
    %582 = vmatprep.subr.mxu0 0.0
    %583 = vmatpush1.msra.mxu0 0.0
    %584 = vmatprep.subr.mxu0 0.0
    %585 = vmatpush1.msra.mxu0 0.0
    %586 = vmatprep.subr.mxu0 0.0
    %587 = vmatpush1.msra.mxu0 0.0
    %588 = vmatprep.subr.mxu0 0.0
    %589 = vmatpush1.msra.mxu0 0.0
    %590 = vmatprep.subr.mxu0 0.0
    %591 = vmatpush1.msra.mxu0 0.0
    %592 = vmatprep.subr.mxu0 0.0
    %593 = vmatpush1.msra.mxu0 0.0
    %594 = vmatprep.subr.mxu0 0.0
    %595 = vmatpush1.msra.mxu0 0.0
    %596 = vmatprep.subr.mxu0 0.0
    %597 = vmatpush1.msra.mxu0 0.0
    %598 = vmatprep.subr.mxu0 0.0
    %599 = vmatpush1.msra.mxu0 0.0
    %600 = vmatprep.subr.mxu0 0.0
    %601 = vmatpush1.msra.mxu0 0.0
    %602 = vmatprep.subr.mxu0 0.0
    %603 = vmatpush1.msra.mxu0 0.0
    %604 = vmatprep.subr.mxu0 0.0
    %605 = vmatpush1.msra.mxu0 0.0
    %606 = vmatprep.subr.mxu0 0.0
    %607 = vmatpush1.msra.mxu0 0.0
    %608 = vmatprep.subr.mxu0 0.0
    %609 = vmatpush1.msra.mxu0 0.0
    %610 = vmatprep.subr.mxu0 0.0
    %611 = vmatpush1.msra.mxu0 0.0
    %612 = vmatprep.subr.mxu0 0.0
    %613 = vmatpush1.msra.mxu0 0.0
    %614 = vmatprep.subr.mxu0 0.0
    %615 = vmatpush1.msra.mxu0 0.0
    %616 = vmatprep.subr.mxu0 0.0
    %617 = vmatpush1.msra.mxu0 0.0
    %618 = vmatprep.subr.mxu0 0.0
    %619 = vmatpush1.msra.mxu0 0.0
    %620 = vmatprep.subr.mxu0 0.0
    %621 = vmatpush1.msra.mxu0 0.0
    %622 = vmatprep.subr.mxu0 0.0
    %623 = vmatpush1.msra.mxu0 0.0
    %624 = vmatprep.subr.mxu0 0.0
    %625 = vmatpush1.msra.mxu0 0.0
    %626 = vmatprep.subr.mxu0 0.0
    %627 = vmatpush1.msra.mxu0 0.0
    %628 = vmatprep.subr.mxu0 0.0
    %629 = vmatpush1.msra.mxu0 0.0
    %630 = vmatprep.subr.mxu0 0.0
    %631 = vmatpush1.msra.mxu0 0.0
    %632 = vmatprep.subr.mxu0 0.0
    %633 = vmatpush1.msra.mxu0 0.0
    %634 = vmatprep.subr.mxu0 0.0
    %635 = vmatpush1.msra.mxu0 0.0
    %636 = vmatprep.subr.mxu0 0.0
    %637 = vmatpush1.msra.mxu0 0.0
    %638 = vmatprep.subr.mxu0 0.0
    %639 = vmatpush1.msra.mxu0 0.0
    %640 = vmatprep.mubr.f32.mxu0 0.0
    %641 = vmatmul.mubr.f32.gmra.mrb[0].mxu0 %v574
    %v642 = vpop.f32.mrb[0].mxu0
    %v643 = vadd.f32 0.0, %v642
    %v644 = vpop.f32.mrb[0].mxu0
    %v645 = vadd.f32 0.0, %v644
    %646 = vdwg.mxu0
    %v648 = vsel %vm77, %v557, 0
    %650 = vmatprep.subr.mxu0 %v564
    %651 = vmatpush1.msra.mxu0 %v563
    %652 = vmatprep.subr.mxu0 0.0
    %653 = vmatpush1.msra.mxu0 0.0
    %654 = vmatprep.subr.mxu0 0.0
    %655 = vmatpush1.msra.mxu0 0.0
    %656 = vmatprep.subr.mxu0 0.0
    %657 = vmatpush1.msra.mxu0 0.0
    %658 = vmatprep.subr.mxu0 0.0
    %659 = vmatpush1.msra.mxu0 0.0
    %660 = vmatprep.subr.mxu0 0.0
    %661 = vmatpush1.msra.mxu0 0.0
    %662 = vmatprep.subr.mxu0 0.0
    %663 = vmatpush1.msra.mxu0 0.0
    %664 = vmatprep.subr.mxu0 0.0
    %665 = vmatpush1.msra.mxu0 0.0
    %666 = vmatprep.subr.mxu0 0.0
    %667 = vmatpush1.msra.mxu0 0.0
    %668 = vmatprep.subr.mxu0 0.0
    %669 = vmatpush1.msra.mxu0 0.0
    %670 = vmatprep.subr.mxu0 0.0
    %671 = vmatpush1.msra.mxu0 0.0
    %672 = vmatprep.subr.mxu0 0.0
    %673 = vmatpush1.msra.mxu0 0.0
    %674 = vmatprep.subr.mxu0 0.0
    %675 = vmatpush1.msra.mxu0 0.0
    %676 = vmatprep.subr.mxu0 0.0
    %677 = vmatpush1.msra.mxu0 0.0
    %678 = vmatprep.subr.mxu0 0.0
    %679 = vmatpush1.msra.mxu0 0.0
    %680 = vmatprep.subr.mxu0 0.0
    %681 = vmatpush1.msra.mxu0 0.0
    %682 = vmatprep.subr.mxu0 0.0
    %683 = vmatpush1.msra.mxu0 0.0
    %684 = vmatprep.subr.mxu0 0.0
    %685 = vmatpush1.msra.mxu0 0.0
    %686 = vmatprep.subr.mxu0 0.0
    %687 = vmatpush1.msra.mxu0 0.0
    %688 = vmatprep.subr.mxu0 0.0
    %689 = vmatpush1.msra.mxu0 0.0
    %690 = vmatprep.subr.mxu0 0.0
    %691 = vmatpush1.msra.mxu0 0.0
    %692 = vmatprep.subr.mxu0 0.0
    %693 = vmatpush1.msra.mxu0 0.0
    %694 = vmatprep.subr.mxu0 0.0
    %695 = vmatpush1.msra.mxu0 0.0
    %696 = vmatprep.subr.mxu0 0.0
    %697 = vmatpush1.msra.mxu0 0.0
    %698 = vmatprep.subr.mxu0 0.0
    %699 = vmatpush1.msra.mxu0 0.0
    %700 = vmatprep.subr.mxu0 0.0
    %701 = vmatpush1.msra.mxu0 0.0
    %702 = vmatprep.subr.mxu0 0.0
    %703 = vmatpush1.msra.mxu0 0.0
    %704 = vmatprep.subr.mxu0 0.0
    %705 = vmatpush1.msra.mxu0 0.0
    %706 = vmatprep.subr.mxu0 0.0
    %707 = vmatpush1.msra.mxu0 0.0
    %708 = vmatprep.subr.mxu0 0.0
    %709 = vmatpush1.msra.mxu0 0.0
    %710 = vmatprep.subr.mxu0 0.0
    %711 = vmatpush1.msra.mxu0 0.0
    %712 = vmatprep.subr.mxu0 0.0
    %713 = vmatpush1.msra.mxu0 0.0
    %714 = vmatprep.mubr.f32.mxu0 0.0
    %715 = vmatmul.mubr.f32.gmra.mrb[0].mxu0 %v648
    %v716 = vpop.f32.mrb[0].mxu0
    %v717 = vadd.f32 %v643, %v716
    %v718 = vpop.f32.mrb[0].mxu0
    %v719 = vadd.f32 %v645, %v718
    %720 = vdwg.mxu0
    %s721 = scalar_lea.vmem %s1, 64
    %v722 = vld [vmem:[%s721] sm:$0xff]
    %723 = vrot.lane.b32.xlu0 %v71, 112
    %v724 = vpop.permute.xlu0 %723
    %725 = vrot.lane.b32.xlu0 %v72, 112
    %v726 = vpop.permute.xlu0 %725
    %v727 = vsel %vm562, %v724, %v726
    %v728 = vsel %vm562, %v726, %v724
    %v730 = vsel %vm77, %v722, 0
    %732 = vmatprep.subr.mxu0 %v728
    %733 = vmatpush1.msra.mxu0 %v727
    %734 = vmatprep.subr.mxu0 0.0
    %735 = vmatpush1.msra.mxu0 0.0
    %736 = vmatprep.subr.mxu0 0.0
    %737 = vmatpush1.msra.mxu0 0.0
    %738 = vmatprep.subr.mxu0 0.0
    %739 = vmatpush1.msra.mxu0 0.0
    %740 = vmatprep.subr.mxu0 0.0
    %741 = vmatpush1.msra.mxu0 0.0
    %742 = vmatprep.subr.mxu0 0.0
    %743 = vmatpush1.msra.mxu0 0.0
    %744 = vmatprep.subr.mxu0 0.0
    %745 = vmatpush1.msra.mxu0 0.0
    %746 = vmatprep.subr.mxu0 0.0
    %747 = vmatpush1.msra.mxu0 0.0
    %748 = vmatprep.subr.mxu0 0.0
    %749 = vmatpush1.msra.mxu0 0.0
    %750 = vmatprep.subr.mxu0 0.0
    %751 = vmatpush1.msra.mxu0 0.0
    %752 = vmatprep.subr.mxu0 0.0
    %753 = vmatpush1.msra.mxu0 0.0
    %754 = vmatprep.subr.mxu0 0.0
    %755 = vmatpush1.msra.mxu0 0.0
    %756 = vmatprep.subr.mxu0 0.0
    %757 = vmatpush1.msra.mxu0 0.0
    %758 = vmatprep.subr.mxu0 0.0
    %759 = vmatpush1.msra.mxu0 0.0
    %760 = vmatprep.subr.mxu0 0.0
    %761 = vmatpush1.msra.mxu0 0.0
    %762 = vmatprep.subr.mxu0 0.0
    %763 = vmatpush1.msra.mxu0 0.0
    %764 = vmatprep.subr.mxu0 0.0
    %765 = vmatpush1.msra.mxu0 0.0
    %766 = vmatprep.subr.mxu0 0.0
    %767 = vmatpush1.msra.mxu0 0.0
    %768 = vmatprep.subr.mxu0 0.0
    %769 = vmatpush1.msra.mxu0 0.0
    %770 = vmatprep.subr.mxu0 0.0
    %771 = vmatpush1.msra.mxu0 0.0
    %772 = vmatprep.subr.mxu0 0.0
    %773 = vmatpush1.msra.mxu0 0.0
    %774 = vmatprep.subr.mxu0 0.0
    %775 = vmatpush1.msra.mxu0 0.0
    %776 = vmatprep.subr.mxu0 0.0
    %777 = vmatpush1.msra.mxu0 0.0
    %778 = vmatprep.subr.mxu0 0.0
    %779 = vmatpush1.msra.mxu0 0.0
    %780 = vmatprep.subr.mxu0 0.0
    %781 = vmatpush1.msra.mxu0 0.0
    %782 = vmatprep.subr.mxu0 0.0
    %783 = vmatpush1.msra.mxu0 0.0
    %784 = vmatprep.subr.mxu0 0.0
    %785 = vmatpush1.msra.mxu0 0.0
    %786 = vmatprep.subr.mxu0 0.0
    %787 = vmatpush1.msra.mxu0 0.0
    %788 = vmatprep.subr.mxu0 0.0
    %789 = vmatpush1.msra.mxu0 0.0
    %790 = vmatprep.subr.mxu0 0.0
    %791 = vmatpush1.msra.mxu0 0.0
    %792 = vmatprep.subr.mxu0 0.0
    %793 = vmatpush1.msra.mxu0 0.0
    %794 = vmatprep.subr.mxu0 0.0
    %795 = vmatpush1.msra.mxu0 0.0
    %796 = vmatprep.mubr.f32.mxu0 0.0
    %797 = vmatmul.mubr.f32.gmra.mrb[0].mxu0 %v730
    %v798 = vpop.f32.mrb[0].mxu0
    %v799 = vadd.f32 0.0, %v798
    %v800 = vpop.f32.mrb[0].mxu0
    %v801 = vadd.f32 0.0, %v800
    %802 = vdwg.mxu0
    %v803 = vadd.f32 %v717, %v799
    %v804 = vadd.f32 %v719, %v801
    %v805 = vmul.f32 %v803, %v49
    %v806 = vmul.f32 %v804, %v50
    %v807 = vadd.f32 %v554, %v805
    %v808 = vadd.f32 %v555, %v806
    %809 = vmatprep.subr.mxu0 0.0
    %810 = vmatpush1.msra.mxu0 1.0
    %811 = vmatprep.subr.mxu0 0.0
    %812 = vmatpush1.msra.mxu0 1.0
    %813 = vmatprep.subr.mxu0 0.0
    %814 = vmatpush1.msra.mxu0 1.0
    %815 = vmatprep.subr.mxu0 0.0
    %816 = vmatpush1.msra.mxu0 1.0
    %817 = vmatprep.subr.mxu0 0.0
    %818 = vmatpush1.msra.mxu0 1.0
    %819 = vmatprep.subr.mxu0 0.0
    %820 = vmatpush1.msra.mxu0 1.0
    %821 = vmatprep.subr.mxu0 0.0
    %822 = vmatpush1.msra.mxu0 1.0
    %823 = vmatprep.subr.mxu0 0.0
    %824 = vmatpush1.msra.mxu0 1.0
    %825 = vmatprep.subr.mxu0 0.0
    %826 = vmatpush1.msra.mxu0 1.0
    %827 = vmatprep.subr.mxu0 0.0
    %828 = vmatpush1.msra.mxu0 1.0
    %829 = vmatprep.subr.mxu0 0.0
    %830 = vmatpush1.msra.mxu0 1.0
    %831 = vmatprep.subr.mxu0 0.0
    %832 = vmatpush1.msra.mxu0 1.0
    %833 = vmatprep.subr.mxu0 0.0
    %834 = vmatpush1.msra.mxu0 1.0
    %835 = vmatprep.subr.mxu0 0.0
    %836 = vmatpush1.msra.mxu0 1.0
    %837 = vmatprep.subr.mxu0 0.0
    %838 = vmatpush1.msra.mxu0 1.0
    %839 = vmatprep.subr.mxu0 0.0
    %840 = vmatpush1.msra.mxu0 1.0
    %841 = vmatprep.subr.mxu0 0.0
    %842 = vmatpush1.msra.mxu0 1.0
    %843 = vmatprep.subr.mxu0 0.0
    %844 = vmatpush1.msra.mxu0 1.0
    %845 = vmatprep.subr.mxu0 0.0
    %846 = vmatpush1.msra.mxu0 1.0
    %847 = vmatprep.subr.mxu0 0.0
    %848 = vmatpush1.msra.mxu0 1.0
    %849 = vmatprep.subr.mxu0 0.0
    %850 = vmatpush1.msra.mxu0 1.0
    %851 = vmatprep.subr.mxu0 0.0
    %852 = vmatpush1.msra.mxu0 1.0
    %853 = vmatprep.subr.mxu0 0.0
    %854 = vmatpush1.msra.mxu0 1.0
    %855 = vmatprep.subr.mxu0 0.0
    %856 = vmatpush1.msra.mxu0 1.0
    %857 = vmatprep.subr.mxu0 0.0
    %858 = vmatpush1.msra.mxu0 1.0
    %859 = vmatprep.subr.mxu0 0.0
    %860 = vmatpush1.msra.mxu0 1.0
    %861 = vmatprep.subr.mxu0 0.0
    %862 = vmatpush1.msra.mxu0 1.0
    %863 = vmatprep.subr.mxu0 0.0
    %864 = vmatpush1.msra.mxu0 1.0
    %865 = vmatprep.subr.mxu0 0.0
    %866 = vmatpush1.msra.mxu0 1.0
    %867 = vmatprep.subr.mxu0 0.0
    %868 = vmatpush1.msra.mxu0 1.0
    %869 = vmatprep.subr.mxu0 0.0
    %870 = vmatpush1.msra.mxu0 1.0
    %871 = vmatprep.subr.mxu0 0.0
    %872 = vmatpush1.msra.mxu0 1.0
    %873 = vmatprep.mubr.f32.mxu0 %v808
    %874 = vmatmul.mubr.f32.gmra.mrb[0].mxu0 %v807
    %v875 = vpop.f32.mrb[0].mxu0
    %v876 = vadd.f32 0.0, %v875
    %v877 = vpop.f32.mrb[0].mxu0
    %878 = vdwg.mxu0
    %v880 = vsel %vm77, %v39, 0
    %882 = vmatprep.subr.mxu0 0.0
    %883 = vmatpush1.msra.mxu0 %v876
    %884 = vmatprep.subr.mxu0 0.0
    %885 = vmatpush1.msra.mxu0 0.0
    %886 = vmatprep.subr.mxu0 0.0
    %887 = vmatpush1.msra.mxu0 0.0
    %888 = vmatprep.subr.mxu0 0.0
    %889 = vmatpush1.msra.mxu0 0.0
    %890 = vmatprep.subr.mxu0 0.0
    %891 = vmatpush1.msra.mxu0 0.0
    %892 = vmatprep.subr.mxu0 0.0
    %893 = vmatpush1.msra.mxu0 0.0
    %894 = vmatprep.subr.mxu0 0.0
    %895 = vmatpush1.msra.mxu0 0.0
    %896 = vmatprep.subr.mxu0 0.0
    %897 = vmatpush1.msra.mxu0 0.0
    %898 = vmatprep.subr.mxu0 0.0
    %899 = vmatpush1.msra.mxu0 0.0
    %900 = vmatprep.subr.mxu0 0.0
    %901 = vmatpush1.msra.mxu0 0.0
    %902 = vmatprep.subr.mxu0 0.0
    %903 = vmatpush1.msra.mxu0 0.0
    %904 = vmatprep.subr.mxu0 0.0
    %905 = vmatpush1.msra.mxu0 0.0
    %906 = vmatprep.subr.mxu0 0.0
    %907 = vmatpush1.msra.mxu0 0.0
    %908 = vmatprep.subr.mxu0 0.0
    %909 = vmatpush1.msra.mxu0 0.0
    %910 = vmatprep.subr.mxu0 0.0
    %911 = vmatpush1.msra.mxu0 0.0
    %912 = vmatprep.subr.mxu0 0.0
    %913 = vmatpush1.msra.mxu0 0.0
    %914 = vmatprep.subr.mxu0 0.0
    %915 = vmatpush1.msra.mxu0 0.0
    %916 = vmatprep.subr.mxu0 0.0
    %917 = vmatpush1.msra.mxu0 0.0
    %918 = vmatprep.subr.mxu0 0.0
    %919 = vmatpush1.msra.mxu0 0.0
    %920 = vmatprep.subr.mxu0 0.0
    %921 = vmatpush1.msra.mxu0 0.0
    %922 = vmatprep.subr.mxu0 0.0
    %923 = vmatpush1.msra.mxu0 0.0
    %924 = vmatprep.subr.mxu0 0.0
    %925 = vmatpush1.msra.mxu0 0.0
    %926 = vmatprep.subr.mxu0 0.0
    %927 = vmatpush1.msra.mxu0 0.0
    %928 = vmatprep.subr.mxu0 0.0
    %929 = vmatpush1.msra.mxu0 0.0
    %930 = vmatprep.subr.mxu0 0.0
    %931 = vmatpush1.msra.mxu0 0.0
    %932 = vmatprep.subr.mxu0 0.0
    %933 = vmatpush1.msra.mxu0 0.0
    %934 = vmatprep.subr.mxu0 0.0
    %935 = vmatpush1.msra.mxu0 0.0
    %936 = vmatprep.subr.mxu0 0.0
    %937 = vmatpush1.msra.mxu0 0.0
    %938 = vmatprep.subr.mxu0 0.0
    %939 = vmatpush1.msra.mxu0 0.0
    %940 = vmatprep.subr.mxu0 0.0
    %941 = vmatpush1.msra.mxu0 0.0
    %942 = vmatprep.subr.mxu0 0.0
    %943 = vmatpush1.msra.mxu0 0.0
    %944 = vmatprep.subr.mxu0 0.0
    %945 = vmatpush1.msra.mxu0 0.0
    %946 = vmatprep.mubr.f32.mxu0 0.0
    %947 = vmatmul.mubr.f32.gmra.mrb[0].mxu0 %v880
    %v948 = vpop.f32.mrb[0].mxu0
    %v949 = vadd.f32 0.0, %v948
    %v950 = vpop.f32.mrb[0].mxu0
    %951 = vdwg.mxu0
    %v952 = vmul.f32 %v949, 0.001953125
    %954 = vset.pattern.permute.xlu0 0
    %955 = vperm.xlu0 %954, %v952
    %v956 = vpop.permute.xlu0 %955
    %v958 = vsub.f32 %v807, %v956
    %v959 = vsub.f32 %v808, %v956
    %v960 = vmul.f32 %v958, %v958
    %v961 = vmul.f32 %v959, %v959
    %962 = vmatprep.subr.mxu0 0.0
    %963 = vmatpush1.msra.mxu0 1.0
    %964 = vmatprep.subr.mxu0 0.0
    %965 = vmatpush1.msra.mxu0 1.0
    %966 = vmatprep.subr.mxu0 0.0
    %967 = vmatpush1.msra.mxu0 1.0
    %968 = vmatprep.subr.mxu0 0.0
    %969 = vmatpush1.msra.mxu0 1.0
    %970 = vmatprep.subr.mxu0 0.0
    %971 = vmatpush1.msra.mxu0 1.0
    %972 = vmatprep.subr.mxu0 0.0
    %973 = vmatpush1.msra.mxu0 1.0
    %974 = vmatprep.subr.mxu0 0.0
    %975 = vmatpush1.msra.mxu0 1.0
    %976 = vmatprep.subr.mxu0 0.0
    %977 = vmatpush1.msra.mxu0 1.0
    %978 = vmatprep.subr.mxu0 0.0
    %979 = vmatpush1.msra.mxu0 1.0
    %980 = vmatprep.subr.mxu0 0.0
    %981 = vmatpush1.msra.mxu0 1.0
    %982 = vmatprep.subr.mxu0 0.0
    %983 = vmatpush1.msra.mxu0 1.0
    %984 = vmatprep.subr.mxu0 0.0
    %985 = vmatpush1.msra.mxu0 1.0
    %986 = vmatprep.subr.mxu0 0.0
    %987 = vmatpush1.msra.mxu0 1.0
    %988 = vmatprep.subr.mxu0 0.0
    %989 = vmatpush1.msra.mxu0 1.0
    %990 = vmatprep.subr.mxu0 0.0
    %991 = vmatpush1.msra.mxu0 1.0
    %992 = vmatprep.subr.mxu0 0.0
    %993 = vmatpush1.msra.mxu0 1.0
    %994 = vmatprep.subr.mxu0 0.0
    %995 = vmatpush1.msra.mxu0 1.0
    %996 = vmatprep.subr.mxu0 0.0
    %997 = vmatpush1.msra.mxu0 1.0
    %998 = vmatprep.subr.mxu0 0.0
    %999 = vmatpush1.msra.mxu0 1.0
    %1000 = vmatprep.subr.mxu0 0.0
    %1001 = vmatpush1.msra.mxu0 1.0
    %1002 = vmatprep.subr.mxu0 0.0
    %1003 = vmatpush1.msra.mxu0 1.0
    %1004 = vmatprep.subr.mxu0 0.0
    %1005 = vmatpush1.msra.mxu0 1.0
    %1006 = vmatprep.subr.mxu0 0.0
    %1007 = vmatpush1.msra.mxu0 1.0
    %1008 = vmatprep.subr.mxu0 0.0
    %1009 = vmatpush1.msra.mxu0 1.0
    %1010 = vmatprep.subr.mxu0 0.0
    %1011 = vmatpush1.msra.mxu0 1.0
    %1012 = vmatprep.subr.mxu0 0.0
    %1013 = vmatpush1.msra.mxu0 1.0
    %1014 = vmatprep.subr.mxu0 0.0
    %1015 = vmatpush1.msra.mxu0 1.0
    %1016 = vmatprep.subr.mxu0 0.0
    %1017 = vmatpush1.msra.mxu0 1.0
    %1018 = vmatprep.subr.mxu0 0.0
    %1019 = vmatpush1.msra.mxu0 1.0
    %1020 = vmatprep.subr.mxu0 0.0
    %1021 = vmatpush1.msra.mxu0 1.0
    %1022 = vmatprep.subr.mxu0 0.0
    %1023 = vmatpush1.msra.mxu0 1.0
    %1024 = vmatprep.subr.mxu0 0.0
    %1025 = vmatpush1.msra.mxu0 1.0
    %1026 = vmatprep.mubr.f32.mxu0 %v961
    %1027 = vmatmul.mubr.f32.gmra.mrb[0].mxu0 %v960
    %v1028 = vpop.f32.mrb[0].mxu0
    %v1029 = vadd.f32 0.0, %v1028
    %v1030 = vpop.f32.mrb[0].mxu0
    %1031 = vdwg.mxu0
    %1032 = vmatprep.subr.mxu0 0.0
    %1033 = vmatpush1.msra.mxu0 %v1029
    %1034 = vmatprep.subr.mxu0 0.0
    %1035 = vmatpush1.msra.mxu0 0.0
    %1036 = vmatprep.subr.mxu0 0.0
    %1037 = vmatpush1.msra.mxu0 0.0
    %1038 = vmatprep.subr.mxu0 0.0
    %1039 = vmatpush1.msra.mxu0 0.0
    %1040 = vmatprep.subr.mxu0 0.0
    %1041 = vmatpush1.msra.mxu0 0.0
    %1042 = vmatprep.subr.mxu0 0.0
    %1043 = vmatpush1.msra.mxu0 0.0
    %1044 = vmatprep.subr.mxu0 0.0
    %1045 = vmatpush1.msra.mxu0 0.0
    %1046 = vmatprep.subr.mxu0 0.0
    %1047 = vmatpush1.msra.mxu0 0.0
    %1048 = vmatprep.subr.mxu0 0.0
    %1049 = vmatpush1.msra.mxu0 0.0
    %1050 = vmatprep.subr.mxu0 0.0
    %1051 = vmatpush1.msra.mxu0 0.0
    %1052 = vmatprep.subr.mxu0 0.0
    %1053 = vmatpush1.msra.mxu0 0.0
    %1054 = vmatprep.subr.mxu0 0.0
    %1055 = vmatpush1.msra.mxu0 0.0
    %1056 = vmatprep.subr.mxu0 0.0
    %1057 = vmatpush1.msra.mxu0 0.0
    %1058 = vmatprep.subr.mxu0 0.0
    %1059 = vmatpush1.msra.mxu0 0.0
    %1060 = vmatprep.subr.mxu0 0.0
    %1061 = vmatpush1.msra.mxu0 0.0
    %1062 = vmatprep.subr.mxu0 0.0
    %1063 = vmatpush1.msra.mxu0 0.0
    %1064 = vmatprep.subr.mxu0 0.0
    %1065 = vmatpush1.msra.mxu0 0.0
    %1066 = vmatprep.subr.mxu0 0.0
    %1067 = vmatpush1.msra.mxu0 0.0
    %1068 = vmatprep.subr.mxu0 0.0
    %1069 = vmatpush1.msra.mxu0 0.0
    %1070 = vmatprep.subr.mxu0 0.0
    %1071 = vmatpush1.msra.mxu0 0.0
    %1072 = vmatprep.subr.mxu0 0.0
    %1073 = vmatpush1.msra.mxu0 0.0
    %1074 = vmatprep.subr.mxu0 0.0
    %1075 = vmatpush1.msra.mxu0 0.0
    %1076 = vmatprep.subr.mxu0 0.0
    %1077 = vmatpush1.msra.mxu0 0.0
    %1078 = vmatprep.subr.mxu0 0.0
    %1079 = vmatpush1.msra.mxu0 0.0
    %1080 = vmatprep.subr.mxu0 0.0
    %1081 = vmatpush1.msra.mxu0 0.0
    %1082 = vmatprep.subr.mxu0 0.0
    %1083 = vmatpush1.msra.mxu0 0.0
    %1084 = vmatprep.subr.mxu0 0.0
    %1085 = vmatpush1.msra.mxu0 0.0
    %1086 = vmatprep.subr.mxu0 0.0
    %1087 = vmatpush1.msra.mxu0 0.0
    %1088 = vmatprep.subr.mxu0 0.0
    %1089 = vmatpush1.msra.mxu0 0.0
    %1090 = vmatprep.subr.mxu0 0.0
    %1091 = vmatpush1.msra.mxu0 0.0
    %1092 = vmatprep.subr.mxu0 0.0
    %1093 = vmatpush1.msra.mxu0 0.0
    %1094 = vmatprep.subr.mxu0 0.0
    %1095 = vmatpush1.msra.mxu0 0.0
    %1096 = vmatprep.mubr.f32.mxu0 0.0
    %1097 = vmatmul.mubr.f32.gmra.mrb[0].mxu0 %v880
    %v1098 = vpop.f32.mrb[0].mxu0
    %v1099 = vadd.f32 0.0, %v1098
    %v1100 = vpop.f32.mrb[0].mxu0
    %1101 = vdwg.mxu0
    %v1102 = vmul.f32 %v1099, 0.001953125
    %v1103 = vadd.f32 %v1102, 1e-05
    %v1104 = vrsqrt.pop %v1103
    %v1105 = vmul.f32 %v38, %v1104
    %1107 = vset.pattern.permute.xlu0 0
    %1108 = vperm.xlu0 %1107, %v1105
    %v1109 = vpop.permute.xlu0 %1108
    %v1111 = vmul.f32 %v958, %v1109
    %v1112 = vmul.f32 %v959, %v1109
    %1114 = vset.pattern.permute.xlu0 1
    %1115 = vperm.xlu0 %1114, %v38
    %v1116 = vpop.permute.xlu0 %1115
    %v1118 = vadd.f32 %v1111, %v1116
    %v1119 = vadd.f32 %v1112, %v1116
    %v1120 = vmax.f32 %v1118, 0.0
    %v1121 = vmax.f32 %v1119, 0.0
    %1122 = vrot.lane.b32.xlu0 %v1120, 1
    %v1123 = vpop.permute.xlu0 %1122
    %1124 = vrot.lane.b32.xlu0 %v1121, 1
    %v1125 = vpop.permute.xlu0 %1124
    %v1126 = vsel %vm59, %v1123, %v1125
    %v1127 = vsel %vm59, %v1125, %v1123
    %v1128 = vmul.f32 %v1127, %v40
    %v1129 = vmul.f32 %v1126, %v41
    %1130 = vrot.lane.b32.xlu0 %v1120, 127
    %v1131 = vpop.permute.xlu0 %1130
    %1132 = vrot.lane.b32.xlu0 %v1121, 127
    %v1133 = vpop.permute.xlu0 %1132
    %v1134 = vsel %vm68, %v1131, %v1133
    %v1135 = vsel %vm68, %v1133, %v1131
    %v1136 = vmul.f32 %v1134, %v43
    %v1137 = vmul.f32 %v1135, %v44
    %s1138 = scalar_lea.vmem %s1, 96
    %v1139 = vld [vmem:[%s1138] sm:$0xff]
    %s1140 = scalar_lea.vmem %s1, 104
    %v1141 = vld [vmem:[%s1140] sm:$0xff]
    %v1143 = vsel %vm77, %v1141, 0
    %1145 = vmatprep.subr.mxu0 %v1121
    %1146 = vmatpush1.msra.mxu0 %v1120
    %1147 = vmatprep.subr.mxu0 0.0
    %1148 = vmatpush1.msra.mxu0 0.0
    %1149 = vmatprep.subr.mxu0 0.0
    %1150 = vmatpush1.msra.mxu0 0.0
    %1151 = vmatprep.subr.mxu0 0.0
    %1152 = vmatpush1.msra.mxu0 0.0
    %1153 = vmatprep.subr.mxu0 0.0
    %1154 = vmatpush1.msra.mxu0 0.0
    %1155 = vmatprep.subr.mxu0 0.0
    %1156 = vmatpush1.msra.mxu0 0.0
    %1157 = vmatprep.subr.mxu0 0.0
    %1158 = vmatpush1.msra.mxu0 0.0
    %1159 = vmatprep.subr.mxu0 0.0
    %1160 = vmatpush1.msra.mxu0 0.0
    %1161 = vmatprep.subr.mxu0 0.0
    %1162 = vmatpush1.msra.mxu0 0.0
    %1163 = vmatprep.subr.mxu0 0.0
    %1164 = vmatpush1.msra.mxu0 0.0
    %1165 = vmatprep.subr.mxu0 0.0
    %1166 = vmatpush1.msra.mxu0 0.0
    %1167 = vmatprep.subr.mxu0 0.0
    %1168 = vmatpush1.msra.mxu0 0.0
    %1169 = vmatprep.subr.mxu0 0.0
    %1170 = vmatpush1.msra.mxu0 0.0
    %1171 = vmatprep.subr.mxu0 0.0
    %1172 = vmatpush1.msra.mxu0 0.0
    %1173 = vmatprep.subr.mxu0 0.0
    %1174 = vmatpush1.msra.mxu0 0.0
    %1175 = vmatprep.subr.mxu0 0.0
    %1176 = vmatpush1.msra.mxu0 0.0
    %1177 = vmatprep.subr.mxu0 0.0
    %1178 = vmatpush1.msra.mxu0 0.0
    %1179 = vmatprep.subr.mxu0 0.0
    %1180 = vmatpush1.msra.mxu0 0.0
    %1181 = vmatprep.subr.mxu0 0.0
    %1182 = vmatpush1.msra.mxu0 0.0
    %1183 = vmatprep.subr.mxu0 0.0
    %1184 = vmatpush1.msra.mxu0 0.0
    %1185 = vmatprep.subr.mxu0 0.0
    %1186 = vmatpush1.msra.mxu0 0.0
    %1187 = vmatprep.subr.mxu0 0.0
    %1188 = vmatpush1.msra.mxu0 0.0
    %1189 = vmatprep.subr.mxu0 0.0
    %1190 = vmatpush1.msra.mxu0 0.0
    %1191 = vmatprep.subr.mxu0 0.0
    %1192 = vmatpush1.msra.mxu0 0.0
    %1193 = vmatprep.subr.mxu0 0.0
    %1194 = vmatpush1.msra.mxu0 0.0
    %1195 = vmatprep.subr.mxu0 0.0
    %1196 = vmatpush1.msra.mxu0 0.0
    %1197 = vmatprep.subr.mxu0 0.0
    %1198 = vmatpush1.msra.mxu0 0.0
    %1199 = vmatprep.subr.mxu0 0.0
    %1200 = vmatpush1.msra.mxu0 0.0
    %1201 = vmatprep.subr.mxu0 0.0
    %1202 = vmatpush1.msra.mxu0 0.0
    %1203 = vmatprep.subr.mxu0 0.0
    %1204 = vmatpush1.msra.mxu0 0.0
    %1205 = vmatprep.subr.mxu0 0.0
    %1206 = vmatpush1.msra.mxu0 0.0
    %1207 = vmatprep.subr.mxu0 0.0
    %1208 = vmatpush1.msra.mxu0 0.0
    %1209 = vmatprep.mubr.f32.mxu0 0.0
    %1210 = vmatmul.mubr.f32.gmra.mrb[0].mxu0 %v1143
    %v1211 = vpop.f32.mrb[0].mxu0
    %v1212 = vadd.f32 0.0, %v1211
    %v1213 = vpop.f32.mrb[0].mxu0
    %v1214 = vadd.f32 0.0, %v1213
    %1215 = vdwg.mxu0
    %v1217 = vsel %vm77, %v1139, 0
    %1219 = vmatprep.subr.mxu0 %v1129
    %1220 = vmatpush1.msra.mxu0 %v1128
    %1221 = vmatprep.subr.mxu0 0.0
    %1222 = vmatpush1.msra.mxu0 0.0
    %1223 = vmatprep.subr.mxu0 0.0
    %1224 = vmatpush1.msra.mxu0 0.0
    %1225 = vmatprep.subr.mxu0 0.0
    %1226 = vmatpush1.msra.mxu0 0.0
    %1227 = vmatprep.subr.mxu0 0.0
    %1228 = vmatpush1.msra.mxu0 0.0
    %1229 = vmatprep.subr.mxu0 0.0
    %1230 = vmatpush1.msra.mxu0 0.0
    %1231 = vmatprep.subr.mxu0 0.0
    %1232 = vmatpush1.msra.mxu0 0.0
    %1233 = vmatprep.subr.mxu0 0.0
    %1234 = vmatpush1.msra.mxu0 0.0
    %1235 = vmatprep.subr.mxu0 0.0
    %1236 = vmatpush1.msra.mxu0 0.0
    %1237 = vmatprep.subr.mxu0 0.0
    %1238 = vmatpush1.msra.mxu0 0.0
    %1239 = vmatprep.subr.mxu0 0.0
    %1240 = vmatpush1.msra.mxu0 0.0
    %1241 = vmatprep.subr.mxu0 0.0
    %1242 = vmatpush1.msra.mxu0 0.0
    %1243 = vmatprep.subr.mxu0 0.0
    %1244 = vmatpush1.msra.mxu0 0.0
    %1245 = vmatprep.subr.mxu0 0.0
    %1246 = vmatpush1.msra.mxu0 0.0
    %1247 = vmatprep.subr.mxu0 0.0
    %1248 = vmatpush1.msra.mxu0 0.0
    %1249 = vmatprep.subr.mxu0 0.0
    %1250 = vmatpush1.msra.mxu0 0.0
    %1251 = vmatprep.subr.mxu0 0.0
    %1252 = vmatpush1.msra.mxu0 0.0
    %1253 = vmatprep.subr.mxu0 0.0
    %1254 = vmatpush1.msra.mxu0 0.0
    %1255 = vmatprep.subr.mxu0 0.0
    %1256 = vmatpush1.msra.mxu0 0.0
    %1257 = vmatprep.subr.mxu0 0.0
    %1258 = vmatpush1.msra.mxu0 0.0
    %1259 = vmatprep.subr.mxu0 0.0
    %1260 = vmatpush1.msra.mxu0 0.0
    %1261 = vmatprep.subr.mxu0 0.0
    %1262 = vmatpush1.msra.mxu0 0.0
    %1263 = vmatprep.subr.mxu0 0.0
    %1264 = vmatpush1.msra.mxu0 0.0
    %1265 = vmatprep.subr.mxu0 0.0
    %1266 = vmatpush1.msra.mxu0 0.0
    %1267 = vmatprep.subr.mxu0 0.0
    %1268 = vmatpush1.msra.mxu0 0.0
    %1269 = vmatprep.subr.mxu0 0.0
    %1270 = vmatpush1.msra.mxu0 0.0
    %1271 = vmatprep.subr.mxu0 0.0
    %1272 = vmatpush1.msra.mxu0 0.0
    %1273 = vmatprep.subr.mxu0 0.0
    %1274 = vmatpush1.msra.mxu0 0.0
    %1275 = vmatprep.subr.mxu0 0.0
    %1276 = vmatpush1.msra.mxu0 0.0
    %1277 = vmatprep.subr.mxu0 0.0
    %1278 = vmatpush1.msra.mxu0 0.0
    %1279 = vmatprep.subr.mxu0 0.0
    %1280 = vmatpush1.msra.mxu0 0.0
    %1281 = vmatprep.subr.mxu0 0.0
    %1282 = vmatpush1.msra.mxu0 0.0
    %1283 = vmatprep.mubr.f32.mxu0 0.0
    %1284 = vmatmul.mubr.f32.gmra.mrb[0].mxu0 %v1217
    %v1285 = vpop.f32.mrb[0].mxu0
    %v1286 = vadd.f32 %v1212, %v1285
    %v1287 = vpop.f32.mrb[0].mxu0
    %v1288 = vadd.f32 %v1214, %v1287
    %1289 = vdwg.mxu0
    %s1290 = scalar_lea.vmem %s1, 112
    %v1291 = vld [vmem:[%s1290] sm:$0xff]
    %v1293 = vsel %vm77, %v1291, 0
    %1295 = vmatprep.subr.mxu0 %v1137
    %1296 = vmatpush1.msra.mxu0 %v1136
    %1297 = vmatprep.subr.mxu0 0.0
    %1298 = vmatpush1.msra.mxu0 0.0
    %1299 = vmatprep.subr.mxu0 0.0
    %1300 = vmatpush1.msra.mxu0 0.0
    %1301 = vmatprep.subr.mxu0 0.0
    %1302 = vmatpush1.msra.mxu0 0.0
    %1303 = vmatprep.subr.mxu0 0.0
    %1304 = vmatpush1.msra.mxu0 0.0
    %1305 = vmatprep.subr.mxu0 0.0
    %1306 = vmatpush1.msra.mxu0 0.0
    %1307 = vmatprep.subr.mxu0 0.0
    %1308 = vmatpush1.msra.mxu0 0.0
    %1309 = vmatprep.subr.mxu0 0.0
    %1310 = vmatpush1.msra.mxu0 0.0
    %1311 = vmatprep.subr.mxu0 0.0
    %1312 = vmatpush1.msra.mxu0 0.0
    %1313 = vmatprep.subr.mxu0 0.0
    %1314 = vmatpush1.msra.mxu0 0.0
    %1315 = vmatprep.subr.mxu0 0.0
    %1316 = vmatpush1.msra.mxu0 0.0
    %1317 = vmatprep.subr.mxu0 0.0
    %1318 = vmatpush1.msra.mxu0 0.0
    %1319 = vmatprep.subr.mxu0 0.0
    %1320 = vmatpush1.msra.mxu0 0.0
    %1321 = vmatprep.subr.mxu0 0.0
    %1322 = vmatpush1.msra.mxu0 0.0
    %1323 = vmatprep.subr.mxu0 0.0
    %1324 = vmatpush1.msra.mxu0 0.0
    %1325 = vmatprep.subr.mxu0 0.0
    %1326 = vmatpush1.msra.mxu0 0.0
    %1327 = vmatprep.subr.mxu0 0.0
    %1328 = vmatpush1.msra.mxu0 0.0
    %1329 = vmatprep.subr.mxu0 0.0
    %1330 = vmatpush1.msra.mxu0 0.0
    %1331 = vmatprep.subr.mxu0 0.0
    %1332 = vmatpush1.msra.mxu0 0.0
    %1333 = vmatprep.subr.mxu0 0.0
    %1334 = vmatpush1.msra.mxu0 0.0
    %1335 = vmatprep.subr.mxu0 0.0
    %1336 = vmatpush1.msra.mxu0 0.0
    %1337 = vmatprep.subr.mxu0 0.0
    %1338 = vmatpush1.msra.mxu0 0.0
    %1339 = vmatprep.subr.mxu0 0.0
    %1340 = vmatpush1.msra.mxu0 0.0
    %1341 = vmatprep.subr.mxu0 0.0
    %1342 = vmatpush1.msra.mxu0 0.0
    %1343 = vmatprep.subr.mxu0 0.0
    %1344 = vmatpush1.msra.mxu0 0.0
    %1345 = vmatprep.subr.mxu0 0.0
    %1346 = vmatpush1.msra.mxu0 0.0
    %1347 = vmatprep.subr.mxu0 0.0
    %1348 = vmatpush1.msra.mxu0 0.0
    %1349 = vmatprep.subr.mxu0 0.0
    %1350 = vmatpush1.msra.mxu0 0.0
    %1351 = vmatprep.subr.mxu0 0.0
    %1352 = vmatpush1.msra.mxu0 0.0
    %1353 = vmatprep.subr.mxu0 0.0
    %1354 = vmatpush1.msra.mxu0 0.0
    %1355 = vmatprep.subr.mxu0 0.0
    %1356 = vmatpush1.msra.mxu0 0.0
    %1357 = vmatprep.subr.mxu0 0.0
    %1358 = vmatpush1.msra.mxu0 0.0
    %1359 = vmatprep.mubr.f32.mxu0 0.0
    %1360 = vmatmul.mubr.f32.gmra.mrb[0].mxu0 %v1293
    %v1361 = vpop.f32.mrb[0].mxu0
    %v1362 = vadd.f32 0.0, %v1361
    %v1363 = vpop.f32.mrb[0].mxu0
    %v1364 = vadd.f32 0.0, %v1363
    %1365 = vdwg.mxu0
    %v1366 = vadd.f32 %v1286, %v1362
    %v1367 = vadd.f32 %v1288, %v1364
    %s1368 = scalar_lea.vmem %s1, 72
    %v1369 = vld [vmem:[%s1368] sm:$0xff]
    %1370 = vrot.lane.b32.xlu0 %v1128, 16
    %v1371 = vpop.permute.xlu0 %1370
    %1372 = vrot.lane.b32.xlu0 %v1129, 16
    %v1373 = vpop.permute.xlu0 %1372
    %v1374 = vsel %vm309, %v1371, %v1373
    %v1375 = vsel %vm309, %v1373, %v1371
    %s1376 = scalar_lea.vmem %s1, 80
    %v1377 = vld [vmem:[%s1376] sm:$0xff]
    %1378 = vrot.lane.b32.xlu0 %v1120, 16
    %v1379 = vpop.permute.xlu0 %1378
    %1380 = vrot.lane.b32.xlu0 %v1121, 16
    %v1381 = vpop.permute.xlu0 %1380
    %v1382 = vsel %vm309, %v1379, %v1381
    %v1383 = vsel %vm309, %v1381, %v1379
    %v1385 = vsel %vm77, %v1377, 0
    %1387 = vmatprep.subr.mxu0 %v1382
    %1388 = vmatpush1.msra.mxu0 %v1383
    %1389 = vmatprep.subr.mxu0 0.0
    %1390 = vmatpush1.msra.mxu0 0.0
    %1391 = vmatprep.subr.mxu0 0.0
    %1392 = vmatpush1.msra.mxu0 0.0
    %1393 = vmatprep.subr.mxu0 0.0
    %1394 = vmatpush1.msra.mxu0 0.0
    %1395 = vmatprep.subr.mxu0 0.0
    %1396 = vmatpush1.msra.mxu0 0.0
    %1397 = vmatprep.subr.mxu0 0.0
    %1398 = vmatpush1.msra.mxu0 0.0
    %1399 = vmatprep.subr.mxu0 0.0
    %1400 = vmatpush1.msra.mxu0 0.0
    %1401 = vmatprep.subr.mxu0 0.0
    %1402 = vmatpush1.msra.mxu0 0.0
    %1403 = vmatprep.subr.mxu0 0.0
    %1404 = vmatpush1.msra.mxu0 0.0
    %1405 = vmatprep.subr.mxu0 0.0
    %1406 = vmatpush1.msra.mxu0 0.0
    %1407 = vmatprep.subr.mxu0 0.0
    %1408 = vmatpush1.msra.mxu0 0.0
    %1409 = vmatprep.subr.mxu0 0.0
    %1410 = vmatpush1.msra.mxu0 0.0
    %1411 = vmatprep.subr.mxu0 0.0
    %1412 = vmatpush1.msra.mxu0 0.0
    %1413 = vmatprep.subr.mxu0 0.0
    %1414 = vmatpush1.msra.mxu0 0.0
    %1415 = vmatprep.subr.mxu0 0.0
    %1416 = vmatpush1.msra.mxu0 0.0
    %1417 = vmatprep.subr.mxu0 0.0
    %1418 = vmatpush1.msra.mxu0 0.0
    %1419 = vmatprep.subr.mxu0 0.0
    %1420 = vmatpush1.msra.mxu0 0.0
    %1421 = vmatprep.subr.mxu0 0.0
    %1422 = vmatpush1.msra.mxu0 0.0
    %1423 = vmatprep.subr.mxu0 0.0
    %1424 = vmatpush1.msra.mxu0 0.0
    %1425 = vmatprep.subr.mxu0 0.0
    %1426 = vmatpush1.msra.mxu0 0.0
    %1427 = vmatprep.subr.mxu0 0.0
    %1428 = vmatpush1.msra.mxu0 0.0
    %1429 = vmatprep.subr.mxu0 0.0
    %1430 = vmatpush1.msra.mxu0 0.0
    %1431 = vmatprep.subr.mxu0 0.0
    %1432 = vmatpush1.msra.mxu0 0.0
    %1433 = vmatprep.subr.mxu0 0.0
    %1434 = vmatpush1.msra.mxu0 0.0
    %1435 = vmatprep.subr.mxu0 0.0
    %1436 = vmatpush1.msra.mxu0 0.0
    %1437 = vmatprep.subr.mxu0 0.0
    %1438 = vmatpush1.msra.mxu0 0.0
    %1439 = vmatprep.subr.mxu0 0.0
    %1440 = vmatpush1.msra.mxu0 0.0
    %1441 = vmatprep.subr.mxu0 0.0
    %1442 = vmatpush1.msra.mxu0 0.0
    %1443 = vmatprep.subr.mxu0 0.0
    %1444 = vmatpush1.msra.mxu0 0.0
    %1445 = vmatprep.subr.mxu0 0.0
    %1446 = vmatpush1.msra.mxu0 0.0
    %1447 = vmatprep.subr.mxu0 0.0
    %1448 = vmatpush1.msra.mxu0 0.0
    %1449 = vmatprep.subr.mxu0 0.0
    %1450 = vmatpush1.msra.mxu0 0.0
    %1451 = vmatprep.mubr.f32.mxu0 0.0
    %1452 = vmatmul.mubr.f32.gmra.mrb[0].mxu0 %v1385
    %v1453 = vpop.f32.mrb[0].mxu0
    %v1454 = vadd.f32 0.0, %v1453
    %v1455 = vpop.f32.mrb[0].mxu0
    %v1456 = vadd.f32 0.0, %v1455
    %1457 = vdwg.mxu0
    %v1459 = vsel %vm77, %v1369, 0
    %1461 = vmatprep.subr.mxu0 %v1374
    %1462 = vmatpush1.msra.mxu0 %v1375
    %1463 = vmatprep.subr.mxu0 0.0
    %1464 = vmatpush1.msra.mxu0 0.0
    %1465 = vmatprep.subr.mxu0 0.0
    %1466 = vmatpush1.msra.mxu0 0.0
    %1467 = vmatprep.subr.mxu0 0.0
    %1468 = vmatpush1.msra.mxu0 0.0
    %1469 = vmatprep.subr.mxu0 0.0
    %1470 = vmatpush1.msra.mxu0 0.0
    %1471 = vmatprep.subr.mxu0 0.0
    %1472 = vmatpush1.msra.mxu0 0.0
    %1473 = vmatprep.subr.mxu0 0.0
    %1474 = vmatpush1.msra.mxu0 0.0
    %1475 = vmatprep.subr.mxu0 0.0
    %1476 = vmatpush1.msra.mxu0 0.0
    %1477 = vmatprep.subr.mxu0 0.0
    %1478 = vmatpush1.msra.mxu0 0.0
    %1479 = vmatprep.subr.mxu0 0.0
    %1480 = vmatpush1.msra.mxu0 0.0
    %1481 = vmatprep.subr.mxu0 0.0
    %1482 = vmatpush1.msra.mxu0 0.0
    %1483 = vmatprep.subr.mxu0 0.0
    %1484 = vmatpush1.msra.mxu0 0.0
    %1485 = vmatprep.subr.mxu0 0.0
    %1486 = vmatpush1.msra.mxu0 0.0
    %1487 = vmatprep.subr.mxu0 0.0
    %1488 = vmatpush1.msra.mxu0 0.0
    %1489 = vmatprep.subr.mxu0 0.0
    %1490 = vmatpush1.msra.mxu0 0.0
    %1491 = vmatprep.subr.mxu0 0.0
    %1492 = vmatpush1.msra.mxu0 0.0
    %1493 = vmatprep.subr.mxu0 0.0
    %1494 = vmatpush1.msra.mxu0 0.0
    %1495 = vmatprep.subr.mxu0 0.0
    %1496 = vmatpush1.msra.mxu0 0.0
    %1497 = vmatprep.subr.mxu0 0.0
    %1498 = vmatpush1.msra.mxu0 0.0
    %1499 = vmatprep.subr.mxu0 0.0
    %1500 = vmatpush1.msra.mxu0 0.0
    %1501 = vmatprep.subr.mxu0 0.0
    %1502 = vmatpush1.msra.mxu0 0.0
    %1503 = vmatprep.subr.mxu0 0.0
    %1504 = vmatpush1.msra.mxu0 0.0
    %1505 = vmatprep.subr.mxu0 0.0
    %1506 = vmatpush1.msra.mxu0 0.0
    %1507 = vmatprep.subr.mxu0 0.0
    %1508 = vmatpush1.msra.mxu0 0.0
    %1509 = vmatprep.subr.mxu0 0.0
    %1510 = vmatpush1.msra.mxu0 0.0
    %1511 = vmatprep.subr.mxu0 0.0
    %1512 = vmatpush1.msra.mxu0 0.0
    %1513 = vmatprep.subr.mxu0 0.0
    %1514 = vmatpush1.msra.mxu0 0.0
    %1515 = vmatprep.subr.mxu0 0.0
    %1516 = vmatpush1.msra.mxu0 0.0
    %1517 = vmatprep.subr.mxu0 0.0
    %1518 = vmatpush1.msra.mxu0 0.0
    %1519 = vmatprep.subr.mxu0 0.0
    %1520 = vmatpush1.msra.mxu0 0.0
    %1521 = vmatprep.subr.mxu0 0.0
    %1522 = vmatpush1.msra.mxu0 0.0
    %1523 = vmatprep.subr.mxu0 0.0
    %1524 = vmatpush1.msra.mxu0 0.0
    %1525 = vmatprep.mubr.f32.mxu0 0.0
    %1526 = vmatmul.mubr.f32.gmra.mrb[0].mxu0 %v1459
    %v1527 = vpop.f32.mrb[0].mxu0
    %v1528 = vadd.f32 %v1454, %v1527
    %v1529 = vpop.f32.mrb[0].mxu0
    %v1530 = vadd.f32 %v1456, %v1529
    %1531 = vdwg.mxu0
    %s1532 = scalar_lea.vmem %s1, 88
    %v1533 = vld [vmem:[%s1532] sm:$0xff]
    %1534 = vrot.lane.b32.xlu0 %v1136, 16
    %v1535 = vpop.permute.xlu0 %1534
    %1536 = vrot.lane.b32.xlu0 %v1137, 16
    %v1537 = vpop.permute.xlu0 %1536
    %v1538 = vsel %vm309, %v1535, %v1537
    %v1539 = vsel %vm309, %v1537, %v1535
    %v1541 = vsel %vm77, %v1533, 0
    %1543 = vmatprep.subr.mxu0 %v1538
    %1544 = vmatpush1.msra.mxu0 %v1539
    %1545 = vmatprep.subr.mxu0 0.0
    %1546 = vmatpush1.msra.mxu0 0.0
    %1547 = vmatprep.subr.mxu0 0.0
    %1548 = vmatpush1.msra.mxu0 0.0
    %1549 = vmatprep.subr.mxu0 0.0
    %1550 = vmatpush1.msra.mxu0 0.0
    %1551 = vmatprep.subr.mxu0 0.0
    %1552 = vmatpush1.msra.mxu0 0.0
    %1553 = vmatprep.subr.mxu0 0.0
    %1554 = vmatpush1.msra.mxu0 0.0
    %1555 = vmatprep.subr.mxu0 0.0
    %1556 = vmatpush1.msra.mxu0 0.0
    %1557 = vmatprep.subr.mxu0 0.0
    %1558 = vmatpush1.msra.mxu0 0.0
    %1559 = vmatprep.subr.mxu0 0.0
    %1560 = vmatpush1.msra.mxu0 0.0
    %1561 = vmatprep.subr.mxu0 0.0
    %1562 = vmatpush1.msra.mxu0 0.0
    %1563 = vmatprep.subr.mxu0 0.0
    %1564 = vmatpush1.msra.mxu0 0.0
    %1565 = vmatprep.subr.mxu0 0.0
    %1566 = vmatpush1.msra.mxu0 0.0
    %1567 = vmatprep.subr.mxu0 0.0
    %1568 = vmatpush1.msra.mxu0 0.0
    %1569 = vmatprep.subr.mxu0 0.0
    %1570 = vmatpush1.msra.mxu0 0.0
    %1571 = vmatprep.subr.mxu0 0.0
    %1572 = vmatpush1.msra.mxu0 0.0
    %1573 = vmatprep.subr.mxu0 0.0
    %1574 = vmatpush1.msra.mxu0 0.0
    %1575 = vmatprep.subr.mxu0 0.0
    %1576 = vmatpush1.msra.mxu0 0.0
    %1577 = vmatprep.subr.mxu0 0.0
    %1578 = vmatpush1.msra.mxu0 0.0
    %1579 = vmatprep.subr.mxu0 0.0
    %1580 = vmatpush1.msra.mxu0 0.0
    %1581 = vmatprep.subr.mxu0 0.0
    %1582 = vmatpush1.msra.mxu0 0.0
    %1583 = vmatprep.subr.mxu0 0.0
    %1584 = vmatpush1.msra.mxu0 0.0
    %1585 = vmatprep.subr.mxu0 0.0
    %1586 = vmatpush1.msra.mxu0 0.0
    %1587 = vmatprep.subr.mxu0 0.0
    %1588 = vmatpush1.msra.mxu0 0.0
    %1589 = vmatprep.subr.mxu0 0.0
    %1590 = vmatpush1.msra.mxu0 0.0
    %1591 = vmatprep.subr.mxu0 0.0
    %1592 = vmatpush1.msra.mxu0 0.0
    %1593 = vmatprep.subr.mxu0 0.0
    %1594 = vmatpush1.msra.mxu0 0.0
    %1595 = vmatprep.subr.mxu0 0.0
    %1596 = vmatpush1.msra.mxu0 0.0
    %1597 = vmatprep.subr.mxu0 0.0
    %1598 = vmatpush1.msra.mxu0 0.0
    %1599 = vmatprep.subr.mxu0 0.0
    %1600 = vmatpush1.msra.mxu0 0.0
    %1601 = vmatprep.subr.mxu0 0.0
    %1602 = vmatpush1.msra.mxu0 0.0
    %1603 = vmatprep.subr.mxu0 0.0
    %1604 = vmatpush1.msra.mxu0 0.0
    %1605 = vmatprep.subr.mxu0 0.0
    %1606 = vmatpush1.msra.mxu0 0.0
    %1607 = vmatprep.mubr.f32.mxu0 0.0
    %1608 = vmatmul.mubr.f32.gmra.mrb[0].mxu0 %v1541
    %v1609 = vpop.f32.mrb[0].mxu0
    %v1610 = vadd.f32 0.0, %v1609
    %v1611 = vpop.f32.mrb[0].mxu0
    %v1612 = vadd.f32 0.0, %v1611
    %1613 = vdwg.mxu0
    %v1614 = vadd.f32 %v1528, %v1610
    %v1615 = vadd.f32 %v1530, %v1612
    %v1616 = vmul.f32 %v1614, %v46
    %v1617 = vmul.f32 %v1615, %v47
    %v1618 = vadd.f32 %v1366, %v1616
    %v1619 = vadd.f32 %v1367, %v1617
    %s1620 = scalar_lea.vmem %s1, 120
    %v1621 = vld [vmem:[%s1620] sm:$0xff]
    %1622 = vrot.lane.b32.xlu0 %v1128, 112
    %v1623 = vpop.permute.xlu0 %1622
    %1624 = vrot.lane.b32.xlu0 %v1129, 112
    %v1625 = vpop.permute.xlu0 %1624
    %v1626 = vsel %vm562, %v1623, %v1625
    %v1627 = vsel %vm562, %v1625, %v1623
    %s1628 = scalar_lea.vmem %s1, 128
    %v1629 = vld [vmem:[%s1628] sm:$0xff]
    %1630 = vrot.lane.b32.xlu0 %v1120, 112
    %v1631 = vpop.permute.xlu0 %1630
    %1632 = vrot.lane.b32.xlu0 %v1121, 112
    %v1633 = vpop.permute.xlu0 %1632
    %v1634 = vsel %vm562, %v1631, %v1633
    %v1635 = vsel %vm562, %v1633, %v1631
    %v1637 = vsel %vm77, %v1629, 0
    %1639 = vmatprep.subr.mxu0 %v1635
    %1640 = vmatpush1.msra.mxu0 %v1634
    %1641 = vmatprep.subr.mxu0 0.0
    %1642 = vmatpush1.msra.mxu0 0.0
    %1643 = vmatprep.subr.mxu0 0.0
    %1644 = vmatpush1.msra.mxu0 0.0
    %1645 = vmatprep.subr.mxu0 0.0
    %1646 = vmatpush1.msra.mxu0 0.0
    %1647 = vmatprep.subr.mxu0 0.0
    %1648 = vmatpush1.msra.mxu0 0.0
    %1649 = vmatprep.subr.mxu0 0.0
    %1650 = vmatpush1.msra.mxu0 0.0
    %1651 = vmatprep.subr.mxu0 0.0
    %1652 = vmatpush1.msra.mxu0 0.0
    %1653 = vmatprep.subr.mxu0 0.0
    %1654 = vmatpush1.msra.mxu0 0.0
    %1655 = vmatprep.subr.mxu0 0.0
    %1656 = vmatpush1.msra.mxu0 0.0
    %1657 = vmatprep.subr.mxu0 0.0
    %1658 = vmatpush1.msra.mxu0 0.0
    %1659 = vmatprep.subr.mxu0 0.0
    %1660 = vmatpush1.msra.mxu0 0.0
    %1661 = vmatprep.subr.mxu0 0.0
    %1662 = vmatpush1.msra.mxu0 0.0
    %1663 = vmatprep.subr.mxu0 0.0
    %1664 = vmatpush1.msra.mxu0 0.0
    %1665 = vmatprep.subr.mxu0 0.0
    %1666 = vmatpush1.msra.mxu0 0.0
    %1667 = vmatprep.subr.mxu0 0.0
    %1668 = vmatpush1.msra.mxu0 0.0
    %1669 = vmatprep.subr.mxu0 0.0
    %1670 = vmatpush1.msra.mxu0 0.0
    %1671 = vmatprep.subr.mxu0 0.0
    %1672 = vmatpush1.msra.mxu0 0.0
    %1673 = vmatprep.subr.mxu0 0.0
    %1674 = vmatpush1.msra.mxu0 0.0
    %1675 = vmatprep.subr.mxu0 0.0
    %1676 = vmatpush1.msra.mxu0 0.0
    %1677 = vmatprep.subr.mxu0 0.0
    %1678 = vmatpush1.msra.mxu0 0.0
    %1679 = vmatprep.subr.mxu0 0.0
    %1680 = vmatpush1.msra.mxu0 0.0
    %1681 = vmatprep.subr.mxu0 0.0
    %1682 = vmatpush1.msra.mxu0 0.0
    %1683 = vmatprep.subr.mxu0 0.0
    %1684 = vmatpush1.msra.mxu0 0.0
    %1685 = vmatprep.subr.mxu0 0.0
    %1686 = vmatpush1.msra.mxu0 0.0
    %1687 = vmatprep.subr.mxu0 0.0
    %1688 = vmatpush1.msra.mxu0 0.0
    %1689 = vmatprep.subr.mxu0 0.0
    %1690 = vmatpush1.msra.mxu0 0.0
    %1691 = vmatprep.subr.mxu0 0.0
    %1692 = vmatpush1.msra.mxu0 0.0
    %1693 = vmatprep.subr.mxu0 0.0
    %1694 = vmatpush1.msra.mxu0 0.0
    %1695 = vmatprep.subr.mxu0 0.0
    %1696 = vmatpush1.msra.mxu0 0.0
    %1697 = vmatprep.subr.mxu0 0.0
    %1698 = vmatpush1.msra.mxu0 0.0
    %1699 = vmatprep.subr.mxu0 0.0
    %1700 = vmatpush1.msra.mxu0 0.0
    %1701 = vmatprep.subr.mxu0 0.0
    %1702 = vmatpush1.msra.mxu0 0.0
    %1703 = vmatprep.mubr.f32.mxu0 0.0
    %1704 = vmatmul.mubr.f32.gmra.mrb[0].mxu0 %v1637
    %v1705 = vpop.f32.mrb[0].mxu0
    %v1706 = vadd.f32 0.0, %v1705
    %v1707 = vpop.f32.mrb[0].mxu0
    %v1708 = vadd.f32 0.0, %v1707
    %1709 = vdwg.mxu0
    %v1711 = vsel %vm77, %v1621, 0
    %1713 = vmatprep.subr.mxu0 %v1627
    %1714 = vmatpush1.msra.mxu0 %v1626
    %1715 = vmatprep.subr.mxu0 0.0
    %1716 = vmatpush1.msra.mxu0 0.0
    %1717 = vmatprep.subr.mxu0 0.0
    %1718 = vmatpush1.msra.mxu0 0.0
    %1719 = vmatprep.subr.mxu0 0.0
    %1720 = vmatpush1.msra.mxu0 0.0
    %1721 = vmatprep.subr.mxu0 0.0
    %1722 = vmatpush1.msra.mxu0 0.0
    %1723 = vmatprep.subr.mxu0 0.0
    %1724 = vmatpush1.msra.mxu0 0.0
    %1725 = vmatprep.subr.mxu0 0.0
    %1726 = vmatpush1.msra.mxu0 0.0
    %1727 = vmatprep.subr.mxu0 0.0
    %1728 = vmatpush1.msra.mxu0 0.0
    %1729 = vmatprep.subr.mxu0 0.0
    %1730 = vmatpush1.msra.mxu0 0.0
    %1731 = vmatprep.subr.mxu0 0.0
    %1732 = vmatpush1.msra.mxu0 0.0
    %1733 = vmatprep.subr.mxu0 0.0
    %1734 = vmatpush1.msra.mxu0 0.0
    %1735 = vmatprep.subr.mxu0 0.0
    %1736 = vmatpush1.msra.mxu0 0.0
    %1737 = vmatprep.subr.mxu0 0.0
    %1738 = vmatpush1.msra.mxu0 0.0
    %1739 = vmatprep.subr.mxu0 0.0
    %1740 = vmatpush1.msra.mxu0 0.0
    %1741 = vmatprep.subr.mxu0 0.0
    %1742 = vmatpush1.msra.mxu0 0.0
    %1743 = vmatprep.subr.mxu0 0.0
    %1744 = vmatpush1.msra.mxu0 0.0
    %1745 = vmatprep.subr.mxu0 0.0
    %1746 = vmatpush1.msra.mxu0 0.0
    %1747 = vmatprep.subr.mxu0 0.0
    %1748 = vmatpush1.msra.mxu0 0.0
    %1749 = vmatprep.subr.mxu0 0.0
    %1750 = vmatpush1.msra.mxu0 0.0
    %1751 = vmatprep.subr.mxu0 0.0
    %1752 = vmatpush1.msra.mxu0 0.0
    %1753 = vmatprep.subr.mxu0 0.0
    %1754 = vmatpush1.msra.mxu0 0.0
    %1755 = vmatprep.subr.mxu0 0.0
    %1756 = vmatpush1.msra.mxu0 0.0
    %1757 = vmatprep.subr.mxu0 0.0
    %1758 = vmatpush1.msra.mxu0 0.0
    %1759 = vmatprep.subr.mxu0 0.0
    %1760 = vmatpush1.msra.mxu0 0.0
    %1761 = vmatprep.subr.mxu0 0.0
    %1762 = vmatpush1.msra.mxu0 0.0
    %1763 = vmatprep.subr.mxu0 0.0
    %1764 = vmatpush1.msra.mxu0 0.0
    %1765 = vmatprep.subr.mxu0 0.0
    %1766 = vmatpush1.msra.mxu0 0.0
    %1767 = vmatprep.subr.mxu0 0.0
    %1768 = vmatpush1.msra.mxu0 0.0
    %1769 = vmatprep.subr.mxu0 0.0
    %1770 = vmatpush1.msra.mxu0 0.0
    %1771 = vmatprep.subr.mxu0 0.0
    %1772 = vmatpush1.msra.mxu0 0.0
    %1773 = vmatprep.subr.mxu0 0.0
    %1774 = vmatpush1.msra.mxu0 0.0
    %1775 = vmatprep.subr.mxu0 0.0
    %1776 = vmatpush1.msra.mxu0 0.0
    %1777 = vmatprep.mubr.f32.mxu0 0.0
    %1778 = vmatmul.mubr.f32.gmra.mrb[0].mxu0 %v1711
    %v1779 = vpop.f32.mrb[0].mxu0
    %v1780 = vadd.f32 %v1706, %v1779
    %v1781 = vpop.f32.mrb[0].mxu0
    %v1782 = vadd.f32 %v1708, %v1781
    %1783 = vdwg.mxu0
    %s1784 = scalar_lea.vmem %s1, 136
    %v1785 = vld [vmem:[%s1784] sm:$0xff]
    %1786 = vrot.lane.b32.xlu0 %v1136, 112
    %v1787 = vpop.permute.xlu0 %1786
    %1788 = vrot.lane.b32.xlu0 %v1137, 112
    %v1789 = vpop.permute.xlu0 %1788
    %v1790 = vsel %vm562, %v1787, %v1789
    %v1791 = vsel %vm562, %v1789, %v1787
    %v1793 = vsel %vm77, %v1785, 0
    %1795 = vmatprep.subr.mxu0 %v1791
    %1796 = vmatpush1.msra.mxu0 %v1790
    %1797 = vmatprep.subr.mxu0 0.0
    %1798 = vmatpush1.msra.mxu0 0.0
    %1799 = vmatprep.subr.mxu0 0.0
    %1800 = vmatpush1.msra.mxu0 0.0
    %1801 = vmatprep.subr.mxu0 0.0
    %1802 = vmatpush1.msra.mxu0 0.0
    %1803 = vmatprep.subr.mxu0 0.0
    %1804 = vmatpush1.msra.mxu0 0.0
    %1805 = vmatprep.subr.mxu0 0.0
    %1806 = vmatpush1.msra.mxu0 0.0
    %1807 = vmatprep.subr.mxu0 0.0
    %1808 = vmatpush1.msra.mxu0 0.0
    %1809 = vmatprep.subr.mxu0 0.0
    %1810 = vmatpush1.msra.mxu0 0.0
    %1811 = vmatprep.subr.mxu0 0.0
    %1812 = vmatpush1.msra.mxu0 0.0
    %1813 = vmatprep.subr.mxu0 0.0
    %1814 = vmatpush1.msra.mxu0 0.0
    %1815 = vmatprep.subr.mxu0 0.0
    %1816 = vmatpush1.msra.mxu0 0.0
    %1817 = vmatprep.subr.mxu0 0.0
    %1818 = vmatpush1.msra.mxu0 0.0
    %1819 = vmatprep.subr.mxu0 0.0
    %1820 = vmatpush1.msra.mxu0 0.0
    %1821 = vmatprep.subr.mxu0 0.0
    %1822 = vmatpush1.msra.mxu0 0.0
    %1823 = vmatprep.subr.mxu0 0.0
    %1824 = vmatpush1.msra.mxu0 0.0
    %1825 = vmatprep.subr.mxu0 0.0
    %1826 = vmatpush1.msra.mxu0 0.0
    %1827 = vmatprep.subr.mxu0 0.0
    %1828 = vmatpush1.msra.mxu0 0.0
    %1829 = vmatprep.subr.mxu0 0.0
    %1830 = vmatpush1.msra.mxu0 0.0
    %1831 = vmatprep.subr.mxu0 0.0
    %1832 = vmatpush1.msra.mxu0 0.0
    %1833 = vmatprep.subr.mxu0 0.0
    %1834 = vmatpush1.msra.mxu0 0.0
    %1835 = vmatprep.subr.mxu0 0.0
    %1836 = vmatpush1.msra.mxu0 0.0
    %1837 = vmatprep.subr.mxu0 0.0
    %1838 = vmatpush1.msra.mxu0 0.0
    %1839 = vmatprep.subr.mxu0 0.0
    %1840 = vmatpush1.msra.mxu0 0.0
    %1841 = vmatprep.subr.mxu0 0.0
    %1842 = vmatpush1.msra.mxu0 0.0
    %1843 = vmatprep.subr.mxu0 0.0
    %1844 = vmatpush1.msra.mxu0 0.0
    %1845 = vmatprep.subr.mxu0 0.0
    %1846 = vmatpush1.msra.mxu0 0.0
    %1847 = vmatprep.subr.mxu0 0.0
    %1848 = vmatpush1.msra.mxu0 0.0
    %1849 = vmatprep.subr.mxu0 0.0
    %1850 = vmatpush1.msra.mxu0 0.0
    %1851 = vmatprep.subr.mxu0 0.0
    %1852 = vmatpush1.msra.mxu0 0.0
    %1853 = vmatprep.subr.mxu0 0.0
    %1854 = vmatpush1.msra.mxu0 0.0
    %1855 = vmatprep.subr.mxu0 0.0
    %1856 = vmatpush1.msra.mxu0 0.0
    %1857 = vmatprep.subr.mxu0 0.0
    %1858 = vmatpush1.msra.mxu0 0.0
    %1859 = vmatprep.mubr.f32.mxu0 0.0
    %1860 = vmatmul.mubr.f32.gmra.mrb[0].mxu0 %v1793
    %v1861 = vpop.f32.mrb[0].mxu0
    %v1862 = vadd.f32 0.0, %v1861
    %v1863 = vpop.f32.mrb[0].mxu0
    %v1864 = vadd.f32 0.0, %v1863
    %1865 = vdwg.mxu0
    %v1866 = vadd.f32 %v1780, %v1862
    %v1867 = vadd.f32 %v1782, %v1864
    %v1868 = vmul.f32 %v1866, %v49
    %v1869 = vmul.f32 %v1867, %v50
    %v1870 = vadd.f32 %v1618, %v1868
    %v1871 = vadd.f32 %v1619, %v1869
    %1872 = vmatprep.subr.mxu0 0.0
    %1873 = vmatpush1.msra.mxu0 1.0
    %1874 = vmatprep.subr.mxu0 0.0
    %1875 = vmatpush1.msra.mxu0 1.0
    %1876 = vmatprep.subr.mxu0 0.0
    %1877 = vmatpush1.msra.mxu0 1.0
    %1878 = vmatprep.subr.mxu0 0.0
    %1879 = vmatpush1.msra.mxu0 1.0
    %1880 = vmatprep.subr.mxu0 0.0
    %1881 = vmatpush1.msra.mxu0 1.0
    %1882 = vmatprep.subr.mxu0 0.0
    %1883 = vmatpush1.msra.mxu0 1.0
    %1884 = vmatprep.subr.mxu0 0.0
    %1885 = vmatpush1.msra.mxu0 1.0
    %1886 = vmatprep.subr.mxu0 0.0
    %1887 = vmatpush1.msra.mxu0 1.0
    %1888 = vmatprep.subr.mxu0 0.0
    %1889 = vmatpush1.msra.mxu0 1.0
    %1890 = vmatprep.subr.mxu0 0.0
    %1891 = vmatpush1.msra.mxu0 1.0
    %1892 = vmatprep.subr.mxu0 0.0
    %1893 = vmatpush1.msra.mxu0 1.0
    %1894 = vmatprep.subr.mxu0 0.0
    %1895 = vmatpush1.msra.mxu0 1.0
    %1896 = vmatprep.subr.mxu0 0.0
    %1897 = vmatpush1.msra.mxu0 1.0
    %1898 = vmatprep.subr.mxu0 0.0
    %1899 = vmatpush1.msra.mxu0 1.0
    %1900 = vmatprep.subr.mxu0 0.0
    %1901 = vmatpush1.msra.mxu0 1.0
    %1902 = vmatprep.subr.mxu0 0.0
    %1903 = vmatpush1.msra.mxu0 1.0
    %1904 = vmatprep.subr.mxu0 0.0
    %1905 = vmatpush1.msra.mxu0 1.0
    %1906 = vmatprep.subr.mxu0 0.0
    %1907 = vmatpush1.msra.mxu0 1.0
    %1908 = vmatprep.subr.mxu0 0.0
    %1909 = vmatpush1.msra.mxu0 1.0
    %1910 = vmatprep.subr.mxu0 0.0
    %1911 = vmatpush1.msra.mxu0 1.0
    %1912 = vmatprep.subr.mxu0 0.0
    %1913 = vmatpush1.msra.mxu0 1.0
    %1914 = vmatprep.subr.mxu0 0.0
    %1915 = vmatpush1.msra.mxu0 1.0
    %1916 = vmatprep.subr.mxu0 0.0
    %1917 = vmatpush1.msra.mxu0 1.0
    %1918 = vmatprep.subr.mxu0 0.0
    %1919 = vmatpush1.msra.mxu0 1.0
    %1920 = vmatprep.subr.mxu0 0.0
    %1921 = vmatpush1.msra.mxu0 1.0
    %1922 = vmatprep.subr.mxu0 0.0
    %1923 = vmatpush1.msra.mxu0 1.0
    %1924 = vmatprep.subr.mxu0 0.0
    %1925 = vmatpush1.msra.mxu0 1.0
    %1926 = vmatprep.subr.mxu0 0.0
    %1927 = vmatpush1.msra.mxu0 1.0
    %1928 = vmatprep.subr.mxu0 0.0
    %1929 = vmatpush1.msra.mxu0 1.0
    %1930 = vmatprep.subr.mxu0 0.0
    %1931 = vmatpush1.msra.mxu0 1.0
    %1932 = vmatprep.subr.mxu0 0.0
    %1933 = vmatpush1.msra.mxu0 1.0
    %1934 = vmatprep.subr.mxu0 0.0
    %1935 = vmatpush1.msra.mxu0 1.0
    %1936 = vmatprep.mubr.f32.mxu0 %v1871
    %1937 = vmatmul.mubr.f32.gmra.mrb[0].mxu0 %v1870
    %v1938 = vpop.f32.mrb[0].mxu0
    %v1939 = vadd.f32 0.0, %v1938
    %v1940 = vpop.f32.mrb[0].mxu0
    %1941 = vdwg.mxu0
    %1942 = vmatprep.subr.mxu0 0.0
    %1943 = vmatpush1.msra.mxu0 %v1939
    %1944 = vmatprep.subr.mxu0 0.0
    %1945 = vmatpush1.msra.mxu0 0.0
    %1946 = vmatprep.subr.mxu0 0.0
    %1947 = vmatpush1.msra.mxu0 0.0
    %1948 = vmatprep.subr.mxu0 0.0
    %1949 = vmatpush1.msra.mxu0 0.0
    %1950 = vmatprep.subr.mxu0 0.0
    %1951 = vmatpush1.msra.mxu0 0.0
    %1952 = vmatprep.subr.mxu0 0.0
    %1953 = vmatpush1.msra.mxu0 0.0
    %1954 = vmatprep.subr.mxu0 0.0
    %1955 = vmatpush1.msra.mxu0 0.0
    %1956 = vmatprep.subr.mxu0 0.0
    %1957 = vmatpush1.msra.mxu0 0.0
    %1958 = vmatprep.subr.mxu0 0.0
    %1959 = vmatpush1.msra.mxu0 0.0
    %1960 = vmatprep.subr.mxu0 0.0
    %1961 = vmatpush1.msra.mxu0 0.0
    %1962 = vmatprep.subr.mxu0 0.0
    %1963 = vmatpush1.msra.mxu0 0.0
    %1964 = vmatprep.subr.mxu0 0.0
    %1965 = vmatpush1.msra.mxu0 0.0
    %1966 = vmatprep.subr.mxu0 0.0
    %1967 = vmatpush1.msra.mxu0 0.0
    %1968 = vmatprep.subr.mxu0 0.0
    %1969 = vmatpush1.msra.mxu0 0.0
    %1970 = vmatprep.subr.mxu0 0.0
    %1971 = vmatpush1.msra.mxu0 0.0
    %1972 = vmatprep.subr.mxu0 0.0
    %1973 = vmatpush1.msra.mxu0 0.0
    %1974 = vmatprep.subr.mxu0 0.0
    %1975 = vmatpush1.msra.mxu0 0.0
    %1976 = vmatprep.subr.mxu0 0.0
    %1977 = vmatpush1.msra.mxu0 0.0
    %1978 = vmatprep.subr.mxu0 0.0
    %1979 = vmatpush1.msra.mxu0 0.0
    %1980 = vmatprep.subr.mxu0 0.0
    %1981 = vmatpush1.msra.mxu0 0.0
    %1982 = vmatprep.subr.mxu0 0.0
    %1983 = vmatpush1.msra.mxu0 0.0
    %1984 = vmatprep.subr.mxu0 0.0
    %1985 = vmatpush1.msra.mxu0 0.0
    %1986 = vmatprep.subr.mxu0 0.0
    %1987 = vmatpush1.msra.mxu0 0.0
    %1988 = vmatprep.subr.mxu0 0.0
    %1989 = vmatpush1.msra.mxu0 0.0
    %1990 = vmatprep.subr.mxu0 0.0
    %1991 = vmatpush1.msra.mxu0 0.0
    %1992 = vmatprep.subr.mxu0 0.0
    %1993 = vmatpush1.msra.mxu0 0.0
    %1994 = vmatprep.subr.mxu0 0.0
    %1995 = vmatpush1.msra.mxu0 0.0
    %1996 = vmatprep.subr.mxu0 0.0
    %1997 = vmatpush1.msra.mxu0 0.0
    %1998 = vmatprep.subr.mxu0 0.0
    %1999 = vmatpush1.msra.mxu0 0.0
    %2000 = vmatprep.subr.mxu0 0.0
    %2001 = vmatpush1.msra.mxu0 0.0
    %2002 = vmatprep.subr.mxu0 0.0
    %2003 = vmatpush1.msra.mxu0 0.0
    %2004 = vmatprep.subr.mxu0 0.0
    %2005 = vmatpush1.msra.mxu0 0.0
    %2006 = vmatprep.mubr.f32.mxu0 0.0
    %2007 = vmatmul.mubr.f32.gmra.mrb[0].mxu0 %v880
    %v2008 = vpop.f32.mrb[0].mxu0
    %v2009 = vadd.f32 0.0, %v2008
    %v2010 = vpop.f32.mrb[0].mxu0
    %2011 = vdwg.mxu0
    %v2012 = vmul.f32 %v2009, 0.001953125
    %2014 = vset.pattern.permute.xlu0 0
    %2015 = vperm.xlu0 %2014, %v2012
    %v2016 = vpop.permute.xlu0 %2015
    %v2018 = vsub.f32 %v1870, %v2016
    %v2019 = vsub.f32 %v1871, %v2016
    %v2020 = vmul.f32 %v2018, %v2018
    %v2021 = vmul.f32 %v2019, %v2019
    %2022 = vmatprep.subr.mxu0 0.0
    %2023 = vmatpush1.msra.mxu0 1.0
    %2024 = vmatprep.subr.mxu0 0.0
    %2025 = vmatpush1.msra.mxu0 1.0
    %2026 = vmatprep.subr.mxu0 0.0
    %2027 = vmatpush1.msra.mxu0 1.0
    %2028 = vmatprep.subr.mxu0 0.0
    %2029 = vmatpush1.msra.mxu0 1.0
    %2030 = vmatprep.subr.mxu0 0.0
    %2031 = vmatpush1.msra.mxu0 1.0
    %2032 = vmatprep.subr.mxu0 0.0
    %2033 = vmatpush1.msra.mxu0 1.0
    %2034 = vmatprep.subr.mxu0 0.0
    %2035 = vmatpush1.msra.mxu0 1.0
    %2036 = vmatprep.subr.mxu0 0.0
    %2037 = vmatpush1.msra.mxu0 1.0
    %2038 = vmatprep.subr.mxu0 0.0
    %2039 = vmatpush1.msra.mxu0 1.0
    %2040 = vmatprep.subr.mxu0 0.0
    %2041 = vmatpush1.msra.mxu0 1.0
    %2042 = vmatprep.subr.mxu0 0.0
    %2043 = vmatpush1.msra.mxu0 1.0
    %2044 = vmatprep.subr.mxu0 0.0
    %2045 = vmatpush1.msra.mxu0 1.0
    %2046 = vmatprep.subr.mxu0 0.0
    %2047 = vmatpush1.msra.mxu0 1.0
    %2048 = vmatprep.subr.mxu0 0.0
    %2049 = vmatpush1.msra.mxu0 1.0
    %2050 = vmatprep.subr.mxu0 0.0
    %2051 = vmatpush1.msra.mxu0 1.0
    %2052 = vmatprep.subr.mxu0 0.0
    %2053 = vmatpush1.msra.mxu0 1.0
    %2054 = vmatprep.subr.mxu0 0.0
    %2055 = vmatpush1.msra.mxu0 1.0
    %2056 = vmatprep.subr.mxu0 0.0
    %2057 = vmatpush1.msra.mxu0 1.0
    %2058 = vmatprep.subr.mxu0 0.0
    %2059 = vmatpush1.msra.mxu0 1.0
    %2060 = vmatprep.subr.mxu0 0.0
    %2061 = vmatpush1.msra.mxu0 1.0
    %2062 = vmatprep.subr.mxu0 0.0
    %2063 = vmatpush1.msra.mxu0 1.0
    %2064 = vmatprep.subr.mxu0 0.0
    %2065 = vmatpush1.msra.mxu0 1.0
    %2066 = vmatprep.subr.mxu0 0.0
    %2067 = vmatpush1.msra.mxu0 1.0
    %2068 = vmatprep.subr.mxu0 0.0
    %2069 = vmatpush1.msra.mxu0 1.0
    %2070 = vmatprep.subr.mxu0 0.0
    %2071 = vmatpush1.msra.mxu0 1.0
    %2072 = vmatprep.subr.mxu0 0.0
    %2073 = vmatpush1.msra.mxu0 1.0
    %2074 = vmatprep.subr.mxu0 0.0
    %2075 = vmatpush1.msra.mxu0 1.0
    %2076 = vmatprep.subr.mxu0 0.0
    %2077 = vmatpush1.msra.mxu0 1.0
    %2078 = vmatprep.subr.mxu0 0.0
    %2079 = vmatpush1.msra.mxu0 1.0
    %2080 = vmatprep.subr.mxu0 0.0
    %2081 = vmatpush1.msra.mxu0 1.0
    %2082 = vmatprep.subr.mxu0 0.0
    %2083 = vmatpush1.msra.mxu0 1.0
    %2084 = vmatprep.subr.mxu0 0.0
    %2085 = vmatpush1.msra.mxu0 1.0
    %2086 = vmatprep.mubr.f32.mxu0 %v2021
    %2087 = vmatmul.mubr.f32.gmra.mrb[0].mxu0 %v2020
    %v2088 = vpop.f32.mrb[0].mxu0
    %v2089 = vadd.f32 0.0, %v2088
    %v2090 = vpop.f32.mrb[0].mxu0
    %2091 = vdwg.mxu0
    %2092 = vmatprep.subr.mxu0 0.0
    %2093 = vmatpush1.msra.mxu0 %v2089
    %2094 = vmatprep.subr.mxu0 0.0
    %2095 = vmatpush1.msra.mxu0 0.0
    %2096 = vmatprep.subr.mxu0 0.0
    %2097 = vmatpush1.msra.mxu0 0.0
    %2098 = vmatprep.subr.mxu0 0.0
    %2099 = vmatpush1.msra.mxu0 0.0
    %2100 = vmatprep.subr.mxu0 0.0
    %2101 = vmatpush1.msra.mxu0 0.0
    %2102 = vmatprep.subr.mxu0 0.0
    %2103 = vmatpush1.msra.mxu0 0.0
    %2104 = vmatprep.subr.mxu0 0.0
    %2105 = vmatpush1.msra.mxu0 0.0
    %2106 = vmatprep.subr.mxu0 0.0
    %2107 = vmatpush1.msra.mxu0 0.0
    %2108 = vmatprep.subr.mxu0 0.0
    %2109 = vmatpush1.msra.mxu0 0.0
    %2110 = vmatprep.subr.mxu0 0.0
    %2111 = vmatpush1.msra.mxu0 0.0
    %2112 = vmatprep.subr.mxu0 0.0
    %2113 = vmatpush1.msra.mxu0 0.0
    %2114 = vmatprep.subr.mxu0 0.0
    %2115 = vmatpush1.msra.mxu0 0.0
    %2116 = vmatprep.subr.mxu0 0.0
    %2117 = vmatpush1.msra.mxu0 0.0
    %2118 = vmatprep.subr.mxu0 0.0
    %2119 = vmatpush1.msra.mxu0 0.0
    %2120 = vmatprep.subr.mxu0 0.0
    %2121 = vmatpush1.msra.mxu0 0.0
    %2122 = vmatprep.subr.mxu0 0.0
    %2123 = vmatpush1.msra.mxu0 0.0
    %2124 = vmatprep.subr.mxu0 0.0
    %2125 = vmatpush1.msra.mxu0 0.0
    %2126 = vmatprep.subr.mxu0 0.0
    %2127 = vmatpush1.msra.mxu0 0.0
    %2128 = vmatprep.subr.mxu0 0.0
    %2129 = vmatpush1.msra.mxu0 0.0
    %2130 = vmatprep.subr.mxu0 0.0
    %2131 = vmatpush1.msra.mxu0 0.0
    %2132 = vmatprep.subr.mxu0 0.0
    %2133 = vmatpush1.msra.mxu0 0.0
    %2134 = vmatprep.subr.mxu0 0.0
    %2135 = vmatpush1.msra.mxu0 0.0
    %2136 = vmatprep.subr.mxu0 0.0
    %2137 = vmatpush1.msra.mxu0 0.0
    %2138 = vmatprep.subr.mxu0 0.0
    %2139 = vmatpush1.msra.mxu0 0.0
    %2140 = vmatprep.subr.mxu0 0.0
    %2141 = vmatpush1.msra.mxu0 0.0
    %2142 = vmatprep.subr.mxu0 0.0
    %2143 = vmatpush1.msra.mxu0 0.0
    %2144 = vmatprep.subr.mxu0 0.0
    %2145 = vmatpush1.msra.mxu0 0.0
    %2146 = vmatprep.subr.mxu0 0.0
    %2147 = vmatpush1.msra.mxu0 0.0
    %2148 = vmatprep.subr.mxu0 0.0
    %2149 = vmatpush1.msra.mxu0 0.0
    %2150 = vmatprep.subr.mxu0 0.0
    %2151 = vmatpush1.msra.mxu0 0.0
    %2152 = vmatprep.subr.mxu0 0.0
    %2153 = vmatpush1.msra.mxu0 0.0
    %2154 = vmatprep.subr.mxu0 0.0
    %2155 = vmatpush1.msra.mxu0 0.0
    %2156 = vmatprep.mubr.f32.mxu0 0.0
    %2157 = vmatmul.mubr.f32.gmra.mrb[0].mxu0 %v880
    %v2158 = vpop.f32.mrb[0].mxu0
    %v2159 = vadd.f32 0.0, %v2158
    %v2160 = vpop.f32.mrb[0].mxu0
    %2161 = vdwg.mxu0
    %v2162 = vmul.f32 %v2159, 0.001953125
    %v2163 = vadd.f32 %v2162, 1e-05
    %v2164 = vrsqrt.pop %v2163
    %2166 = vrot.lane.b32.xlu0 %v2164, 2
    %v2167 = vpop.permute.xlu0 %2166
    %v2169 = vmul.f32 %v38, %v2167
    %2171 = vset.pattern.permute.xlu0 2
    %2172 = vperm.xlu0 %2171, %v2169
    %v2173 = vpop.permute.xlu0 %2172
    %v2175 = vmul.f32 %v2018, %v2173
    %v2176 = vmul.f32 %v2019, %v2173
    %2177 = vset.pattern.permute.xlu0 3
    %2178 = vperm.xlu0 %2177, %v38
    %v2179 = vpop.permute.xlu0 %2178
    %v2181 = vadd.f32 %v2175, %v2179
    %v2182 = vadd.f32 %v2176, %v2179
    %v2183 = vstv %s52
    %v2184 = vmul.f32 %v2181, %v2183
    %v2185 = vmul.f32 %v2182, %v2183
    %v2186 = vstv %s51
    %v2187 = vmul.f32 %v36, %v2186
    %v2188 = vmul.f32 %v37, %v2186
    %v2189 = vadd.f32 %v2184, %v2187
    %v2190 = vadd.f32 %v2185, %v2188
    %v2191 = vmax.f32 %v2189, 0.0
    %v2192 = vmax.f32 %v2190, 0.0
    %s2193 = sld [smem:[#allocation2 + $0x2]]
    %s2194 = sld [smem:[#allocation2 + $0x3]]
    %2195 = vrot.lane.b32.xlu0 %v2191, 1
    %v2196 = vpop.permute.xlu0 %2195
    %2197 = vrot.lane.b32.xlu0 %v2192, 1
    %v2198 = vpop.permute.xlu0 %2197
    %v2199 = vsel %vm59, %v2196, %v2198
    %v2200 = vsel %vm59, %v2198, %v2196
    %v2201 = vmul.f32 %v2200, %v40
    %v2202 = vmul.f32 %v2199, %v41
    %2203 = vrot.lane.b32.xlu0 %v2191, 127
    %v2204 = vpop.permute.xlu0 %2203
    %2205 = vrot.lane.b32.xlu0 %v2192, 127
    %v2206 = vpop.permute.xlu0 %2205
    %v2207 = vsel %vm68, %v2204, %v2206
    %v2208 = vsel %vm68, %v2206, %v2204
    %v2209 = vmul.f32 %v2207, %v43
    %v2210 = vmul.f32 %v2208, %v44
    %s2211 = scalar_lea.vmem %s1, 168
    %v2212 = vld [vmem:[%s2211] sm:$0xff]
    %s2213 = scalar_lea.vmem %s1, 176
    %v2214 = vld [vmem:[%s2213] sm:$0xff]
    %v2216 = vsel %vm77, %v2214, 0
    %2218 = vmatprep.subr.mxu0 %v2192
    %2219 = vmatpush1.msra.mxu0 %v2191
    %2220 = vmatprep.subr.mxu0 0.0
    %2221 = vmatpush1.msra.mxu0 0.0
    %2222 = vmatprep.subr.mxu0 0.0
    %2223 = vmatpush1.msra.mxu0 0.0
    %2224 = vmatprep.subr.mxu0 0.0
    %2225 = vmatpush1.msra.mxu0 0.0
    %2226 = vmatprep.subr.mxu0 0.0
    %2227 = vmatpush1.msra.mxu0 0.0
    %2228 = vmatprep.subr.mxu0 0.0
    %2229 = vmatpush1.msra.mxu0 0.0
    %2230 = vmatprep.subr.mxu0 0.0
    %2231 = vmatpush1.msra.mxu0 0.0
    %2232 = vmatprep.subr.mxu0 0.0
    %2233 = vmatpush1.msra.mxu0 0.0
    %2234 = vmatprep.subr.mxu0 0.0
    %2235 = vmatpush1.msra.mxu0 0.0
    %2236 = vmatprep.subr.mxu0 0.0
    %2237 = vmatpush1.msra.mxu0 0.0
    %2238 = vmatprep.subr.mxu0 0.0
    %2239 = vmatpush1.msra.mxu0 0.0
    %2240 = vmatprep.subr.mxu0 0.0
    %2241 = vmatpush1.msra.mxu0 0.0
    %2242 = vmatprep.subr.mxu0 0.0
    %2243 = vmatpush1.msra.mxu0 0.0
    %2244 = vmatprep.subr.mxu0 0.0
    %2245 = vmatpush1.msra.mxu0 0.0
    %2246 = vmatprep.subr.mxu0 0.0
    %2247 = vmatpush1.msra.mxu0 0.0
    %2248 = vmatprep.subr.mxu0 0.0
    %2249 = vmatpush1.msra.mxu0 0.0
    %2250 = vmatprep.subr.mxu0 0.0
    %2251 = vmatpush1.msra.mxu0 0.0
    %2252 = vmatprep.subr.mxu0 0.0
    %2253 = vmatpush1.msra.mxu0 0.0
    %2254 = vmatprep.subr.mxu0 0.0
    %2255 = vmatpush1.msra.mxu0 0.0
    %2256 = vmatprep.subr.mxu0 0.0
    %2257 = vmatpush1.msra.mxu0 0.0
    %2258 = vmatprep.subr.mxu0 0.0
    %2259 = vmatpush1.msra.mxu0 0.0
    %2260 = vmatprep.subr.mxu0 0.0
    %2261 = vmatpush1.msra.mxu0 0.0
    %2262 = vmatprep.subr.mxu0 0.0
    %2263 = vmatpush1.msra.mxu0 0.0
    %2264 = vmatprep.subr.mxu0 0.0
    %2265 = vmatpush1.msra.mxu0 0.0
    %2266 = vmatprep.subr.mxu0 0.0
    %2267 = vmatpush1.msra.mxu0 0.0
    %2268 = vmatprep.subr.mxu0 0.0
    %2269 = vmatpush1.msra.mxu0 0.0
    %2270 = vmatprep.subr.mxu0 0.0
    %2271 = vmatpush1.msra.mxu0 0.0
    %2272 = vmatprep.subr.mxu0 0.0
    %2273 = vmatpush1.msra.mxu0 0.0
    %2274 = vmatprep.subr.mxu0 0.0
    %2275 = vmatpush1.msra.mxu0 0.0
    %2276 = vmatprep.subr.mxu0 0.0
    %2277 = vmatpush1.msra.mxu0 0.0
    %2278 = vmatprep.subr.mxu0 0.0
    %2279 = vmatpush1.msra.mxu0 0.0
    %2280 = vmatprep.subr.mxu0 0.0
    %2281 = vmatpush1.msra.mxu0 0.0
    %2282 = vmatprep.mubr.f32.mxu0 0.0
    %2283 = vmatmul.mubr.f32.gmra.mrb[0].mxu0 %v2216
    %v2284 = vpop.f32.mrb[0].mxu0
    %v2285 = vadd.f32 0.0, %v2284
    %v2286 = vpop.f32.mrb[0].mxu0
    %v2287 = vadd.f32 0.0, %v2286
    %2288 = vdwg.mxu0
    %v2290 = vsel %vm77, %v2212, 0
    %2292 = vmatprep.subr.mxu0 %v2202
    %2293 = vmatpush1.msra.mxu0 %v2201
    %2294 = vmatprep.subr.mxu0 0.0
    %2295 = vmatpush1.msra.mxu0 0.0
    %2296 = vmatprep.subr.mxu0 0.0
    %2297 = vmatpush1.msra.mxu0 0.0
    %2298 = vmatprep.subr.mxu0 0.0
    %2299 = vmatpush1.msra.mxu0 0.0
    %2300 = vmatprep.subr.mxu0 0.0
    %2301 = vmatpush1.msra.mxu0 0.0
    %2302 = vmatprep.subr.mxu0 0.0
    %2303 = vmatpush1.msra.mxu0 0.0
    %2304 = vmatprep.subr.mxu0 0.0
    %2305 = vmatpush1.msra.mxu0 0.0
    %2306 = vmatprep.subr.mxu0 0.0
    %2307 = vmatpush1.msra.mxu0 0.0
    %2308 = vmatprep.subr.mxu0 0.0
    %2309 = vmatpush1.msra.mxu0 0.0
    %2310 = vmatprep.subr.mxu0 0.0
    %2311 = vmatpush1.msra.mxu0 0.0
    %2312 = vmatprep.subr.mxu0 0.0
    %2313 = vmatpush1.msra.mxu0 0.0
    %2314 = vmatprep.subr.mxu0 0.0
    %2315 = vmatpush1.msra.mxu0 0.0
    %2316 = vmatprep.subr.mxu0 0.0
    %2317 = vmatpush1.msra.mxu0 0.0
    %2318 = vmatprep.subr.mxu0 0.0
    %2319 = vmatpush1.msra.mxu0 0.0
    %2320 = vmatprep.subr.mxu0 0.0
    %2321 = vmatpush1.msra.mxu0 0.0
    %2322 = vmatprep.subr.mxu0 0.0
    %2323 = vmatpush1.msra.mxu0 0.0
    %2324 = vmatprep.subr.mxu0 0.0
    %2325 = vmatpush1.msra.mxu0 0.0
    %2326 = vmatprep.subr.mxu0 0.0
    %2327 = vmatpush1.msra.mxu0 0.0
    %2328 = vmatprep.subr.mxu0 0.0
    %2329 = vmatpush1.msra.mxu0 0.0
    %2330 = vmatprep.subr.mxu0 0.0
    %2331 = vmatpush1.msra.mxu0 0.0
    %2332 = vmatprep.subr.mxu0 0.0
    %2333 = vmatpush1.msra.mxu0 0.0
    %2334 = vmatprep.subr.mxu0 0.0
    %2335 = vmatpush1.msra.mxu0 0.0
    %2336 = vmatprep.subr.mxu0 0.0
    %2337 = vmatpush1.msra.mxu0 0.0
    %2338 = vmatprep.subr.mxu0 0.0
    %2339 = vmatpush1.msra.mxu0 0.0
    %2340 = vmatprep.subr.mxu0 0.0
    %2341 = vmatpush1.msra.mxu0 0.0
    %2342 = vmatprep.subr.mxu0 0.0
    %2343 = vmatpush1.msra.mxu0 0.0
    %2344 = vmatprep.subr.mxu0 0.0
    %2345 = vmatpush1.msra.mxu0 0.0
    %2346 = vmatprep.subr.mxu0 0.0
    %2347 = vmatpush1.msra.mxu0 0.0
    %2348 = vmatprep.subr.mxu0 0.0
    %2349 = vmatpush1.msra.mxu0 0.0
    %2350 = vmatprep.subr.mxu0 0.0
    %2351 = vmatpush1.msra.mxu0 0.0
    %2352 = vmatprep.subr.mxu0 0.0
    %2353 = vmatpush1.msra.mxu0 0.0
    %2354 = vmatprep.subr.mxu0 0.0
    %2355 = vmatpush1.msra.mxu0 0.0
    %2356 = vmatprep.mubr.f32.mxu0 0.0
    %2357 = vmatmul.mubr.f32.gmra.mrb[0].mxu0 %v2290
    %v2358 = vpop.f32.mrb[0].mxu0
    %v2359 = vadd.f32 %v2285, %v2358
    %v2360 = vpop.f32.mrb[0].mxu0
    %v2361 = vadd.f32 %v2287, %v2360
    %2362 = vdwg.mxu0
    %s2363 = scalar_lea.vmem %s1, 184
    %v2364 = vld [vmem:[%s2363] sm:$0xff]
    %v2366 = vsel %vm77, %v2364, 0
    %2368 = vmatprep.subr.mxu0 %v2210
    %2369 = vmatpush1.msra.mxu0 %v2209
    %2370 = vmatprep.subr.mxu0 0.0
    %2371 = vmatpush1.msra.mxu0 0.0
    %2372 = vmatprep.subr.mxu0 0.0
    %2373 = vmatpush1.msra.mxu0 0.0
    %2374 = vmatprep.subr.mxu0 0.0
    %2375 = vmatpush1.msra.mxu0 0.0
    %2376 = vmatprep.subr.mxu0 0.0
    %2377 = vmatpush1.msra.mxu0 0.0
    %2378 = vmatprep.subr.mxu0 0.0
    %2379 = vmatpush1.msra.mxu0 0.0
    %2380 = vmatprep.subr.mxu0 0.0
    %2381 = vmatpush1.msra.mxu0 0.0
    %2382 = vmatprep.subr.mxu0 0.0
    %2383 = vmatpush1.msra.mxu0 0.0
    %2384 = vmatprep.subr.mxu0 0.0
    %2385 = vmatpush1.msra.mxu0 0.0
    %2386 = vmatprep.subr.mxu0 0.0
    %2387 = vmatpush1.msra.mxu0 0.0
    %2388 = vmatprep.subr.mxu0 0.0
    %2389 = vmatpush1.msra.mxu0 0.0
    %2390 = vmatprep.subr.mxu0 0.0
    %2391 = vmatpush1.msra.mxu0 0.0
    %2392 = vmatprep.subr.mxu0 0.0
    %2393 = vmatpush1.msra.mxu0 0.0
    %2394 = vmatprep.subr.mxu0 0.0
    %2395 = vmatpush1.msra.mxu0 0.0
    %2396 = vmatprep.subr.mxu0 0.0
    %2397 = vmatpush1.msra.mxu0 0.0
    %2398 = vmatprep.subr.mxu0 0.0
    %2399 = vmatpush1.msra.mxu0 0.0
    %2400 = vmatprep.subr.mxu0 0.0
    %2401 = vmatpush1.msra.mxu0 0.0
    %2402 = vmatprep.subr.mxu0 0.0
    %2403 = vmatpush1.msra.mxu0 0.0
    %2404 = vmatprep.subr.mxu0 0.0
    %2405 = vmatpush1.msra.mxu0 0.0
    %2406 = vmatprep.subr.mxu0 0.0
    %2407 = vmatpush1.msra.mxu0 0.0
    %2408 = vmatprep.subr.mxu0 0.0
    %2409 = vmatpush1.msra.mxu0 0.0
    %2410 = vmatprep.subr.mxu0 0.0
    %2411 = vmatpush1.msra.mxu0 0.0
    %2412 = vmatprep.subr.mxu0 0.0
    %2413 = vmatpush1.msra.mxu0 0.0
    %2414 = vmatprep.subr.mxu0 0.0
    %2415 = vmatpush1.msra.mxu0 0.0
    %2416 = vmatprep.subr.mxu0 0.0
    %2417 = vmatpush1.msra.mxu0 0.0
    %2418 = vmatprep.subr.mxu0 0.0
    %2419 = vmatpush1.msra.mxu0 0.0
    %2420 = vmatprep.subr.mxu0 0.0
    %2421 = vmatpush1.msra.mxu0 0.0
    %2422 = vmatprep.subr.mxu0 0.0
    %2423 = vmatpush1.msra.mxu0 0.0
    %2424 = vmatprep.subr.mxu0 0.0
    %2425 = vmatpush1.msra.mxu0 0.0
    %2426 = vmatprep.subr.mxu0 0.0
    %2427 = vmatpush1.msra.mxu0 0.0
    %2428 = vmatprep.subr.mxu0 0.0
    %2429 = vmatpush1.msra.mxu0 0.0
    %2430 = vmatprep.subr.mxu0 0.0
    %2431 = vmatpush1.msra.mxu0 0.0
    %2432 = vmatprep.mubr.f32.mxu0 0.0
    %2433 = vmatmul.mubr.f32.gmra.mrb[0].mxu0 %v2366
    %v2434 = vpop.f32.mrb[0].mxu0
    %v2435 = vadd.f32 0.0, %v2434
    %v2436 = vpop.f32.mrb[0].mxu0
    %v2437 = vadd.f32 0.0, %v2436
    %2438 = vdwg.mxu0
    %v2439 = vadd.f32 %v2359, %v2435
    %v2440 = vadd.f32 %v2361, %v2437
    %s2441 = scalar_lea.vmem %s1, 144
    %v2442 = vld [vmem:[%s2441] sm:$0xff]
    %2443 = vrot.lane.b32.xlu0 %v2201, 16
    %v2444 = vpop.permute.xlu0 %2443
    %2445 = vrot.lane.b32.xlu0 %v2202, 16
    %v2446 = vpop.permute.xlu0 %2445
    %v2447 = vsel %vm309, %v2444, %v2446
    %v2448 = vsel %vm309, %v2446, %v2444
    %s2449 = scalar_lea.vmem %s1, 152
    %v2450 = vld [vmem:[%s2449] sm:$0xff]
    %2451 = vrot.lane.b32.xlu0 %v2191, 16
    %v2452 = vpop.permute.xlu0 %2451
    %2453 = vrot.lane.b32.xlu0 %v2192, 16
    %v2454 = vpop.permute.xlu0 %2453
    %v2455 = vsel %vm309, %v2452, %v2454
    %v2456 = vsel %vm309, %v2454, %v2452
    %v2458 = vsel %vm77, %v2450, 0
    %2460 = vmatprep.subr.mxu0 %v2455
    %2461 = vmatpush1.msra.mxu0 %v2456
    %2462 = vmatprep.subr.mxu0 0.0
    %2463 = vmatpush1.msra.mxu0 0.0
    %2464 = vmatprep.subr.mxu0 0.0
    %2465 = vmatpush1.msra.mxu0 0.0
    %2466 = vmatprep.subr.mxu0 0.0
    %2467 = vmatpush1.msra.mxu0 0.0
    %2468 = vmatprep.subr.mxu0 0.0
    %2469 = vmatpush1.msra.mxu0 0.0
    %2470 = vmatprep.subr.mxu0 0.0
    %2471 = vmatpush1.msra.mxu0 0.0
    %2472 = vmatprep.subr.mxu0 0.0
    %2473 = vmatpush1.msra.mxu0 0.0
    %2474 = vmatprep.subr.mxu0 0.0
    %2475 = vmatpush1.msra.mxu0 0.0
    %2476 = vmatprep.subr.mxu0 0.0
    %2477 = vmatpush1.msra.mxu0 0.0
    %2478 = vmatprep.subr.mxu0 0.0
    %2479 = vmatpush1.msra.mxu0 0.0
    %2480 = vmatprep.subr.mxu0 0.0
    %2481 = vmatpush1.msra.mxu0 0.0
    %2482 = vmatprep.subr.mxu0 0.0
    %2483 = vmatpush1.msra.mxu0 0.0
    %2484 = vmatprep.subr.mxu0 0.0
    %2485 = vmatpush1.msra.mxu0 0.0
    %2486 = vmatprep.subr.mxu0 0.0
    %2487 = vmatpush1.msra.mxu0 0.0
    %2488 = vmatprep.subr.mxu0 0.0
    %2489 = vmatpush1.msra.mxu0 0.0
    %2490 = vmatprep.subr.mxu0 0.0
    %2491 = vmatpush1.msra.mxu0 0.0
    %2492 = vmatprep.subr.mxu0 0.0
    %2493 = vmatpush1.msra.mxu0 0.0
    %2494 = vmatprep.subr.mxu0 0.0
    %2495 = vmatpush1.msra.mxu0 0.0
    %2496 = vmatprep.subr.mxu0 0.0
    %2497 = vmatpush1.msra.mxu0 0.0
    %2498 = vmatprep.subr.mxu0 0.0
    %2499 = vmatpush1.msra.mxu0 0.0
    %2500 = vmatprep.subr.mxu0 0.0
    %2501 = vmatpush1.msra.mxu0 0.0
    %2502 = vmatprep.subr.mxu0 0.0
    %2503 = vmatpush1.msra.mxu0 0.0
    %2504 = vmatprep.subr.mxu0 0.0
    %2505 = vmatpush1.msra.mxu0 0.0
    %2506 = vmatprep.subr.mxu0 0.0
    %2507 = vmatpush1.msra.mxu0 0.0
    %2508 = vmatprep.subr.mxu0 0.0
    %2509 = vmatpush1.msra.mxu0 0.0
    %2510 = vmatprep.subr.mxu0 0.0
    %2511 = vmatpush1.msra.mxu0 0.0
    %2512 = vmatprep.subr.mxu0 0.0
    %2513 = vmatpush1.msra.mxu0 0.0
    %2514 = vmatprep.subr.mxu0 0.0
    %2515 = vmatpush1.msra.mxu0 0.0
    %2516 = vmatprep.subr.mxu0 0.0
    %2517 = vmatpush1.msra.mxu0 0.0
    %2518 = vmatprep.subr.mxu0 0.0
    %2519 = vmatpush1.msra.mxu0 0.0
    %2520 = vmatprep.subr.mxu0 0.0
    %2521 = vmatpush1.msra.mxu0 0.0
    %2522 = vmatprep.subr.mxu0 0.0
    %2523 = vmatpush1.msra.mxu0 0.0
    %2524 = vmatprep.mubr.f32.mxu0 0.0
    %2525 = vmatmul.mubr.f32.gmra.mrb[0].mxu0 %v2458
    %v2526 = vpop.f32.mrb[0].mxu0
    %v2527 = vadd.f32 0.0, %v2526
    %v2528 = vpop.f32.mrb[0].mxu0
    %v2529 = vadd.f32 0.0, %v2528
    %2530 = vdwg.mxu0
    %v2532 = vsel %vm77, %v2442, 0
    %2534 = vmatprep.subr.mxu0 %v2447
    %2535 = vmatpush1.msra.mxu0 %v2448
    %2536 = vmatprep.subr.mxu0 0.0
    %2537 = vmatpush1.msra.mxu0 0.0
    %2538 = vmatprep.subr.mxu0 0.0
    %2539 = vmatpush1.msra.mxu0 0.0
    %2540 = vmatprep.subr.mxu0 0.0
    %2541 = vmatpush1.msra.mxu0 0.0
    %2542 = vmatprep.subr.mxu0 0.0
    %2543 = vmatpush1.msra.mxu0 0.0
    %2544 = vmatprep.subr.mxu0 0.0
    %2545 = vmatpush1.msra.mxu0 0.0
    %2546 = vmatprep.subr.mxu0 0.0
    %2547 = vmatpush1.msra.mxu0 0.0
    %2548 = vmatprep.subr.mxu0 0.0
    %2549 = vmatpush1.msra.mxu0 0.0
    %2550 = vmatprep.subr.mxu0 0.0
    %2551 = vmatpush1.msra.mxu0 0.0
    %2552 = vmatprep.subr.mxu0 0.0
    %2553 = vmatpush1.msra.mxu0 0.0
    %2554 = vmatprep.subr.mxu0 0.0
    %2555 = vmatpush1.msra.mxu0 0.0
    %2556 = vmatprep.subr.mxu0 0.0
    %2557 = vmatpush1.msra.mxu0 0.0
    %2558 = vmatprep.subr.mxu0 0.0
    %2559 = vmatpush1.msra.mxu0 0.0
    %2560 = vmatprep.subr.mxu0 0.0
    %2561 = vmatpush1.msra.mxu0 0.0
    %2562 = vmatprep.subr.mxu0 0.0
    %2563 = vmatpush1.msra.mxu0 0.0
    %2564 = vmatprep.subr.mxu0 0.0
    %2565 = vmatpush1.msra.mxu0 0.0
    %2566 = vmatprep.subr.mxu0 0.0
    %2567 = vmatpush1.msra.mxu0 0.0
    %2568 = vmatprep.subr.mxu0 0.0
    %2569 = vmatpush1.msra.mxu0 0.0
    %2570 = vmatprep.subr.mxu0 0.0
    %2571 = vmatpush1.msra.mxu0 0.0
    %2572 = vmatprep.subr.mxu0 0.0
    %2573 = vmatpush1.msra.mxu0 0.0
    %2574 = vmatprep.subr.mxu0 0.0
    %2575 = vmatpush1.msra.mxu0 0.0
    %2576 = vmatprep.subr.mxu0 0.0
    %2577 = vmatpush1.msra.mxu0 0.0
    %2578 = vmatprep.subr.mxu0 0.0
    %2579 = vmatpush1.msra.mxu0 0.0
    %2580 = vmatprep.subr.mxu0 0.0
    %2581 = vmatpush1.msra.mxu0 0.0
    %2582 = vmatprep.subr.mxu0 0.0
    %2583 = vmatpush1.msra.mxu0 0.0
    %2584 = vmatprep.subr.mxu0 0.0
    %2585 = vmatpush1.msra.mxu0 0.0
    %2586 = vmatprep.subr.mxu0 0.0
    %2587 = vmatpush1.msra.mxu0 0.0
    %2588 = vmatprep.subr.mxu0 0.0
    %2589 = vmatpush1.msra.mxu0 0.0
    %2590 = vmatprep.subr.mxu0 0.0
    %2591 = vmatpush1.msra.mxu0 0.0
    %2592 = vmatprep.subr.mxu0 0.0
    %2593 = vmatpush1.msra.mxu0 0.0
    %2594 = vmatprep.subr.mxu0 0.0
    %2595 = vmatpush1.msra.mxu0 0.0
    %2596 = vmatprep.subr.mxu0 0.0
    %2597 = vmatpush1.msra.mxu0 0.0
    %2598 = vmatprep.mubr.f32.mxu0 0.0
    %2599 = vmatmul.mubr.f32.gmra.mrb[0].mxu0 %v2532
    %v2600 = vpop.f32.mrb[0].mxu0
    %v2601 = vadd.f32 %v2527, %v2600
    %v2602 = vpop.f32.mrb[0].mxu0
    %v2603 = vadd.f32 %v2529, %v2602
    %2604 = vdwg.mxu0
    %s2605 = scalar_lea.vmem %s1, 160
    %v2606 = vld [vmem:[%s2605] sm:$0xff]
    %2607 = vrot.lane.b32.xlu0 %v2209, 16
    %v2608 = vpop.permute.xlu0 %2607
    %2609 = vrot.lane.b32.xlu0 %v2210, 16
    %v2610 = vpop.permute.xlu0 %2609
    %v2611 = vsel %vm309, %v2608, %v2610
    %v2612 = vsel %vm309, %v2610, %v2608
    %v2614 = vsel %vm77, %v2606, 0
    %2616 = vmatprep.subr.mxu0 %v2611
    %2617 = vmatpush1.msra.mxu0 %v2612
    %2618 = vmatprep.subr.mxu0 0.0
    %2619 = vmatpush1.msra.mxu0 0.0
    %2620 = vmatprep.subr.mxu0 0.0
    %2621 = vmatpush1.msra.mxu0 0.0
    %2622 = vmatprep.subr.mxu0 0.0
    %2623 = vmatpush1.msra.mxu0 0.0
    %2624 = vmatprep.subr.mxu0 0.0
    %2625 = vmatpush1.msra.mxu0 0.0
    %2626 = vmatprep.subr.mxu0 0.0
    %2627 = vmatpush1.msra.mxu0 0.0
    %2628 = vmatprep.subr.mxu0 0.0
    %2629 = vmatpush1.msra.mxu0 0.0
    %2630 = vmatprep.subr.mxu0 0.0
    %2631 = vmatpush1.msra.mxu0 0.0
    %2632 = vmatprep.subr.mxu0 0.0
    %2633 = vmatpush1.msra.mxu0 0.0
    %2634 = vmatprep.subr.mxu0 0.0
    %2635 = vmatpush1.msra.mxu0 0.0
    %2636 = vmatprep.subr.mxu0 0.0
    %2637 = vmatpush1.msra.mxu0 0.0
    %2638 = vmatprep.subr.mxu0 0.0
    %2639 = vmatpush1.msra.mxu0 0.0
    %2640 = vmatprep.subr.mxu0 0.0
    %2641 = vmatpush1.msra.mxu0 0.0
    %2642 = vmatprep.subr.mxu0 0.0
    %2643 = vmatpush1.msra.mxu0 0.0
    %2644 = vmatprep.subr.mxu0 0.0
    %2645 = vmatpush1.msra.mxu0 0.0
    %2646 = vmatprep.subr.mxu0 0.0
    %2647 = vmatpush1.msra.mxu0 0.0
    %2648 = vmatprep.subr.mxu0 0.0
    %2649 = vmatpush1.msra.mxu0 0.0
    %2650 = vmatprep.subr.mxu0 0.0
    %2651 = vmatpush1.msra.mxu0 0.0
    %2652 = vmatprep.subr.mxu0 0.0
    %2653 = vmatpush1.msra.mxu0 0.0
    %2654 = vmatprep.subr.mxu0 0.0
    %2655 = vmatpush1.msra.mxu0 0.0
    %2656 = vmatprep.subr.mxu0 0.0
    %2657 = vmatpush1.msra.mxu0 0.0
    %2658 = vmatprep.subr.mxu0 0.0
    %2659 = vmatpush1.msra.mxu0 0.0
    %2660 = vmatprep.subr.mxu0 0.0
    %2661 = vmatpush1.msra.mxu0 0.0
    %2662 = vmatprep.subr.mxu0 0.0
    %2663 = vmatpush1.msra.mxu0 0.0
    %2664 = vmatprep.subr.mxu0 0.0
    %2665 = vmatpush1.msra.mxu0 0.0
    %2666 = vmatprep.subr.mxu0 0.0
    %2667 = vmatpush1.msra.mxu0 0.0
    %2668 = vmatprep.subr.mxu0 0.0
    %2669 = vmatpush1.msra.mxu0 0.0
    %2670 = vmatprep.subr.mxu0 0.0
    %2671 = vmatpush1.msra.mxu0 0.0
    %2672 = vmatprep.subr.mxu0 0.0
    %2673 = vmatpush1.msra.mxu0 0.0
    %2674 = vmatprep.subr.mxu0 0.0
    %2675 = vmatpush1.msra.mxu0 0.0
    %2676 = vmatprep.subr.mxu0 0.0
    %2677 = vmatpush1.msra.mxu0 0.0
    %2678 = vmatprep.subr.mxu0 0.0
    %2679 = vmatpush1.msra.mxu0 0.0
    %2680 = vmatprep.mubr.f32.mxu0 0.0
    %2681 = vmatmul.mubr.f32.gmra.mrb[0].mxu0 %v2614
    %v2682 = vpop.f32.mrb[0].mxu0
    %v2683 = vadd.f32 0.0, %v2682
    %v2684 = vpop.f32.mrb[0].mxu0
    %v2685 = vadd.f32 0.0, %v2684
    %2686 = vdwg.mxu0
    %v2687 = vadd.f32 %v2601, %v2683
    %v2688 = vadd.f32 %v2603, %v2685
    %v2689 = vmul.f32 %v2687, %v46
    %v2690 = vmul.f32 %v2688, %v47
    %v2691 = vadd.f32 %v2439, %v2689
    %v2692 = vadd.f32 %v2440, %v2690
    %s2693 = scalar_lea.vmem %s1, 192
    %v2694 = vld [vmem:[%s2693] sm:$0xff]
    %2695 = vrot.lane.b32.xlu0 %v2201, 112
    %v2696 = vpop.permute.xlu0 %2695
    %2697 = vrot.lane.b32.xlu0 %v2202, 112
    %v2698 = vpop.permute.xlu0 %2697
    %v2699 = vsel %vm562, %v2696, %v2698
    %v2700 = vsel %vm562, %v2698, %v2696
    %s2701 = scalar_lea.vmem %s1, 200
    %v2702 = vld [vmem:[%s2701] sm:$0xff]
    %2703 = vrot.lane.b32.xlu0 %v2191, 112
    %v2704 = vpop.permute.xlu0 %2703
    %2705 = vrot.lane.b32.xlu0 %v2192, 112
    %v2706 = vpop.permute.xlu0 %2705
    %v2707 = vsel %vm562, %v2704, %v2706
    %v2708 = vsel %vm562, %v2706, %v2704
    %v2710 = vsel %vm77, %v2702, 0
    %2712 = vmatprep.subr.mxu0 %v2708
    %2713 = vmatpush1.msra.mxu0 %v2707
    %2714 = vmatprep.subr.mxu0 0.0
    %2715 = vmatpush1.msra.mxu0 0.0
    %2716 = vmatprep.subr.mxu0 0.0
    %2717 = vmatpush1.msra.mxu0 0.0
    %2718 = vmatprep.subr.mxu0 0.0
    %2719 = vmatpush1.msra.mxu0 0.0
    %2720 = vmatprep.subr.mxu0 0.0
    %2721 = vmatpush1.msra.mxu0 0.0
    %2722 = vmatprep.subr.mxu0 0.0
    %2723 = vmatpush1.msra.mxu0 0.0
    %2724 = vmatprep.subr.mxu0 0.0
    %2725 = vmatpush1.msra.mxu0 0.0
    %2726 = vmatprep.subr.mxu0 0.0
    %2727 = vmatpush1.msra.mxu0 0.0
    %2728 = vmatprep.subr.mxu0 0.0
    %2729 = vmatpush1.msra.mxu0 0.0
    %2730 = vmatprep.subr.mxu0 0.0
    %2731 = vmatpush1.msra.mxu0 0.0
    %2732 = vmatprep.subr.mxu0 0.0
    %2733 = vmatpush1.msra.mxu0 0.0
    %2734 = vmatprep.subr.mxu0 0.0
    %2735 = vmatpush1.msra.mxu0 0.0
    %2736 = vmatprep.subr.mxu0 0.0
    %2737 = vmatpush1.msra.mxu0 0.0
    %2738 = vmatprep.subr.mxu0 0.0
    %2739 = vmatpush1.msra.mxu0 0.0
    %2740 = vmatprep.subr.mxu0 0.0
    %2741 = vmatpush1.msra.mxu0 0.0
    %2742 = vmatprep.subr.mxu0 0.0
    %2743 = vmatpush1.msra.mxu0 0.0
    %2744 = vmatprep.subr.mxu0 0.0
    %2745 = vmatpush1.msra.mxu0 0.0
    %2746 = vmatprep.subr.mxu0 0.0
    %2747 = vmatpush1.msra.mxu0 0.0
    %2748 = vmatprep.subr.mxu0 0.0
    %2749 = vmatpush1.msra.mxu0 0.0
    %2750 = vmatprep.subr.mxu0 0.0
    %2751 = vmatpush1.msra.mxu0 0.0
    %2752 = vmatprep.subr.mxu0 0.0
    %2753 = vmatpush1.msra.mxu0 0.0
    %2754 = vmatprep.subr.mxu0 0.0
    %2755 = vmatpush1.msra.mxu0 0.0
    %2756 = vmatprep.subr.mxu0 0.0
    %2757 = vmatpush1.msra.mxu0 0.0
    %2758 = vmatprep.subr.mxu0 0.0
    %2759 = vmatpush1.msra.mxu0 0.0
    %2760 = vmatprep.subr.mxu0 0.0
    %2761 = vmatpush1.msra.mxu0 0.0
    %2762 = vmatprep.subr.mxu0 0.0
    %2763 = vmatpush1.msra.mxu0 0.0
    %2764 = vmatprep.subr.mxu0 0.0
    %2765 = vmatpush1.msra.mxu0 0.0
    %2766 = vmatprep.subr.mxu0 0.0
    %2767 = vmatpush1.msra.mxu0 0.0
    %2768 = vmatprep.subr.mxu0 0.0
    %2769 = vmatpush1.msra.mxu0 0.0
    %2770 = vmatprep.subr.mxu0 0.0
    %2771 = vmatpush1.msra.mxu0 0.0
    %2772 = vmatprep.subr.mxu0 0.0
    %2773 = vmatpush1.msra.mxu0 0.0
    %2774 = vmatprep.subr.mxu0 0.0
    %2775 = vmatpush1.msra.mxu0 0.0
    %2776 = vmatprep.mubr.f32.mxu0 0.0
    %2777 = vmatmul.mubr.f32.gmra.mrb[0].mxu0 %v2710
    %v2778 = vpop.f32.mrb[0].mxu0
    %v2779 = vadd.f32 0.0, %v2778
    %v2780 = vpop.f32.mrb[0].mxu0
    %v2781 = vadd.f32 0.0, %v2780
    %2782 = vdwg.mxu0
    %v2784 = vsel %vm77, %v2694, 0
    %2786 = vmatprep.subr.mxu0 %v2700
    %2787 = vmatpush1.msra.mxu0 %v2699
    %2788 = vmatprep.subr.mxu0 0.0
    %2789 = vmatpush1.msra.mxu0 0.0
    %2790 = vmatprep.subr.mxu0 0.0
    %2791 = vmatpush1.msra.mxu0 0.0
    %2792 = vmatprep.subr.mxu0 0.0
    %2793 = vmatpush1.msra.mxu0 0.0
    %2794 = vmatprep.subr.mxu0 0.0
    %2795 = vmatpush1.msra.mxu0 0.0
    %2796 = vmatprep.subr.mxu0 0.0
    %2797 = vmatpush1.msra.mxu0 0.0
    %2798 = vmatprep.subr.mxu0 0.0
    %2799 = vmatpush1.msra.mxu0 0.0
    %2800 = vmatprep.subr.mxu0 0.0
    %2801 = vmatpush1.msra.mxu0 0.0
    %2802 = vmatprep.subr.mxu0 0.0
    %2803 = vmatpush1.msra.mxu0 0.0
    %2804 = vmatprep.subr.mxu0 0.0
    %2805 = vmatpush1.msra.mxu0 0.0
    %2806 = vmatprep.subr.mxu0 0.0
    %2807 = vmatpush1.msra.mxu0 0.0
    %2808 = vmatprep.subr.mxu0 0.0
    %2809 = vmatpush1.msra.mxu0 0.0
    %2810 = vmatprep.subr.mxu0 0.0
    %2811 = vmatpush1.msra.mxu0 0.0
    %2812 = vmatprep.subr.mxu0 0.0
    %2813 = vmatpush1.msra.mxu0 0.0
    %2814 = vmatprep.subr.mxu0 0.0
    %2815 = vmatpush1.msra.mxu0 0.0
    %2816 = vmatprep.subr.mxu0 0.0
    %2817 = vmatpush1.msra.mxu0 0.0
    %2818 = vmatprep.subr.mxu0 0.0
    %2819 = vmatpush1.msra.mxu0 0.0
    %2820 = vmatprep.subr.mxu0 0.0
    %2821 = vmatpush1.msra.mxu0 0.0
    %2822 = vmatprep.subr.mxu0 0.0
    %2823 = vmatpush1.msra.mxu0 0.0
    %2824 = vmatprep.subr.mxu0 0.0
    %2825 = vmatpush1.msra.mxu0 0.0
    %2826 = vmatprep.subr.mxu0 0.0
    %2827 = vmatpush1.msra.mxu0 0.0
    %2828 = vmatprep.subr.mxu0 0.0
    %2829 = vmatpush1.msra.mxu0 0.0
    %2830 = vmatprep.subr.mxu0 0.0
    %2831 = vmatpush1.msra.mxu0 0.0
    %2832 = vmatprep.subr.mxu0 0.0
    %2833 = vmatpush1.msra.mxu0 0.0
    %2834 = vmatprep.subr.mxu0 0.0
    %2835 = vmatpush1.msra.mxu0 0.0
    %2836 = vmatprep.subr.mxu0 0.0
    %2837 = vmatpush1.msra.mxu0 0.0
    %2838 = vmatprep.subr.mxu0 0.0
    %2839 = vmatpush1.msra.mxu0 0.0
    %2840 = vmatprep.subr.mxu0 0.0
    %2841 = vmatpush1.msra.mxu0 0.0
    %2842 = vmatprep.subr.mxu0 0.0
    %2843 = vmatpush1.msra.mxu0 0.0
    %2844 = vmatprep.subr.mxu0 0.0
    %2845 = vmatpush1.msra.mxu0 0.0
    %2846 = vmatprep.subr.mxu0 0.0
    %2847 = vmatpush1.msra.mxu0 0.0
    %2848 = vmatprep.subr.mxu0 0.0
    %2849 = vmatpush1.msra.mxu0 0.0
    %2850 = vmatprep.mubr.f32.mxu0 0.0
    %2851 = vmatmul.mubr.f32.gmra.mrb[0].mxu0 %v2784
    %v2852 = vpop.f32.mrb[0].mxu0
    %v2853 = vadd.f32 %v2779, %v2852
    %v2854 = vpop.f32.mrb[0].mxu0
    %v2855 = vadd.f32 %v2781, %v2854
    %2856 = vdwg.mxu0
    %s2857 = scalar_lea.vmem %s1, 208
    %v2858 = vld [vmem:[%s2857] sm:$0xff]
    %2859 = vrot.lane.b32.xlu0 %v2209, 112
    %v2860 = vpop.permute.xlu0 %2859
    %2861 = vrot.lane.b32.xlu0 %v2210, 112
    %v2862 = vpop.permute.xlu0 %2861
    %v2863 = vsel %vm562, %v2860, %v2862
    %v2864 = vsel %vm562, %v2862, %v2860
    %v2866 = vsel %vm77, %v2858, 0
    %2868 = vmatprep.subr.mxu0 %v2864
    %2869 = vmatpush1.msra.mxu0 %v2863
    %2870 = vmatprep.subr.mxu0 0.0
    %2871 = vmatpush1.msra.mxu0 0.0
    %2872 = vmatprep.subr.mxu0 0.0
    %2873 = vmatpush1.msra.mxu0 0.0
    %2874 = vmatprep.subr.mxu0 0.0
    %2875 = vmatpush1.msra.mxu0 0.0
    %2876 = vmatprep.subr.mxu0 0.0
    %2877 = vmatpush1.msra.mxu0 0.0
    %2878 = vmatprep.subr.mxu0 0.0
    %2879 = vmatpush1.msra.mxu0 0.0
    %2880 = vmatprep.subr.mxu0 0.0
    %2881 = vmatpush1.msra.mxu0 0.0
    %2882 = vmatprep.subr.mxu0 0.0
    %2883 = vmatpush1.msra.mxu0 0.0
    %2884 = vmatprep.subr.mxu0 0.0
    %2885 = vmatpush1.msra.mxu0 0.0
    %2886 = vmatprep.subr.mxu0 0.0
    %2887 = vmatpush1.msra.mxu0 0.0
    %2888 = vmatprep.subr.mxu0 0.0
    %2889 = vmatpush1.msra.mxu0 0.0
    %2890 = vmatprep.subr.mxu0 0.0
    %2891 = vmatpush1.msra.mxu0 0.0
    %2892 = vmatprep.subr.mxu0 0.0
    %2893 = vmatpush1.msra.mxu0 0.0
    %2894 = vmatprep.subr.mxu0 0.0
    %2895 = vmatpush1.msra.mxu0 0.0
    %2896 = vmatprep.subr.mxu0 0.0
    %2897 = vmatpush1.msra.mxu0 0.0
    %2898 = vmatprep.subr.mxu0 0.0
    %2899 = vmatpush1.msra.mxu0 0.0
    %2900 = vmatprep.subr.mxu0 0.0
    %2901 = vmatpush1.msra.mxu0 0.0
    %2902 = vmatprep.subr.mxu0 0.0
    %2903 = vmatpush1.msra.mxu0 0.0
    %2904 = vmatprep.subr.mxu0 0.0
    %2905 = vmatpush1.msra.mxu0 0.0
    %2906 = vmatprep.subr.mxu0 0.0
    %2907 = vmatpush1.msra.mxu0 0.0
    %2908 = vmatprep.subr.mxu0 0.0
    %2909 = vmatpush1.msra.mxu0 0.0
    %2910 = vmatprep.subr.mxu0 0.0
    %2911 = vmatpush1.msra.mxu0 0.0
    %2912 = vmatprep.subr.mxu0 0.0
    %2913 = vmatpush1.msra.mxu0 0.0
    %2914 = vmatprep.subr.mxu0 0.0
    %2915 = vmatpush1.msra.mxu0 0.0
    %2916 = vmatprep.subr.mxu0 0.0
    %2917 = vmatpush1.msra.mxu0 0.0
    %2918 = vmatprep.subr.mxu0 0.0
    %2919 = vmatpush1.msra.mxu0 0.0
    %2920 = vmatprep.subr.mxu0 0.0
    %2921 = vmatpush1.msra.mxu0 0.0
    %2922 = vmatprep.subr.mxu0 0.0
    %2923 = vmatpush1.msra.mxu0 0.0
    %2924 = vmatprep.subr.mxu0 0.0
    %2925 = vmatpush1.msra.mxu0 0.0
    %2926 = vmatprep.subr.mxu0 0.0
    %2927 = vmatpush1.msra.mxu0 0.0
    %2928 = vmatprep.subr.mxu0 0.0
    %2929 = vmatpush1.msra.mxu0 0.0
    %2930 = vmatprep.subr.mxu0 0.0
    %2931 = vmatpush1.msra.mxu0 0.0
    %2932 = vmatprep.mubr.f32.mxu0 0.0
    %2933 = vmatmul.mubr.f32.gmra.mrb[0].mxu0 %v2866
    %v2934 = vpop.f32.mrb[0].mxu0
    %v2935 = vadd.f32 0.0, %v2934
    %v2936 = vpop.f32.mrb[0].mxu0
    %v2937 = vadd.f32 0.0, %v2936
    %2938 = vdwg.mxu0
    %v2939 = vadd.f32 %v2853, %v2935
    %v2940 = vadd.f32 %v2855, %v2937
    %v2941 = vmul.f32 %v2939, %v49
    %v2942 = vmul.f32 %v2940, %v50
    %v2943 = vadd.f32 %v2691, %v2941
    %v2944 = vadd.f32 %v2692, %v2942
    %2945 = vmatprep.subr.mxu0 0.0
    %2946 = vmatpush1.msra.mxu0 1.0
    %2947 = vmatprep.subr.mxu0 0.0
    %2948 = vmatpush1.msra.mxu0 1.0
    %2949 = vmatprep.subr.mxu0 0.0
    %2950 = vmatpush1.msra.mxu0 1.0
    %2951 = vmatprep.subr.mxu0 0.0
    %2952 = vmatpush1.msra.mxu0 1.0
    %2953 = vmatprep.subr.mxu0 0.0
    %2954 = vmatpush1.msra.mxu0 1.0
    %2955 = vmatprep.subr.mxu0 0.0
    %2956 = vmatpush1.msra.mxu0 1.0
    %2957 = vmatprep.subr.mxu0 0.0
    %2958 = vmatpush1.msra.mxu0 1.0
    %2959 = vmatprep.subr.mxu0 0.0
    %2960 = vmatpush1.msra.mxu0 1.0
    %2961 = vmatprep.subr.mxu0 0.0
    %2962 = vmatpush1.msra.mxu0 1.0
    %2963 = vmatprep.subr.mxu0 0.0
    %2964 = vmatpush1.msra.mxu0 1.0
    %2965 = vmatprep.subr.mxu0 0.0
    %2966 = vmatpush1.msra.mxu0 1.0
    %2967 = vmatprep.subr.mxu0 0.0
    %2968 = vmatpush1.msra.mxu0 1.0
    %2969 = vmatprep.subr.mxu0 0.0
    %2970 = vmatpush1.msra.mxu0 1.0
    %2971 = vmatprep.subr.mxu0 0.0
    %2972 = vmatpush1.msra.mxu0 1.0
    %2973 = vmatprep.subr.mxu0 0.0
    %2974 = vmatpush1.msra.mxu0 1.0
    %2975 = vmatprep.subr.mxu0 0.0
    %2976 = vmatpush1.msra.mxu0 1.0
    %2977 = vmatprep.subr.mxu0 0.0
    %2978 = vmatpush1.msra.mxu0 1.0
    %2979 = vmatprep.subr.mxu0 0.0
    %2980 = vmatpush1.msra.mxu0 1.0
    %2981 = vmatprep.subr.mxu0 0.0
    %2982 = vmatpush1.msra.mxu0 1.0
    %2983 = vmatprep.subr.mxu0 0.0
    %2984 = vmatpush1.msra.mxu0 1.0
    %2985 = vmatprep.subr.mxu0 0.0
    %2986 = vmatpush1.msra.mxu0 1.0
    %2987 = vmatprep.subr.mxu0 0.0
    %2988 = vmatpush1.msra.mxu0 1.0
    %2989 = vmatprep.subr.mxu0 0.0
    %2990 = vmatpush1.msra.mxu0 1.0
    %2991 = vmatprep.subr.mxu0 0.0
    %2992 = vmatpush1.msra.mxu0 1.0
    %2993 = vmatprep.subr.mxu0 0.0
    %2994 = vmatpush1.msra.mxu0 1.0
    %2995 = vmatprep.subr.mxu0 0.0
    %2996 = vmatpush1.msra.mxu0 1.0
    %2997 = vmatprep.subr.mxu0 0.0
    %2998 = vmatpush1.msra.mxu0 1.0
    %2999 = vmatprep.subr.mxu0 0.0
    %3000 = vmatpush1.msra.mxu0 1.0
    %3001 = vmatprep.subr.mxu0 0.0
    %3002 = vmatpush1.msra.mxu0 1.0
    %3003 = vmatprep.subr.mxu0 0.0
    %3004 = vmatpush1.msra.mxu0 1.0
    %3005 = vmatprep.subr.mxu0 0.0
    %3006 = vmatpush1.msra.mxu0 1.0
    %3007 = vmatprep.subr.mxu0 0.0
    %3008 = vmatpush1.msra.mxu0 1.0
    %3009 = vmatprep.mubr.f32.mxu0 %v2944
    %3010 = vmatmul.mubr.f32.gmra.mrb[0].mxu0 %v2943
    %v3011 = vpop.f32.mrb[0].mxu0
    %v3012 = vadd.f32 0.0, %v3011
    %v3013 = vpop.f32.mrb[0].mxu0
    %3014 = vdwg.mxu0
    %3015 = vmatprep.subr.mxu0 0.0
    %3016 = vmatpush1.msra.mxu0 %v3012
    %3017 = vmatprep.subr.mxu0 0.0
    %3018 = vmatpush1.msra.mxu0 0.0
    %3019 = vmatprep.subr.mxu0 0.0
    %3020 = vmatpush1.msra.mxu0 0.0
    %3021 = vmatprep.subr.mxu0 0.0
    %3022 = vmatpush1.msra.mxu0 0.0
    %3023 = vmatprep.subr.mxu0 0.0
    %3024 = vmatpush1.msra.mxu0 0.0
    %3025 = vmatprep.subr.mxu0 0.0
    %3026 = vmatpush1.msra.mxu0 0.0
    %3027 = vmatprep.subr.mxu0 0.0
    %3028 = vmatpush1.msra.mxu0 0.0
    %3029 = vmatprep.subr.mxu0 0.0
    %3030 = vmatpush1.msra.mxu0 0.0
    %3031 = vmatprep.subr.mxu0 0.0
    %3032 = vmatpush1.msra.mxu0 0.0
    %3033 = vmatprep.subr.mxu0 0.0
    %3034 = vmatpush1.msra.mxu0 0.0
    %3035 = vmatprep.subr.mxu0 0.0
    %3036 = vmatpush1.msra.mxu0 0.0
    %3037 = vmatprep.subr.mxu0 0.0
    %3038 = vmatpush1.msra.mxu0 0.0
    %3039 = vmatprep.subr.mxu0 0.0
    %3040 = vmatpush1.msra.mxu0 0.0
    %3041 = vmatprep.subr.mxu0 0.0
    %3042 = vmatpush1.msra.mxu0 0.0
    %3043 = vmatprep.subr.mxu0 0.0
    %3044 = vmatpush1.msra.mxu0 0.0
    %3045 = vmatprep.subr.mxu0 0.0
    %3046 = vmatpush1.msra.mxu0 0.0
    %3047 = vmatprep.subr.mxu0 0.0
    %3048 = vmatpush1.msra.mxu0 0.0
    %3049 = vmatprep.subr.mxu0 0.0
    %3050 = vmatpush1.msra.mxu0 0.0
    %3051 = vmatprep.subr.mxu0 0.0
    %3052 = vmatpush1.msra.mxu0 0.0
    %3053 = vmatprep.subr.mxu0 0.0
    %3054 = vmatpush1.msra.mxu0 0.0
    %3055 = vmatprep.subr.mxu0 0.0
    %3056 = vmatpush1.msra.mxu0 0.0
    %3057 = vmatprep.subr.mxu0 0.0
    %3058 = vmatpush1.msra.mxu0 0.0
    %3059 = vmatprep.subr.mxu0 0.0
    %3060 = vmatpush1.msra.mxu0 0.0
    %3061 = vmatprep.subr.mxu0 0.0
    %3062 = vmatpush1.msra.mxu0 0.0
    %3063 = vmatprep.subr.mxu0 0.0
    %3064 = vmatpush1.msra.mxu0 0.0
    %3065 = vmatprep.subr.mxu0 0.0
    %3066 = vmatpush1.msra.mxu0 0.0
    %3067 = vmatprep.subr.mxu0 0.0
    %3068 = vmatpush1.msra.mxu0 0.0
    %3069 = vmatprep.subr.mxu0 0.0
    %3070 = vmatpush1.msra.mxu0 0.0
    %3071 = vmatprep.subr.mxu0 0.0
    %3072 = vmatpush1.msra.mxu0 0.0
    %3073 = vmatprep.subr.mxu0 0.0
    %3074 = vmatpush1.msra.mxu0 0.0
    %3075 = vmatprep.subr.mxu0 0.0
    %3076 = vmatpush1.msra.mxu0 0.0
    %3077 = vmatprep.subr.mxu0 0.0
    %3078 = vmatpush1.msra.mxu0 0.0
    %3079 = vmatprep.mubr.f32.mxu0 0.0
    %3080 = vmatmul.mubr.f32.gmra.mrb[0].mxu0 %v880
    %v3081 = vpop.f32.mrb[0].mxu0
    %v3082 = vadd.f32 0.0, %v3081
    %v3083 = vpop.f32.mrb[0].mxu0
    %3084 = vdwg.mxu0
    %v3085 = vmul.f32 %v3082, 0.001953125
    %3087 = vset.pattern.permute.xlu0 0
    %3088 = vperm.xlu0 %3087, %v3085
    %v3089 = vpop.permute.xlu0 %3088
    %v3091 = vsub.f32 %v2943, %v3089
    %v3092 = vsub.f32 %v2944, %v3089
    %v3093 = vmul.f32 %v3091, %v3091
    %v3094 = vmul.f32 %v3092, %v3092
    %3095 = vmatprep.subr.mxu0 0.0
    %3096 = vmatpush1.msra.mxu0 1.0
    %3097 = vmatprep.subr.mxu0 0.0
    %3098 = vmatpush1.msra.mxu0 1.0
    %3099 = vmatprep.subr.mxu0 0.0
    %3100 = vmatpush1.msra.mxu0 1.0
    %3101 = vmatprep.subr.mxu0 0.0
    %3102 = vmatpush1.msra.mxu0 1.0
    %3103 = vmatprep.subr.mxu0 0.0
    %3104 = vmatpush1.msra.mxu0 1.0
    %3105 = vmatprep.subr.mxu0 0.0
    %3106 = vmatpush1.msra.mxu0 1.0
    %3107 = vmatprep.subr.mxu0 0.0
    %3108 = vmatpush1.msra.mxu0 1.0
    %3109 = vmatprep.subr.mxu0 0.0
    %3110 = vmatpush1.msra.mxu0 1.0
    %3111 = vmatprep.subr.mxu0 0.0
    %3112 = vmatpush1.msra.mxu0 1.0
    %3113 = vmatprep.subr.mxu0 0.0
    %3114 = vmatpush1.msra.mxu0 1.0
    %3115 = vmatprep.subr.mxu0 0.0
    %3116 = vmatpush1.msra.mxu0 1.0
    %3117 = vmatprep.subr.mxu0 0.0
    %3118 = vmatpush1.msra.mxu0 1.0
    %3119 = vmatprep.subr.mxu0 0.0
    %3120 = vmatpush1.msra.mxu0 1.0
    %3121 = vmatprep.subr.mxu0 0.0
    %3122 = vmatpush1.msra.mxu0 1.0
    %3123 = vmatprep.subr.mxu0 0.0
    %3124 = vmatpush1.msra.mxu0 1.0
    %3125 = vmatprep.subr.mxu0 0.0
    %3126 = vmatpush1.msra.mxu0 1.0
    %3127 = vmatprep.subr.mxu0 0.0
    %3128 = vmatpush1.msra.mxu0 1.0
    %3129 = vmatprep.subr.mxu0 0.0
    %3130 = vmatpush1.msra.mxu0 1.0
    %3131 = vmatprep.subr.mxu0 0.0
    %3132 = vmatpush1.msra.mxu0 1.0
    %3133 = vmatprep.subr.mxu0 0.0
    %3134 = vmatpush1.msra.mxu0 1.0
    %3135 = vmatprep.subr.mxu0 0.0
    %3136 = vmatpush1.msra.mxu0 1.0
    %3137 = vmatprep.subr.mxu0 0.0
    %3138 = vmatpush1.msra.mxu0 1.0
    %3139 = vmatprep.subr.mxu0 0.0
    %3140 = vmatpush1.msra.mxu0 1.0
    %3141 = vmatprep.subr.mxu0 0.0
    %3142 = vmatpush1.msra.mxu0 1.0
    %3143 = vmatprep.subr.mxu0 0.0
    %3144 = vmatpush1.msra.mxu0 1.0
    %3145 = vmatprep.subr.mxu0 0.0
    %3146 = vmatpush1.msra.mxu0 1.0
    %3147 = vmatprep.subr.mxu0 0.0
    %3148 = vmatpush1.msra.mxu0 1.0
    %3149 = vmatprep.subr.mxu0 0.0
    %3150 = vmatpush1.msra.mxu0 1.0
    %3151 = vmatprep.subr.mxu0 0.0
    %3152 = vmatpush1.msra.mxu0 1.0
    %3153 = vmatprep.subr.mxu0 0.0
    %3154 = vmatpush1.msra.mxu0 1.0
    %3155 = vmatprep.subr.mxu0 0.0
    %3156 = vmatpush1.msra.mxu0 1.0
    %3157 = vmatprep.subr.mxu0 0.0
    %3158 = vmatpush1.msra.mxu0 1.0
    %3159 = vmatprep.mubr.f32.mxu0 %v3094
    %3160 = vmatmul.mubr.f32.gmra.mrb[0].mxu0 %v3093
    %v3161 = vpop.f32.mrb[0].mxu0
    %v3162 = vadd.f32 0.0, %v3161
    %v3163 = vpop.f32.mrb[0].mxu0
    %3164 = vdwg.mxu0
    %3165 = vmatprep.subr.mxu0 0.0
    %3166 = vmatpush1.msra.mxu0 %v3162
    %3167 = vmatprep.subr.mxu0 0.0
    %3168 = vmatpush1.msra.mxu0 0.0
    %3169 = vmatprep.subr.mxu0 0.0
    %3170 = vmatpush1.msra.mxu0 0.0
    %3171 = vmatprep.subr.mxu0 0.0
    %3172 = vmatpush1.msra.mxu0 0.0
    %3173 = vmatprep.subr.mxu0 0.0
    %3174 = vmatpush1.msra.mxu0 0.0
    %3175 = vmatprep.subr.mxu0 0.0
    %3176 = vmatpush1.msra.mxu0 0.0
    %3177 = vmatprep.subr.mxu0 0.0
    %3178 = vmatpush1.msra.mxu0 0.0
    %3179 = vmatprep.subr.mxu0 0.0
    %3180 = vmatpush1.msra.mxu0 0.0
    %3181 = vmatprep.subr.mxu0 0.0
    %3182 = vmatpush1.msra.mxu0 0.0
    %3183 = vmatprep.subr.mxu0 0.0
    %3184 = vmatpush1.msra.mxu0 0.0
    %3185 = vmatprep.subr.mxu0 0.0
    %3186 = vmatpush1.msra.mxu0 0.0
    %3187 = vmatprep.subr.mxu0 0.0
    %3188 = vmatpush1.msra.mxu0 0.0
    %3189 = vmatprep.subr.mxu0 0.0
    %3190 = vmatpush1.msra.mxu0 0.0
    %3191 = vmatprep.subr.mxu0 0.0
    %3192 = vmatpush1.msra.mxu0 0.0
    %3193 = vmatprep.subr.mxu0 0.0
    %3194 = vmatpush1.msra.mxu0 0.0
    %3195 = vmatprep.subr.mxu0 0.0
    %3196 = vmatpush1.msra.mxu0 0.0
    %3197 = vmatprep.subr.mxu0 0.0
    %3198 = vmatpush1.msra.mxu0 0.0
    %3199 = vmatprep.subr.mxu0 0.0
    %3200 = vmatpush1.msra.mxu0 0.0
    %3201 = vmatprep.subr.mxu0 0.0
    %3202 = vmatpush1.msra.mxu0 0.0
    %3203 = vmatprep.subr.mxu0 0.0
    %3204 = vmatpush1.msra.mxu0 0.0
    %3205 = vmatprep.subr.mxu0 0.0
    %3206 = vmatpush1.msra.mxu0 0.0
    %3207 = vmatprep.subr.mxu0 0.0
    %3208 = vmatpush1.msra.mxu0 0.0
    %3209 = vmatprep.subr.mxu0 0.0
    %3210 = vmatpush1.msra.mxu0 0.0
    %3211 = vmatprep.subr.mxu0 0.0
    %3212 = vmatpush1.msra.mxu0 0.0
    %3213 = vmatprep.subr.mxu0 0.0
    %3214 = vmatpush1.msra.mxu0 0.0
    %3215 = vmatprep.subr.mxu0 0.0
    %3216 = vmatpush1.msra.mxu0 0.0
    %3217 = vmatprep.subr.mxu0 0.0
    %3218 = vmatpush1.msra.mxu0 0.0
    %3219 = vmatprep.subr.mxu0 0.0
    %3220 = vmatpush1.msra.mxu0 0.0
    %3221 = vmatprep.subr.mxu0 0.0
    %3222 = vmatpush1.msra.mxu0 0.0
    %3223 = vmatprep.subr.mxu0 0.0
    %3224 = vmatpush1.msra.mxu0 0.0
    %3225 = vmatprep.subr.mxu0 0.0
    %3226 = vmatpush1.msra.mxu0 0.0
    %3227 = vmatprep.subr.mxu0 0.0
    %3228 = vmatpush1.msra.mxu0 0.0
    %3229 = vmatprep.mubr.f32.mxu0 0.0
    %3230 = vmatmul.mubr.f32.gmra.mrb[0].mxu0 %v880
    %v3231 = vpop.f32.mrb[0].mxu0
    %v3232 = vadd.f32 0.0, %v3231
    %v3233 = vpop.f32.mrb[0].mxu0
    %3234 = vdwg.mxu0
    %v3235 = vmul.f32 %v3232, 0.001953125
    %v3236 = vadd.f32 %v3235, 1e-05
    %v3237 = vrsqrt.pop %v3236
    %3239 = vrot.lane.b32.xlu0 %v3237, 4
    %v3240 = vpop.permute.xlu0 %3239
    %v3242 = vmul.f32 %v38, %v3240
    %3244 = vset.pattern.permute.xlu0 4
    %3245 = vperm.xlu0 %3244, %v3242
    %v3246 = vpop.permute.xlu0 %3245
    %v3248 = vmul.f32 %v3091, %v3246
    %v3249 = vmul.f32 %v3092, %v3246
    %3250 = vset.pattern.permute.xlu0 5
    %3251 = vperm.xlu0 %3250, %v38
    %v3252 = vpop.permute.xlu0 %3251
    %v3254 = vadd.f32 %v3248, %v3252
    %v3255 = vadd.f32 %v3249, %v3252
    %v3256 = vmax.f32 %v3254, 0.0
    %v3257 = vmax.f32 %v3255, 0.0
    %3258 = vrot.lane.b32.xlu0 %v3256, 1
    %v3259 = vpop.permute.xlu0 %3258
    %3260 = vrot.lane.b32.xlu0 %v3257, 1
    %v3261 = vpop.permute.xlu0 %3260
    %v3262 = vsel %vm59, %v3259, %v3261
    %v3263 = vsel %vm59, %v3261, %v3259
    %v3264 = vmul.f32 %v3263, %v40
    %v3265 = vmul.f32 %v3262, %v41
    %3266 = vrot.lane.b32.xlu0 %v3256, 127
    %v3267 = vpop.permute.xlu0 %3266
    %3268 = vrot.lane.b32.xlu0 %v3257, 127
    %v3269 = vpop.permute.xlu0 %3268
    %v3270 = vsel %vm68, %v3267, %v3269
    %v3271 = vsel %vm68, %v3269, %v3267
    %v3272 = vmul.f32 %v3270, %v43
    %v3273 = vmul.f32 %v3271, %v44
    %s3274 = scalar_lea.vmem %s1, 240
    %v3275 = vld [vmem:[%s3274] sm:$0xff]
    %s3276 = scalar_lea.vmem %s1, 248
    %v3277 = vld [vmem:[%s3276] sm:$0xff]
    %v3279 = vsel %vm77, %v3277, 0
    %3281 = vmatprep.subr.mxu0 %v3257
    %3282 = vmatpush1.msra.mxu0 %v3256
    %3283 = vmatprep.subr.mxu0 0.0
    %3284 = vmatpush1.msra.mxu0 0.0
    %3285 = vmatprep.subr.mxu0 0.0
    %3286 = vmatpush1.msra.mxu0 0.0
    %3287 = vmatprep.subr.mxu0 0.0
    %3288 = vmatpush1.msra.mxu0 0.0
    %3289 = vmatprep.subr.mxu0 0.0
    %3290 = vmatpush1.msra.mxu0 0.0
    %3291 = vmatprep.subr.mxu0 0.0
    %3292 = vmatpush1.msra.mxu0 0.0
    %3293 = vmatprep.subr.mxu0 0.0
    %3294 = vmatpush1.msra.mxu0 0.0
    %3295 = vmatprep.subr.mxu0 0.0
    %3296 = vmatpush1.msra.mxu0 0.0
    %3297 = vmatprep.subr.mxu0 0.0
    %3298 = vmatpush1.msra.mxu0 0.0
    %3299 = vmatprep.subr.mxu0 0.0
    %3300 = vmatpush1.msra.mxu0 0.0
    %3301 = vmatprep.subr.mxu0 0.0
    %3302 = vmatpush1.msra.mxu0 0.0
    %3303 = vmatprep.subr.mxu0 0.0
    %3304 = vmatpush1.msra.mxu0 0.0
    %3305 = vmatprep.subr.mxu0 0.0
    %3306 = vmatpush1.msra.mxu0 0.0
    %3307 = vmatprep.subr.mxu0 0.0
    %3308 = vmatpush1.msra.mxu0 0.0
    %3309 = vmatprep.subr.mxu0 0.0
    %3310 = vmatpush1.msra.mxu0 0.0
    %3311 = vmatprep.subr.mxu0 0.0
    %3312 = vmatpush1.msra.mxu0 0.0
    %3313 = vmatprep.subr.mxu0 0.0
    %3314 = vmatpush1.msra.mxu0 0.0
    %3315 = vmatprep.subr.mxu0 0.0
    %3316 = vmatpush1.msra.mxu0 0.0
    %3317 = vmatprep.subr.mxu0 0.0
    %3318 = vmatpush1.msra.mxu0 0.0
    %3319 = vmatprep.subr.mxu0 0.0
    %3320 = vmatpush1.msra.mxu0 0.0
    %3321 = vmatprep.subr.mxu0 0.0
    %3322 = vmatpush1.msra.mxu0 0.0
    %3323 = vmatprep.subr.mxu0 0.0
    %3324 = vmatpush1.msra.mxu0 0.0
    %3325 = vmatprep.subr.mxu0 0.0
    %3326 = vmatpush1.msra.mxu0 0.0
    %3327 = vmatprep.subr.mxu0 0.0
    %3328 = vmatpush1.msra.mxu0 0.0
    %3329 = vmatprep.subr.mxu0 0.0
    %3330 = vmatpush1.msra.mxu0 0.0
    %3331 = vmatprep.subr.mxu0 0.0
    %3332 = vmatpush1.msra.mxu0 0.0
    %3333 = vmatprep.subr.mxu0 0.0
    %3334 = vmatpush1.msra.mxu0 0.0
    %3335 = vmatprep.subr.mxu0 0.0
    %3336 = vmatpush1.msra.mxu0 0.0
    %3337 = vmatprep.subr.mxu0 0.0
    %3338 = vmatpush1.msra.mxu0 0.0
    %3339 = vmatprep.subr.mxu0 0.0
    %3340 = vmatpush1.msra.mxu0 0.0
    %3341 = vmatprep.subr.mxu0 0.0
    %3342 = vmatpush1.msra.mxu0 0.0
    %3343 = vmatprep.subr.mxu0 0.0
    %3344 = vmatpush1.msra.mxu0 0.0
    %3345 = vmatprep.mubr.f32.mxu0 0.0
    %3346 = vmatmul.mubr.f32.gmra.mrb[0].mxu0 %v3279
    %v3347 = vpop.f32.mrb[0].mxu0
    %v3348 = vadd.f32 0.0, %v3347
    %v3349 = vpop.f32.mrb[0].mxu0
    %v3350 = vadd.f32 0.0, %v3349
    %3351 = vdwg.mxu0
    %v3353 = vsel %vm77, %v3275, 0
    %3355 = vmatprep.subr.mxu0 %v3265
    %3356 = vmatpush1.msra.mxu0 %v3264
    %3357 = vmatprep.subr.mxu0 0.0
    %3358 = vmatpush1.msra.mxu0 0.0
    %3359 = vmatprep.subr.mxu0 0.0
    %3360 = vmatpush1.msra.mxu0 0.0
    %3361 = vmatprep.subr.mxu0 0.0
    %3362 = vmatpush1.msra.mxu0 0.0
    %3363 = vmatprep.subr.mxu0 0.0
    %3364 = vmatpush1.msra.mxu0 0.0
    %3365 = vmatprep.subr.mxu0 0.0
    %3366 = vmatpush1.msra.mxu0 0.0
    %3367 = vmatprep.subr.mxu0 0.0
    %3368 = vmatpush1.msra.mxu0 0.0
    %3369 = vmatprep.subr.mxu0 0.0
    %3370 = vmatpush1.msra.mxu0 0.0
    %3371 = vmatprep.subr.mxu0 0.0
    %3372 = vmatpush1.msra.mxu0 0.0
    %3373 = vmatprep.subr.mxu0 0.0
    %3374 = vmatpush1.msra.mxu0 0.0
    %3375 = vmatprep.subr.mxu0 0.0
    %3376 = vmatpush1.msra.mxu0 0.0
    %3377 = vmatprep.subr.mxu0 0.0
    %3378 = vmatpush1.msra.mxu0 0.0
    %3379 = vmatprep.subr.mxu0 0.0
    %3380 = vmatpush1.msra.mxu0 0.0
    %3381 = vmatprep.subr.mxu0 0.0
    %3382 = vmatpush1.msra.mxu0 0.0
    %3383 = vmatprep.subr.mxu0 0.0
    %3384 = vmatpush1.msra.mxu0 0.0
    %3385 = vmatprep.subr.mxu0 0.0
    %3386 = vmatpush1.msra.mxu0 0.0
    %3387 = vmatprep.subr.mxu0 0.0
    %3388 = vmatpush1.msra.mxu0 0.0
    %3389 = vmatprep.subr.mxu0 0.0
    %3390 = vmatpush1.msra.mxu0 0.0
    %3391 = vmatprep.subr.mxu0 0.0
    %3392 = vmatpush1.msra.mxu0 0.0
    %3393 = vmatprep.subr.mxu0 0.0
    %3394 = vmatpush1.msra.mxu0 0.0
    %3395 = vmatprep.subr.mxu0 0.0
    %3396 = vmatpush1.msra.mxu0 0.0
    %3397 = vmatprep.subr.mxu0 0.0
    %3398 = vmatpush1.msra.mxu0 0.0
    %3399 = vmatprep.subr.mxu0 0.0
    %3400 = vmatpush1.msra.mxu0 0.0
    %3401 = vmatprep.subr.mxu0 0.0
    %3402 = vmatpush1.msra.mxu0 0.0
    %3403 = vmatprep.subr.mxu0 0.0
    %3404 = vmatpush1.msra.mxu0 0.0
    %3405 = vmatprep.subr.mxu0 0.0
    %3406 = vmatpush1.msra.mxu0 0.0
    %3407 = vmatprep.subr.mxu0 0.0
    %3408 = vmatpush1.msra.mxu0 0.0
    %3409 = vmatprep.subr.mxu0 0.0
    %3410 = vmatpush1.msra.mxu0 0.0
    %3411 = vmatprep.subr.mxu0 0.0
    %3412 = vmatpush1.msra.mxu0 0.0
    %3413 = vmatprep.subr.mxu0 0.0
    %3414 = vmatpush1.msra.mxu0 0.0
    %3415 = vmatprep.subr.mxu0 0.0
    %3416 = vmatpush1.msra.mxu0 0.0
    %3417 = vmatprep.subr.mxu0 0.0
    %3418 = vmatpush1.msra.mxu0 0.0
    %3419 = vmatprep.mubr.f32.mxu0 0.0
    %3420 = vmatmul.mubr.f32.gmra.mrb[0].mxu0 %v3353
    %v3421 = vpop.f32.mrb[0].mxu0
    %v3422 = vadd.f32 %v3348, %v3421
    %v3423 = vpop.f32.mrb[0].mxu0
    %v3424 = vadd.f32 %v3350, %v3423
    %3425 = vdwg.mxu0
    %s3426 = scalar_lea.vmem %s1, 256
    %v3427 = vld [vmem:[%s3426] sm:$0xff]
    %v3429 = vsel %vm77, %v3427, 0
    %3431 = vmatprep.subr.mxu0 %v3273
    %3432 = vmatpush1.msra.mxu0 %v3272
    %3433 = vmatprep.subr.mxu0 0.0
    %3434 = vmatpush1.msra.mxu0 0.0
    %3435 = vmatprep.subr.mxu0 0.0
    %3436 = vmatpush1.msra.mxu0 0.0
    %3437 = vmatprep.subr.mxu0 0.0
    %3438 = vmatpush1.msra.mxu0 0.0
    %3439 = vmatprep.subr.mxu0 0.0
    %3440 = vmatpush1.msra.mxu0 0.0
    %3441 = vmatprep.subr.mxu0 0.0
    %3442 = vmatpush1.msra.mxu0 0.0
    %3443 = vmatprep.subr.mxu0 0.0
    %3444 = vmatpush1.msra.mxu0 0.0
    %3445 = vmatprep.subr.mxu0 0.0
    %3446 = vmatpush1.msra.mxu0 0.0
    %3447 = vmatprep.subr.mxu0 0.0
    %3448 = vmatpush1.msra.mxu0 0.0
    %3449 = vmatprep.subr.mxu0 0.0
    %3450 = vmatpush1.msra.mxu0 0.0
    %3451 = vmatprep.subr.mxu0 0.0
    %3452 = vmatpush1.msra.mxu0 0.0
    %3453 = vmatprep.subr.mxu0 0.0
    %3454 = vmatpush1.msra.mxu0 0.0
    %3455 = vmatprep.subr.mxu0 0.0
    %3456 = vmatpush1.msra.mxu0 0.0
    %3457 = vmatprep.subr.mxu0 0.0
    %3458 = vmatpush1.msra.mxu0 0.0
    %3459 = vmatprep.subr.mxu0 0.0
    %3460 = vmatpush1.msra.mxu0 0.0
    %3461 = vmatprep.subr.mxu0 0.0
    %3462 = vmatpush1.msra.mxu0 0.0
    %3463 = vmatprep.subr.mxu0 0.0
    %3464 = vmatpush1.msra.mxu0 0.0
    %3465 = vmatprep.subr.mxu0 0.0
    %3466 = vmatpush1.msra.mxu0 0.0
    %3467 = vmatprep.subr.mxu0 0.0
    %3468 = vmatpush1.msra.mxu0 0.0
    %3469 = vmatprep.subr.mxu0 0.0
    %3470 = vmatpush1.msra.mxu0 0.0
    %3471 = vmatprep.subr.mxu0 0.0
    %3472 = vmatpush1.msra.mxu0 0.0
    %3473 = vmatprep.subr.mxu0 0.0
    %3474 = vmatpush1.msra.mxu0 0.0
    %3475 = vmatprep.subr.mxu0 0.0
    %3476 = vmatpush1.msra.mxu0 0.0
    %3477 = vmatprep.subr.mxu0 0.0
    %3478 = vmatpush1.msra.mxu0 0.0
    %3479 = vmatprep.subr.mxu0 0.0
    %3480 = vmatpush1.msra.mxu0 0.0
    %3481 = vmatprep.subr.mxu0 0.0
    %3482 = vmatpush1.msra.mxu0 0.0
    %3483 = vmatprep.subr.mxu0 0.0
    %3484 = vmatpush1.msra.mxu0 0.0
    %3485 = vmatprep.subr.mxu0 0.0
    %3486 = vmatpush1.msra.mxu0 0.0
    %3487 = vmatprep.subr.mxu0 0.0
    %3488 = vmatpush1.msra.mxu0 0.0
    %3489 = vmatprep.subr.mxu0 0.0
    %3490 = vmatpush1.msra.mxu0 0.0
    %3491 = vmatprep.subr.mxu0 0.0
    %3492 = vmatpush1.msra.mxu0 0.0
    %3493 = vmatprep.subr.mxu0 0.0
    %3494 = vmatpush1.msra.mxu0 0.0
    %3495 = vmatprep.mubr.f32.mxu0 0.0
    %3496 = vmatmul.mubr.f32.gmra.mrb[0].mxu0 %v3429
    %v3497 = vpop.f32.mrb[0].mxu0
    %v3498 = vadd.f32 0.0, %v3497
    %v3499 = vpop.f32.mrb[0].mxu0
    %v3500 = vadd.f32 0.0, %v3499
    %3501 = vdwg.mxu0
    %v3502 = vadd.f32 %v3422, %v3498
    %v3503 = vadd.f32 %v3424, %v3500
    %s3504 = scalar_lea.vmem %s1, 216
    %v3505 = vld [vmem:[%s3504] sm:$0xff]
    %3506 = vrot.lane.b32.xlu0 %v3264, 16
    %v3507 = vpop.permute.xlu0 %3506
    %3508 = vrot.lane.b32.xlu0 %v3265, 16
    %v3509 = vpop.permute.xlu0 %3508
    %v3510 = vsel %vm309, %v3507, %v3509
    %v3511 = vsel %vm309, %v3509, %v3507
    %s3512 = scalar_lea.vmem %s1, 224
    %v3513 = vld [vmem:[%s3512] sm:$0xff]
    %3514 = vrot.lane.b32.xlu0 %v3256, 16
    %v3515 = vpop.permute.xlu0 %3514
    %3516 = vrot.lane.b32.xlu0 %v3257, 16
    %v3517 = vpop.permute.xlu0 %3516
    %v3518 = vsel %vm309, %v3515, %v3517
    %v3519 = vsel %vm309, %v3517, %v3515
    %v3521 = vsel %vm77, %v3513, 0
    %3523 = vmatprep.subr.mxu0 %v3518
    %3524 = vmatpush1.msra.mxu0 %v3519
    %3525 = vmatprep.subr.mxu0 0.0
    %3526 = vmatpush1.msra.mxu0 0.0
    %3527 = vmatprep.subr.mxu0 0.0
    %3528 = vmatpush1.msra.mxu0 0.0
    %3529 = vmatprep.subr.mxu0 0.0
    %3530 = vmatpush1.msra.mxu0 0.0
    %3531 = vmatprep.subr.mxu0 0.0
    %3532 = vmatpush1.msra.mxu0 0.0
    %3533 = vmatprep.subr.mxu0 0.0
    %3534 = vmatpush1.msra.mxu0 0.0
    %3535 = vmatprep.subr.mxu0 0.0
    %3536 = vmatpush1.msra.mxu0 0.0
    %3537 = vmatprep.subr.mxu0 0.0
    %3538 = vmatpush1.msra.mxu0 0.0
    %3539 = vmatprep.subr.mxu0 0.0
    %3540 = vmatpush1.msra.mxu0 0.0
    %3541 = vmatprep.subr.mxu0 0.0
    %3542 = vmatpush1.msra.mxu0 0.0
    %3543 = vmatprep.subr.mxu0 0.0
    %3544 = vmatpush1.msra.mxu0 0.0
    %3545 = vmatprep.subr.mxu0 0.0
    %3546 = vmatpush1.msra.mxu0 0.0
    %3547 = vmatprep.subr.mxu0 0.0
    %3548 = vmatpush1.msra.mxu0 0.0
    %3549 = vmatprep.subr.mxu0 0.0
    %3550 = vmatpush1.msra.mxu0 0.0
    %3551 = vmatprep.subr.mxu0 0.0
    %3552 = vmatpush1.msra.mxu0 0.0
    %3553 = vmatprep.subr.mxu0 0.0
    %3554 = vmatpush1.msra.mxu0 0.0
    %3555 = vmatprep.subr.mxu0 0.0
    %3556 = vmatpush1.msra.mxu0 0.0
    %3557 = vmatprep.subr.mxu0 0.0
    %3558 = vmatpush1.msra.mxu0 0.0
    %3559 = vmatprep.subr.mxu0 0.0
    %3560 = vmatpush1.msra.mxu0 0.0
    %3561 = vmatprep.subr.mxu0 0.0
    %3562 = vmatpush1.msra.mxu0 0.0
    %3563 = vmatprep.subr.mxu0 0.0
    %3564 = vmatpush1.msra.mxu0 0.0
    %3565 = vmatprep.subr.mxu0 0.0
    %3566 = vmatpush1.msra.mxu0 0.0
    %3567 = vmatprep.subr.mxu0 0.0
    %3568 = vmatpush1.msra.mxu0 0.0
    %3569 = vmatprep.subr.mxu0 0.0
    %3570 = vmatpush1.msra.mxu0 0.0
    %3571 = vmatprep.subr.mxu0 0.0
    %3572 = vmatpush1.msra.mxu0 0.0
    %3573 = vmatprep.subr.mxu0 0.0
    %3574 = vmatpush1.msra.mxu0 0.0
    %3575 = vmatprep.subr.mxu0 0.0
    %3576 = vmatpush1.msra.mxu0 0.0
    %3577 = vmatprep.subr.mxu0 0.0
    %3578 = vmatpush1.msra.mxu0 0.0
    %3579 = vmatprep.subr.mxu0 0.0
    %3580 = vmatpush1.msra.mxu0 0.0
    %3581 = vmatprep.subr.mxu0 0.0
    %3582 = vmatpush1.msra.mxu0 0.0
    %3583 = vmatprep.subr.mxu0 0.0
    %3584 = vmatpush1.msra.mxu0 0.0
    %3585 = vmatprep.subr.mxu0 0.0
    %3586 = vmatpush1.msra.mxu0 0.0
    %3587 = vmatprep.mubr.f32.mxu0 0.0
    %3588 = vmatmul.mubr.f32.gmra.mrb[0].mxu0 %v3521
    %v3589 = vpop.f32.mrb[0].mxu0
    %v3590 = vadd.f32 0.0, %v3589
    %v3591 = vpop.f32.mrb[0].mxu0
    %v3592 = vadd.f32 0.0, %v3591
    %3593 = vdwg.mxu0
    %v3595 = vsel %vm77, %v3505, 0
    %3597 = vmatprep.subr.mxu0 %v3510
    %3598 = vmatpush1.msra.mxu0 %v3511
    %3599 = vmatprep.subr.mxu0 0.0
    %3600 = vmatpush1.msra.mxu0 0.0
    %3601 = vmatprep.subr.mxu0 0.0
    %3602 = vmatpush1.msra.mxu0 0.0
    %3603 = vmatprep.subr.mxu0 0.0
    %3604 = vmatpush1.msra.mxu0 0.0
    %3605 = vmatprep.subr.mxu0 0.0
    %3606 = vmatpush1.msra.mxu0 0.0
    %3607 = vmatprep.subr.mxu0 0.0
    %3608 = vmatpush1.msra.mxu0 0.0
    %3609 = vmatprep.subr.mxu0 0.0
    %3610 = vmatpush1.msra.mxu0 0.0
    %3611 = vmatprep.subr.mxu0 0.0
    %3612 = vmatpush1.msra.mxu0 0.0
    %3613 = vmatprep.subr.mxu0 0.0
    %3614 = vmatpush1.msra.mxu0 0.0
    %3615 = vmatprep.subr.mxu0 0.0
    %3616 = vmatpush1.msra.mxu0 0.0
    %3617 = vmatprep.subr.mxu0 0.0
    %3618 = vmatpush1.msra.mxu0 0.0
    %3619 = vmatprep.subr.mxu0 0.0
    %3620 = vmatpush1.msra.mxu0 0.0
    %3621 = vmatprep.subr.mxu0 0.0
    %3622 = vmatpush1.msra.mxu0 0.0
    %3623 = vmatprep.subr.mxu0 0.0
    %3624 = vmatpush1.msra.mxu0 0.0
    %3625 = vmatprep.subr.mxu0 0.0
    %3626 = vmatpush1.msra.mxu0 0.0
    %3627 = vmatprep.subr.mxu0 0.0
    %3628 = vmatpush1.msra.mxu0 0.0
    %3629 = vmatprep.subr.mxu0 0.0
    %3630 = vmatpush1.msra.mxu0 0.0
    %3631 = vmatprep.subr.mxu0 0.0
    %3632 = vmatpush1.msra.mxu0 0.0
    %3633 = vmatprep.subr.mxu0 0.0
    %3634 = vmatpush1.msra.mxu0 0.0
    %3635 = vmatprep.subr.mxu0 0.0
    %3636 = vmatpush1.msra.mxu0 0.0
    %3637 = vmatprep.subr.mxu0 0.0
    %3638 = vmatpush1.msra.mxu0 0.0
    %3639 = vmatprep.subr.mxu0 0.0
    %3640 = vmatpush1.msra.mxu0 0.0
    %3641 = vmatprep.subr.mxu0 0.0
    %3642 = vmatpush1.msra.mxu0 0.0
    %3643 = vmatprep.subr.mxu0 0.0
    %3644 = vmatpush1.msra.mxu0 0.0
    %3645 = vmatprep.subr.mxu0 0.0
    %3646 = vmatpush1.msra.mxu0 0.0
    %3647 = vmatprep.subr.mxu0 0.0
    %3648 = vmatpush1.msra.mxu0 0.0
    %3649 = vmatprep.subr.mxu0 0.0
    %3650 = vmatpush1.msra.mxu0 0.0
    %3651 = vmatprep.subr.mxu0 0.0
    %3652 = vmatpush1.msra.mxu0 0.0
    %3653 = vmatprep.subr.mxu0 0.0
    %3654 = vmatpush1.msra.mxu0 0.0
    %3655 = vmatprep.subr.mxu0 0.0
    %3656 = vmatpush1.msra.mxu0 0.0
    %3657 = vmatprep.subr.mxu0 0.0
    %3658 = vmatpush1.msra.mxu0 0.0
    %3659 = vmatprep.subr.mxu0 0.0
    %3660 = vmatpush1.msra.mxu0 0.0
    %3661 = vmatprep.mubr.f32.mxu0 0.0
    %3662 = vmatmul.mubr.f32.gmra.mrb[0].mxu0 %v3595
    %v3663 = vpop.f32.mrb[0].mxu0
    %v3664 = vadd.f32 %v3590, %v3663
    %v3665 = vpop.f32.mrb[0].mxu0
    %v3666 = vadd.f32 %v3592, %v3665
    %3667 = vdwg.mxu0
    %s3668 = scalar_lea.vmem %s1, 232
    %v3669 = vld [vmem:[%s3668] sm:$0xff]
    %3670 = vrot.lane.b32.xlu0 %v3272, 16
    %v3671 = vpop.permute.xlu0 %3670
    %3672 = vrot.lane.b32.xlu0 %v3273, 16
    %v3673 = vpop.permute.xlu0 %3672
    %v3674 = vsel %vm309, %v3671, %v3673
    %v3675 = vsel %vm309, %v3673, %v3671
    %v3677 = vsel %vm77, %v3669, 0
    %3679 = vmatprep.subr.mxu0 %v3674
    %3680 = vmatpush1.msra.mxu0 %v3675
    %3681 = vmatprep.subr.mxu0 0.0
    %3682 = vmatpush1.msra.mxu0 0.0
    %3683 = vmatprep.subr.mxu0 0.0
    %3684 = vmatpush1.msra.mxu0 0.0
    %3685 = vmatprep.subr.mxu0 0.0
    %3686 = vmatpush1.msra.mxu0 0.0
    %3687 = vmatprep.subr.mxu0 0.0
    %3688 = vmatpush1.msra.mxu0 0.0
    %3689 = vmatprep.subr.mxu0 0.0
    %3690 = vmatpush1.msra.mxu0 0.0
    %3691 = vmatprep.subr.mxu0 0.0
    %3692 = vmatpush1.msra.mxu0 0.0
    %3693 = vmatprep.subr.mxu0 0.0
    %3694 = vmatpush1.msra.mxu0 0.0
    %3695 = vmatprep.subr.mxu0 0.0
    %3696 = vmatpush1.msra.mxu0 0.0
    %3697 = vmatprep.subr.mxu0 0.0
    %3698 = vmatpush1.msra.mxu0 0.0
    %3699 = vmatprep.subr.mxu0 0.0
    %3700 = vmatpush1.msra.mxu0 0.0
    %3701 = vmatprep.subr.mxu0 0.0
    %3702 = vmatpush1.msra.mxu0 0.0
    %3703 = vmatprep.subr.mxu0 0.0
    %3704 = vmatpush1.msra.mxu0 0.0
    %3705 = vmatprep.subr.mxu0 0.0
    %3706 = vmatpush1.msra.mxu0 0.0
    %3707 = vmatprep.subr.mxu0 0.0
    %3708 = vmatpush1.msra.mxu0 0.0
    %3709 = vmatprep.subr.mxu0 0.0
    %3710 = vmatpush1.msra.mxu0 0.0
    %3711 = vmatprep.subr.mxu0 0.0
    %3712 = vmatpush1.msra.mxu0 0.0
    %3713 = vmatprep.subr.mxu0 0.0
    %3714 = vmatpush1.msra.mxu0 0.0
    %3715 = vmatprep.subr.mxu0 0.0
    %3716 = vmatpush1.msra.mxu0 0.0
    %3717 = vmatprep.subr.mxu0 0.0
    %3718 = vmatpush1.msra.mxu0 0.0
    %3719 = vmatprep.subr.mxu0 0.0
    %3720 = vmatpush1.msra.mxu0 0.0
    %3721 = vmatprep.subr.mxu0 0.0
    %3722 = vmatpush1.msra.mxu0 0.0
    %3723 = vmatprep.subr.mxu0 0.0
    %3724 = vmatpush1.msra.mxu0 0.0
    %3725 = vmatprep.subr.mxu0 0.0
    %3726 = vmatpush1.msra.mxu0 0.0
    %3727 = vmatprep.subr.mxu0 0.0
    %3728 = vmatpush1.msra.mxu0 0.0
    %3729 = vmatprep.subr.mxu0 0.0
    %3730 = vmatpush1.msra.mxu0 0.0
    %3731 = vmatprep.subr.mxu0 0.0
    %3732 = vmatpush1.msra.mxu0 0.0
    %3733 = vmatprep.subr.mxu0 0.0
    %3734 = vmatpush1.msra.mxu0 0.0
    %3735 = vmatprep.subr.mxu0 0.0
    %3736 = vmatpush1.msra.mxu0 0.0
    %3737 = vmatprep.subr.mxu0 0.0
    %3738 = vmatpush1.msra.mxu0 0.0
    %3739 = vmatprep.subr.mxu0 0.0
    %3740 = vmatpush1.msra.mxu0 0.0
    %3741 = vmatprep.subr.mxu0 0.0
    %3742 = vmatpush1.msra.mxu0 0.0
    %3743 = vmatprep.mubr.f32.mxu0 0.0
    %3744 = vmatmul.mubr.f32.gmra.mrb[0].mxu0 %v3677
    %v3745 = vpop.f32.mrb[0].mxu0
    %v3746 = vadd.f32 0.0, %v3745
    %v3747 = vpop.f32.mrb[0].mxu0
    %v3748 = vadd.f32 0.0, %v3747
    %3749 = vdwg.mxu0
    %v3750 = vadd.f32 %v3664, %v3746
    %v3751 = vadd.f32 %v3666, %v3748
    %v3752 = vmul.f32 %v3750, %v46
    %v3753 = vmul.f32 %v3751, %v47
    %v3754 = vadd.f32 %v3502, %v3752
    %v3755 = vadd.f32 %v3503, %v3753
    %s3756 = scalar_lea.vmem %s1, 264
    %v3757 = vld [vmem:[%s3756] sm:$0xff]
    %3758 = vrot.lane.b32.xlu0 %v3264, 112
    %v3759 = vpop.permute.xlu0 %3758
    %3760 = vrot.lane.b32.xlu0 %v3265, 112
    %v3761 = vpop.permute.xlu0 %3760
    %v3762 = vsel %vm562, %v3759, %v3761
    %v3763 = vsel %vm562, %v3761, %v3759
    %s3764 = scalar_lea.vmem %s1, 272
    %v3765 = vld [vmem:[%s3764] sm:$0xff]
    %3766 = vrot.lane.b32.xlu0 %v3256, 112
    %v3767 = vpop.permute.xlu0 %3766
    %3768 = vrot.lane.b32.xlu0 %v3257, 112
    %v3769 = vpop.permute.xlu0 %3768
    %v3770 = vsel %vm562, %v3767, %v3769
    %v3771 = vsel %vm562, %v3769, %v3767
    %v3773 = vsel %vm77, %v3765, 0
    %3775 = vmatprep.subr.mxu0 %v3771
    %3776 = vmatpush1.msra.mxu0 %v3770
    %3777 = vmatprep.subr.mxu0 0.0
    %3778 = vmatpush1.msra.mxu0 0.0
    %3779 = vmatprep.subr.mxu0 0.0
    %3780 = vmatpush1.msra.mxu0 0.0
    %3781 = vmatprep.subr.mxu0 0.0
    %3782 = vmatpush1.msra.mxu0 0.0
    %3783 = vmatprep.subr.mxu0 0.0
    %3784 = vmatpush1.msra.mxu0 0.0
    %3785 = vmatprep.subr.mxu0 0.0
    %3786 = vmatpush1.msra.mxu0 0.0
    %3787 = vmatprep.subr.mxu0 0.0
    %3788 = vmatpush1.msra.mxu0 0.0
    %3789 = vmatprep.subr.mxu0 0.0
    %3790 = vmatpush1.msra.mxu0 0.0
    %3791 = vmatprep.subr.mxu0 0.0
    %3792 = vmatpush1.msra.mxu0 0.0
    %3793 = vmatprep.subr.mxu0 0.0
    %3794 = vmatpush1.msra.mxu0 0.0
    %3795 = vmatprep.subr.mxu0 0.0
    %3796 = vmatpush1.msra.mxu0 0.0
    %3797 = vmatprep.subr.mxu0 0.0
    %3798 = vmatpush1.msra.mxu0 0.0
    %3799 = vmatprep.subr.mxu0 0.0
    %3800 = vmatpush1.msra.mxu0 0.0
    %3801 = vmatprep.subr.mxu0 0.0
    %3802 = vmatpush1.msra.mxu0 0.0
    %3803 = vmatprep.subr.mxu0 0.0
    %3804 = vmatpush1.msra.mxu0 0.0
    %3805 = vmatprep.subr.mxu0 0.0
    %3806 = vmatpush1.msra.mxu0 0.0
    %3807 = vmatprep.subr.mxu0 0.0
    %3808 = vmatpush1.msra.mxu0 0.0
    %3809 = vmatprep.subr.mxu0 0.0
    %3810 = vmatpush1.msra.mxu0 0.0
    %3811 = vmatprep.subr.mxu0 0.0
    %3812 = vmatpush1.msra.mxu0 0.0
    %3813 = vmatprep.subr.mxu0 0.0
    %3814 = vmatpush1.msra.mxu0 0.0
    %3815 = vmatprep.subr.mxu0 0.0
    %3816 = vmatpush1.msra.mxu0 0.0
    %3817 = vmatprep.subr.mxu0 0.0
    %3818 = vmatpush1.msra.mxu0 0.0
    %3819 = vmatprep.subr.mxu0 0.0
    %3820 = vmatpush1.msra.mxu0 0.0
    %3821 = vmatprep.subr.mxu0 0.0
    %3822 = vmatpush1.msra.mxu0 0.0
    %3823 = vmatprep.subr.mxu0 0.0
    %3824 = vmatpush1.msra.mxu0 0.0
    %3825 = vmatprep.subr.mxu0 0.0
    %3826 = vmatpush1.msra.mxu0 0.0
    %3827 = vmatprep.subr.mxu0 0.0
    %3828 = vmatpush1.msra.mxu0 0.0
    %3829 = vmatprep.subr.mxu0 0.0
    %3830 = vmatpush1.msra.mxu0 0.0
    %3831 = vmatprep.subr.mxu0 0.0
    %3832 = vmatpush1.msra.mxu0 0.0
    %3833 = vmatprep.subr.mxu0 0.0
    %3834 = vmatpush1.msra.mxu0 0.0
    %3835 = vmatprep.subr.mxu0 0.0
    %3836 = vmatpush1.msra.mxu0 0.0
    %3837 = vmatprep.subr.mxu0 0.0
    %3838 = vmatpush1.msra.mxu0 0.0
    %3839 = vmatprep.mubr.f32.mxu0 0.0
    %3840 = vmatmul.mubr.f32.gmra.mrb[0].mxu0 %v3773
    %v3841 = vpop.f32.mrb[0].mxu0
    %v3842 = vadd.f32 0.0, %v3841
    %v3843 = vpop.f32.mrb[0].mxu0
    %v3844 = vadd.f32 0.0, %v3843
    %3845 = vdwg.mxu0
    %v3847 = vsel %vm77, %v3757, 0
    %3849 = vmatprep.subr.mxu0 %v3763
    %3850 = vmatpush1.msra.mxu0 %v3762
    %3851 = vmatprep.subr.mxu0 0.0
    %3852 = vmatpush1.msra.mxu0 0.0
    %3853 = vmatprep.subr.mxu0 0.0
    %3854 = vmatpush1.msra.mxu0 0.0
    %3855 = vmatprep.subr.mxu0 0.0
    %3856 = vmatpush1.msra.mxu0 0.0
    %3857 = vmatprep.subr.mxu0 0.0
    %3858 = vmatpush1.msra.mxu0 0.0
    %3859 = vmatprep.subr.mxu0 0.0
    %3860 = vmatpush1.msra.mxu0 0.0
    %3861 = vmatprep.subr.mxu0 0.0
    %3862 = vmatpush1.msra.mxu0 0.0
    %3863 = vmatprep.subr.mxu0 0.0
    %3864 = vmatpush1.msra.mxu0 0.0
    %3865 = vmatprep.subr.mxu0 0.0
    %3866 = vmatpush1.msra.mxu0 0.0
    %3867 = vmatprep.subr.mxu0 0.0
    %3868 = vmatpush1.msra.mxu0 0.0
    %3869 = vmatprep.subr.mxu0 0.0
    %3870 = vmatpush1.msra.mxu0 0.0
    %3871 = vmatprep.subr.mxu0 0.0
    %3872 = vmatpush1.msra.mxu0 0.0
    %3873 = vmatprep.subr.mxu0 0.0
    %3874 = vmatpush1.msra.mxu0 0.0
    %3875 = vmatprep.subr.mxu0 0.0
    %3876 = vmatpush1.msra.mxu0 0.0
    %3877 = vmatprep.subr.mxu0 0.0
    %3878 = vmatpush1.msra.mxu0 0.0
    %3879 = vmatprep.subr.mxu0 0.0
    %3880 = vmatpush1.msra.mxu0 0.0
    %3881 = vmatprep.subr.mxu0 0.0
    %3882 = vmatpush1.msra.mxu0 0.0
    %3883 = vmatprep.subr.mxu0 0.0
    %3884 = vmatpush1.msra.mxu0 0.0
    %3885 = vmatprep.subr.mxu0 0.0
    %3886 = vmatpush1.msra.mxu0 0.0
    %3887 = vmatprep.subr.mxu0 0.0
    %3888 = vmatpush1.msra.mxu0 0.0
    %3889 = vmatprep.subr.mxu0 0.0
    %3890 = vmatpush1.msra.mxu0 0.0
    %3891 = vmatprep.subr.mxu0 0.0
    %3892 = vmatpush1.msra.mxu0 0.0
    %3893 = vmatprep.subr.mxu0 0.0
    %3894 = vmatpush1.msra.mxu0 0.0
    %3895 = vmatprep.subr.mxu0 0.0
    %3896 = vmatpush1.msra.mxu0 0.0
    %3897 = vmatprep.subr.mxu0 0.0
    %3898 = vmatpush1.msra.mxu0 0.0
    %3899 = vmatprep.subr.mxu0 0.0
    %3900 = vmatpush1.msra.mxu0 0.0
    %3901 = vmatprep.subr.mxu0 0.0
    %3902 = vmatpush1.msra.mxu0 0.0
    %3903 = vmatprep.subr.mxu0 0.0
    %3904 = vmatpush1.msra.mxu0 0.0
    %3905 = vmatprep.subr.mxu0 0.0
    %3906 = vmatpush1.msra.mxu0 0.0
    %3907 = vmatprep.subr.mxu0 0.0
    %3908 = vmatpush1.msra.mxu0 0.0
    %3909 = vmatprep.subr.mxu0 0.0
    %3910 = vmatpush1.msra.mxu0 0.0
    %3911 = vmatprep.subr.mxu0 0.0
    %3912 = vmatpush1.msra.mxu0 0.0
    %3913 = vmatprep.mubr.f32.mxu0 0.0
    %3914 = vmatmul.mubr.f32.gmra.mrb[0].mxu0 %v3847
    %v3915 = vpop.f32.mrb[0].mxu0
    %v3916 = vadd.f32 %v3842, %v3915
    %v3917 = vpop.f32.mrb[0].mxu0
    %v3918 = vadd.f32 %v3844, %v3917
    %3919 = vdwg.mxu0
    %s3920 = scalar_lea.vmem %s1, 280
    %v3921 = vld [vmem:[%s3920] sm:$0xff]
    %3922 = vrot.lane.b32.xlu0 %v3272, 112
    %v3923 = vpop.permute.xlu0 %3922
    %3924 = vrot.lane.b32.xlu0 %v3273, 112
    %v3925 = vpop.permute.xlu0 %3924
    %v3926 = vsel %vm562, %v3923, %v3925
    %v3927 = vsel %vm562, %v3925, %v3923
    %v3929 = vsel %vm77, %v3921, 0
    %3931 = vmatprep.subr.mxu0 %v3927
    %3932 = vmatpush1.msra.mxu0 %v3926
    %3933 = vmatprep.subr.mxu0 0.0
    %3934 = vmatpush1.msra.mxu0 0.0
    %3935 = vmatprep.subr.mxu0 0.0
    %3936 = vmatpush1.msra.mxu0 0.0
    %3937 = vmatprep.subr.mxu0 0.0
    %3938 = vmatpush1.msra.mxu0 0.0
    %3939 = vmatprep.subr.mxu0 0.0
    %3940 = vmatpush1.msra.mxu0 0.0
    %3941 = vmatprep.subr.mxu0 0.0
    %3942 = vmatpush1.msra.mxu0 0.0
    %3943 = vmatprep.subr.mxu0 0.0
    %3944 = vmatpush1.msra.mxu0 0.0
    %3945 = vmatprep.subr.mxu0 0.0
    %3946 = vmatpush1.msra.mxu0 0.0
    %3947 = vmatprep.subr.mxu0 0.0
    %3948 = vmatpush1.msra.mxu0 0.0
    %3949 = vmatprep.subr.mxu0 0.0
    %3950 = vmatpush1.msra.mxu0 0.0
    %3951 = vmatprep.subr.mxu0 0.0
    %3952 = vmatpush1.msra.mxu0 0.0
    %3953 = vmatprep.subr.mxu0 0.0
    %3954 = vmatpush1.msra.mxu0 0.0
    %3955 = vmatprep.subr.mxu0 0.0
    %3956 = vmatpush1.msra.mxu0 0.0
    %3957 = vmatprep.subr.mxu0 0.0
    %3958 = vmatpush1.msra.mxu0 0.0
    %3959 = vmatprep.subr.mxu0 0.0
    %3960 = vmatpush1.msra.mxu0 0.0
    %3961 = vmatprep.subr.mxu0 0.0
    %3962 = vmatpush1.msra.mxu0 0.0
    %3963 = vmatprep.subr.mxu0 0.0
    %3964 = vmatpush1.msra.mxu0 0.0
    %3965 = vmatprep.subr.mxu0 0.0
    %3966 = vmatpush1.msra.mxu0 0.0
    %3967 = vmatprep.subr.mxu0 0.0
    %3968 = vmatpush1.msra.mxu0 0.0
    %3969 = vmatprep.subr.mxu0 0.0
    %3970 = vmatpush1.msra.mxu0 0.0
    %3971 = vmatprep.subr.mxu0 0.0
    %3972 = vmatpush1.msra.mxu0 0.0
    %3973 = vmatprep.subr.mxu0 0.0
    %3974 = vmatpush1.msra.mxu0 0.0
    %3975 = vmatprep.subr.mxu0 0.0
    %3976 = vmatpush1.msra.mxu0 0.0
    %3977 = vmatprep.subr.mxu0 0.0
    %3978 = vmatpush1.msra.mxu0 0.0
    %3979 = vmatprep.subr.mxu0 0.0
    %3980 = vmatpush1.msra.mxu0 0.0
    %3981 = vmatprep.subr.mxu0 0.0
    %3982 = vmatpush1.msra.mxu0 0.0
    %3983 = vmatprep.subr.mxu0 0.0
    %3984 = vmatpush1.msra.mxu0 0.0
    %3985 = vmatprep.subr.mxu0 0.0
    %3986 = vmatpush1.msra.mxu0 0.0
    %3987 = vmatprep.subr.mxu0 0.0
    %3988 = vmatpush1.msra.mxu0 0.0
    %3989 = vmatprep.subr.mxu0 0.0
    %3990 = vmatpush1.msra.mxu0 0.0
    %3991 = vmatprep.subr.mxu0 0.0
    %3992 = vmatpush1.msra.mxu0 0.0
    %3993 = vmatprep.subr.mxu0 0.0
    %3994 = vmatpush1.msra.mxu0 0.0
    %3995 = vmatprep.mubr.f32.mxu0 0.0
    %3996 = vmatmul.mubr.f32.gmra.mrb[0].mxu0 %v3929
    %v3997 = vpop.f32.mrb[0].mxu0
    %v3998 = vadd.f32 0.0, %v3997
    %v3999 = vpop.f32.mrb[0].mxu0
    %v4000 = vadd.f32 0.0, %v3999
    %4001 = vdwg.mxu0
    %v4002 = vadd.f32 %v3916, %v3998
    %v4003 = vadd.f32 %v3918, %v4000
    %v4004 = vmul.f32 %v4002, %v49
    %v4005 = vmul.f32 %v4003, %v50
    %v4006 = vadd.f32 %v3754, %v4004
    %v4007 = vadd.f32 %v3755, %v4005
    %4008 = vmatprep.subr.mxu0 0.0
    %4009 = vmatpush1.msra.mxu0 1.0
    %4010 = vmatprep.subr.mxu0 0.0
    %4011 = vmatpush1.msra.mxu0 1.0
    %4012 = vmatprep.subr.mxu0 0.0
    %4013 = vmatpush1.msra.mxu0 1.0
    %4014 = vmatprep.subr.mxu0 0.0
    %4015 = vmatpush1.msra.mxu0 1.0
    %4016 = vmatprep.subr.mxu0 0.0
    %4017 = vmatpush1.msra.mxu0 1.0
    %4018 = vmatprep.subr.mxu0 0.0
    %4019 = vmatpush1.msra.mxu0 1.0
    %4020 = vmatprep.subr.mxu0 0.0
    %4021 = vmatpush1.msra.mxu0 1.0
    %4022 = vmatprep.subr.mxu0 0.0
    %4023 = vmatpush1.msra.mxu0 1.0
    %4024 = vmatprep.subr.mxu0 0.0
    %4025 = vmatpush1.msra.mxu0 1.0
    %4026 = vmatprep.subr.mxu0 0.0
    %4027 = vmatpush1.msra.mxu0 1.0
    %4028 = vmatprep.subr.mxu0 0.0
    %4029 = vmatpush1.msra.mxu0 1.0
    %4030 = vmatprep.subr.mxu0 0.0
    %4031 = vmatpush1.msra.mxu0 1.0
    %4032 = vmatprep.subr.mxu0 0.0
    %4033 = vmatpush1.msra.mxu0 1.0
    %4034 = vmatprep.subr.mxu0 0.0
    %4035 = vmatpush1.msra.mxu0 1.0
    %4036 = vmatprep.subr.mxu0 0.0
    %4037 = vmatpush1.msra.mxu0 1.0
    %4038 = vmatprep.subr.mxu0 0.0
    %4039 = vmatpush1.msra.mxu0 1.0
    %4040 = vmatprep.subr.mxu0 0.0
    %4041 = vmatpush1.msra.mxu0 1.0
    %4042 = vmatprep.subr.mxu0 0.0
    %4043 = vmatpush1.msra.mxu0 1.0
    %4044 = vmatprep.subr.mxu0 0.0
    %4045 = vmatpush1.msra.mxu0 1.0
    %4046 = vmatprep.subr.mxu0 0.0
    %4047 = vmatpush1.msra.mxu0 1.0
    %4048 = vmatprep.subr.mxu0 0.0
    %4049 = vmatpush1.msra.mxu0 1.0
    %4050 = vmatprep.subr.mxu0 0.0
    %4051 = vmatpush1.msra.mxu0 1.0
    %4052 = vmatprep.subr.mxu0 0.0
    %4053 = vmatpush1.msra.mxu0 1.0
    %4054 = vmatprep.subr.mxu0 0.0
    %4055 = vmatpush1.msra.mxu0 1.0
    %4056 = vmatprep.subr.mxu0 0.0
    %4057 = vmatpush1.msra.mxu0 1.0
    %4058 = vmatprep.subr.mxu0 0.0
    %4059 = vmatpush1.msra.mxu0 1.0
    %4060 = vmatprep.subr.mxu0 0.0
    %4061 = vmatpush1.msra.mxu0 1.0
    %4062 = vmatprep.subr.mxu0 0.0
    %4063 = vmatpush1.msra.mxu0 1.0
    %4064 = vmatprep.subr.mxu0 0.0
    %4065 = vmatpush1.msra.mxu0 1.0
    %4066 = vmatprep.subr.mxu0 0.0
    %4067 = vmatpush1.msra.mxu0 1.0
    %4068 = vmatprep.subr.mxu0 0.0
    %4069 = vmatpush1.msra.mxu0 1.0
    %4070 = vmatprep.subr.mxu0 0.0
    %4071 = vmatpush1.msra.mxu0 1.0
    %4072 = vmatprep.mubr.f32.mxu0 %v4007
    %4073 = vmatmul.mubr.f32.gmra.mrb[0].mxu0 %v4006
    %v4074 = vpop.f32.mrb[0].mxu0
    %v4075 = vadd.f32 0.0, %v4074
    %v4076 = vpop.f32.mrb[0].mxu0
    %4077 = vdwg.mxu0
    %4078 = vmatprep.subr.mxu0 0.0
    %4079 = vmatpush1.msra.mxu0 %v4075
    %4080 = vmatprep.subr.mxu0 0.0
    %4081 = vmatpush1.msra.mxu0 0.0
    %4082 = vmatprep.subr.mxu0 0.0
    %4083 = vmatpush1.msra.mxu0 0.0
    %4084 = vmatprep.subr.mxu0 0.0
    %4085 = vmatpush1.msra.mxu0 0.0
    %4086 = vmatprep.subr.mxu0 0.0
    %4087 = vmatpush1.msra.mxu0 0.0
    %4088 = vmatprep.subr.mxu0 0.0
    %4089 = vmatpush1.msra.mxu0 0.0
    %4090 = vmatprep.subr.mxu0 0.0
    %4091 = vmatpush1.msra.mxu0 0.0
    %4092 = vmatprep.subr.mxu0 0.0
    %4093 = vmatpush1.msra.mxu0 0.0
    %4094 = vmatprep.subr.mxu0 0.0
    %4095 = vmatpush1.msra.mxu0 0.0
    %4096 = vmatprep.subr.mxu0 0.0
    %4097 = vmatpush1.msra.mxu0 0.0
    %4098 = vmatprep.subr.mxu0 0.0
    %4099 = vmatpush1.msra.mxu0 0.0
    %4100 = vmatprep.subr.mxu0 0.0
    %4101 = vmatpush1.msra.mxu0 0.0
    %4102 = vmatprep.subr.mxu0 0.0
    %4103 = vmatpush1.msra.mxu0 0.0
    %4104 = vmatprep.subr.mxu0 0.0
    %4105 = vmatpush1.msra.mxu0 0.0
    %4106 = vmatprep.subr.mxu0 0.0
    %4107 = vmatpush1.msra.mxu0 0.0
    %4108 = vmatprep.subr.mxu0 0.0
    %4109 = vmatpush1.msra.mxu0 0.0
    %4110 = vmatprep.subr.mxu0 0.0
    %4111 = vmatpush1.msra.mxu0 0.0
    %4112 = vmatprep.subr.mxu0 0.0
    %4113 = vmatpush1.msra.mxu0 0.0
    %4114 = vmatprep.subr.mxu0 0.0
    %4115 = vmatpush1.msra.mxu0 0.0
    %4116 = vmatprep.subr.mxu0 0.0
    %4117 = vmatpush1.msra.mxu0 0.0
    %4118 = vmatprep.subr.mxu0 0.0
    %4119 = vmatpush1.msra.mxu0 0.0
    %4120 = vmatprep.subr.mxu0 0.0
    %4121 = vmatpush1.msra.mxu0 0.0
    %4122 = vmatprep.subr.mxu0 0.0
    %4123 = vmatpush1.msra.mxu0 0.0
    %4124 = vmatprep.subr.mxu0 0.0
    %4125 = vmatpush1.msra.mxu0 0.0
    %4126 = vmatprep.subr.mxu0 0.0
    %4127 = vmatpush1.msra.mxu0 0.0
    %4128 = vmatprep.subr.mxu0 0.0
    %4129 = vmatpush1.msra.mxu0 0.0
    %4130 = vmatprep.subr.mxu0 0.0
    %4131 = vmatpush1.msra.mxu0 0.0
    %4132 = vmatprep.subr.mxu0 0.0
    %4133 = vmatpush1.msra.mxu0 0.0
    %4134 = vmatprep.subr.mxu0 0.0
    %4135 = vmatpush1.msra.mxu0 0.0
    %4136 = vmatprep.subr.mxu0 0.0
    %4137 = vmatpush1.msra.mxu0 0.0
    %4138 = vmatprep.subr.mxu0 0.0
    %4139 = vmatpush1.msra.mxu0 0.0
    %4140 = vmatprep.subr.mxu0 0.0
    %4141 = vmatpush1.msra.mxu0 0.0
    %4142 = vmatprep.mubr.f32.mxu0 0.0
    %4143 = vmatmul.mubr.f32.gmra.mrb[0].mxu0 %v880
    %v4144 = vpop.f32.mrb[0].mxu0
    %v4145 = vadd.f32 0.0, %v4144
    %v4146 = vpop.f32.mrb[0].mxu0
    %4147 = vdwg.mxu0
    %v4148 = vmul.f32 %v4145, 0.001953125
    %4150 = vset.pattern.permute.xlu0 0
    %4151 = vperm.xlu0 %4150, %v4148
    %v4152 = vpop.permute.xlu0 %4151
    %v4154 = vsub.f32 %v4006, %v4152
    %v4155 = vsub.f32 %v4007, %v4152
    %v4156 = vmul.f32 %v4154, %v4154
    %v4157 = vmul.f32 %v4155, %v4155
    %4158 = vmatprep.subr.mxu0 0.0
    %4159 = vmatpush1.msra.mxu0 1.0
    %4160 = vmatprep.subr.mxu0 0.0
    %4161 = vmatpush1.msra.mxu0 1.0
    %4162 = vmatprep.subr.mxu0 0.0
    %4163 = vmatpush1.msra.mxu0 1.0
    %4164 = vmatprep.subr.mxu0 0.0
    %4165 = vmatpush1.msra.mxu0 1.0
    %4166 = vmatprep.subr.mxu0 0.0
    %4167 = vmatpush1.msra.mxu0 1.0
    %4168 = vmatprep.subr.mxu0 0.0
    %4169 = vmatpush1.msra.mxu0 1.0
    %4170 = vmatprep.subr.mxu0 0.0
    %4171 = vmatpush1.msra.mxu0 1.0
    %4172 = vmatprep.subr.mxu0 0.0
    %4173 = vmatpush1.msra.mxu0 1.0
    %4174 = vmatprep.subr.mxu0 0.0
    %4175 = vmatpush1.msra.mxu0 1.0
    %4176 = vmatprep.subr.mxu0 0.0
    %4177 = vmatpush1.msra.mxu0 1.0
    %4178 = vmatprep.subr.mxu0 0.0
    %4179 = vmatpush1.msra.mxu0 1.0
    %4180 = vmatprep.subr.mxu0 0.0
    %4181 = vmatpush1.msra.mxu0 1.0
    %4182 = vmatprep.subr.mxu0 0.0
    %4183 = vmatpush1.msra.mxu0 1.0
    %4184 = vmatprep.subr.mxu0 0.0
    %4185 = vmatpush1.msra.mxu0 1.0
    %4186 = vmatprep.subr.mxu0 0.0
    %4187 = vmatpush1.msra.mxu0 1.0
    %4188 = vmatprep.subr.mxu0 0.0
    %4189 = vmatpush1.msra.mxu0 1.0
    %4190 = vmatprep.subr.mxu0 0.0
    %4191 = vmatpush1.msra.mxu0 1.0
    %4192 = vmatprep.subr.mxu0 0.0
    %4193 = vmatpush1.msra.mxu0 1.0
    %4194 = vmatprep.subr.mxu0 0.0
    %4195 = vmatpush1.msra.mxu0 1.0
    %4196 = vmatprep.subr.mxu0 0.0
    %4197 = vmatpush1.msra.mxu0 1.0
    %4198 = vmatprep.subr.mxu0 0.0
    %4199 = vmatpush1.msra.mxu0 1.0
    %4200 = vmatprep.subr.mxu0 0.0
    %4201 = vmatpush1.msra.mxu0 1.0
    %4202 = vmatprep.subr.mxu0 0.0
    %4203 = vmatpush1.msra.mxu0 1.0
    %4204 = vmatprep.subr.mxu0 0.0
    %4205 = vmatpush1.msra.mxu0 1.0
    %4206 = vmatprep.subr.mxu0 0.0
    %4207 = vmatpush1.msra.mxu0 1.0
    %4208 = vmatprep.subr.mxu0 0.0
    %4209 = vmatpush1.msra.mxu0 1.0
    %4210 = vmatprep.subr.mxu0 0.0
    %4211 = vmatpush1.msra.mxu0 1.0
    %4212 = vmatprep.subr.mxu0 0.0
    %4213 = vmatpush1.msra.mxu0 1.0
    %4214 = vmatprep.subr.mxu0 0.0
    %4215 = vmatpush1.msra.mxu0 1.0
    %4216 = vmatprep.subr.mxu0 0.0
    %4217 = vmatpush1.msra.mxu0 1.0
    %4218 = vmatprep.subr.mxu0 0.0
    %4219 = vmatpush1.msra.mxu0 1.0
    %4220 = vmatprep.subr.mxu0 0.0
    %4221 = vmatpush1.msra.mxu0 1.0
    %4222 = vmatprep.mubr.f32.mxu0 %v4157
    %4223 = vmatmul.mubr.f32.gmra.mrb[0].mxu0 %v4156
    %v4224 = vpop.f32.mrb[0].mxu0
    %v4225 = vadd.f32 0.0, %v4224
    %v4226 = vpop.f32.mrb[0].mxu0
    %4227 = vdwg.mxu0
    %4228 = vmatprep.subr.mxu0 0.0
    %4229 = vmatpush1.msra.mxu0 %v4225
    %4230 = vmatprep.subr.mxu0 0.0
    %4231 = vmatpush1.msra.mxu0 0.0
    %4232 = vmatprep.subr.mxu0 0.0
    %4233 = vmatpush1.msra.mxu0 0.0
    %4234 = vmatprep.subr.mxu0 0.0
    %4235 = vmatpush1.msra.mxu0 0.0
    %4236 = vmatprep.subr.mxu0 0.0
    %4237 = vmatpush1.msra.mxu0 0.0
    %4238 = vmatprep.subr.mxu0 0.0
    %4239 = vmatpush1.msra.mxu0 0.0
    %4240 = vmatprep.subr.mxu0 0.0
    %4241 = vmatpush1.msra.mxu0 0.0
    %4242 = vmatprep.subr.mxu0 0.0
    %4243 = vmatpush1.msra.mxu0 0.0
    %4244 = vmatprep.subr.mxu0 0.0
    %4245 = vmatpush1.msra.mxu0 0.0
    %4246 = vmatprep.subr.mxu0 0.0
    %4247 = vmatpush1.msra.mxu0 0.0
    %4248 = vmatprep.subr.mxu0 0.0
    %4249 = vmatpush1.msra.mxu0 0.0
    %4250 = vmatprep.subr.mxu0 0.0
    %4251 = vmatpush1.msra.mxu0 0.0
    %4252 = vmatprep.subr.mxu0 0.0
    %4253 = vmatpush1.msra.mxu0 0.0
    %4254 = vmatprep.subr.mxu0 0.0
    %4255 = vmatpush1.msra.mxu0 0.0
    %4256 = vmatprep.subr.mxu0 0.0
    %4257 = vmatpush1.msra.mxu0 0.0
    %4258 = vmatprep.subr.mxu0 0.0
    %4259 = vmatpush1.msra.mxu0 0.0
    %4260 = vmatprep.subr.mxu0 0.0
    %4261 = vmatpush1.msra.mxu0 0.0
    %4262 = vmatprep.subr.mxu0 0.0
    %4263 = vmatpush1.msra.mxu0 0.0
    %4264 = vmatprep.subr.mxu0 0.0
    %4265 = vmatpush1.msra.mxu0 0.0
    %4266 = vmatprep.subr.mxu0 0.0
    %4267 = vmatpush1.msra.mxu0 0.0
    %4268 = vmatprep.subr.mxu0 0.0
    %4269 = vmatpush1.msra.mxu0 0.0
    %4270 = vmatprep.subr.mxu0 0.0
    %4271 = vmatpush1.msra.mxu0 0.0
    %4272 = vmatprep.subr.mxu0 0.0
    %4273 = vmatpush1.msra.mxu0 0.0
    %4274 = vmatprep.subr.mxu0 0.0
    %4275 = vmatpush1.msra.mxu0 0.0
    %4276 = vmatprep.subr.mxu0 0.0
    %4277 = vmatpush1.msra.mxu0 0.0
    %4278 = vmatprep.subr.mxu0 0.0
    %4279 = vmatpush1.msra.mxu0 0.0
    %4280 = vmatprep.subr.mxu0 0.0
    %4281 = vmatpush1.msra.mxu0 0.0
    %4282 = vmatprep.subr.mxu0 0.0
    %4283 = vmatpush1.msra.mxu0 0.0
    %4284 = vmatprep.subr.mxu0 0.0
    %4285 = vmatpush1.msra.mxu0 0.0
    %4286 = vmatprep.subr.mxu0 0.0
    %4287 = vmatpush1.msra.mxu0 0.0
    %4288 = vmatprep.subr.mxu0 0.0
    %4289 = vmatpush1.msra.mxu0 0.0
    %4290 = vmatprep.subr.mxu0 0.0
    %4291 = vmatpush1.msra.mxu0 0.0
    %4292 = vmatprep.mubr.f32.mxu0 0.0
    %4293 = vmatmul.mubr.f32.gmra.mrb[0].mxu0 %v880
    %v4294 = vpop.f32.mrb[0].mxu0
    %v4295 = vadd.f32 0.0, %v4294
    %v4296 = vpop.f32.mrb[0].mxu0
    %4297 = vdwg.mxu0
    %v4298 = vmul.f32 %v4295, 0.001953125
    %v4299 = vadd.f32 %v4298, 1e-05
    %v4300 = vrsqrt.pop %v4299
    %4302 = vrot.lane.b32.xlu0 %v4300, 6
    %v4303 = vpop.permute.xlu0 %4302
    %v4305 = vmul.f32 %v38, %v4303
    %4307 = vset.pattern.permute.xlu0 6
    %4308 = vperm.xlu0 %4307, %v4305
    %v4309 = vpop.permute.xlu0 %4308
    %v4311 = vmul.f32 %v4154, %v4309
    %v4312 = vmul.f32 %v4155, %v4309
    %4313 = vset.pattern.permute.xlu0 7
    %4314 = vperm.xlu0 %4313, %v38
    %v4315 = vpop.permute.xlu0 %4314
    %v4317 = vadd.f32 %v4311, %v4315
    %v4318 = vadd.f32 %v4312, %v4315
    %v4319 = vstv %s2194
    %v4320 = vmul.f32 %v4317, %v4319
    %v4321 = vmul.f32 %v4318, %v4319
    %v4322 = vstv %s2193
    %v4323 = vmul.f32 %v2191, %v4322
    %v4324 = vmul.f32 %v2192, %v4322
    %v4325 = vadd.f32 %v4320, %v4323
    %v4326 = vadd.f32 %v4321, %v4324
    %v4327 = vmax.f32 %v4325, 0.0
    %v4328 = vmax.f32 %v4326, 0.0
    %4329 = vst [vmem:[%s6] sm:$0xff] %v4327
    %4330 = vst [vmem:[%s6 + $0x8] sm:$0xff] %v4328
    // Predicated region
    $region30: #{decode_block.1} parent=1 // pred_check
      _
    $region31: #{decode_block.1} parent=1 // pred_check_branch
      %4332 = sbr.rel (0) target = $region33
    $region32: #{decode_block.1} parent=1 // pred_region
      _
    $region33: #{decode_block.1} parent=1 // pred_fallthru
      _
    // Predicated region
    $region34: #{decode_block.1} parent=1 // pred_check
      _
    $region35: #{decode_block.1} parent=1 // pred_check_branch
      %4334 = sbr.rel (0) target = $region37
    $region36: #{decode_block.1} parent=1 // pred_region
      _
    $region37: #{decode_block.1} parent=1 // pred_fallthru
      _
    %4335 = vsyncpa [#allocation3], 1

</llo_original>
